<compile_context>
chip_gen: v7x
topology: tpu7x:2x2x1
jax: 0.10.0
libtpu: 0.0.40
codegen_flags: <defaults>
</compile_context>

<pallas_src>
import functools

import jax
import jax.numpy as jnp
from jax import lax
from jax.experimental import pallas as pl
from jax.experimental.pallas import tpu as pltpu

LEAKY_SLOPE = 0.01   # F.leaky_relu default
BN_EPS = 1e-5        # nn.BatchNorm2d default


def _leaky_relu(v):
    return jnp.where(v >= 0, v, LEAKY_SLOPE * v)


def upbottleneck_kernel(x_ref, w1_ref, weff_ref, w3_ref, bn_ref, b4_ref, mask_ref,
                        o_ref, *, H, W):
    """Per-batch-element fused UpBottleNeck body (channel-major, low resolution).

    x_ref:    (1, Cin, H*W)      NCHW input, spatially flattened (LOW resolution)
    w1_ref:   (Cin, Cin)         conv1 weight, torch (out, in) layout, bn2 scale folded per row
    weff_ref: (Cin, 16)          effective 2x2 depthwise taps per parity (a,b,u,v), bn3 folded
    w3_ref:   (Cout, Cin)        conv3 weight, torch (out, in) layout, bn4 scale folded per row
    bn_ref:   (Cin, 4)           columns [s1, b1, b2, b3]   (channel-major broadcasts)
    b4_ref:   (Cout, 1)          bn4 shift
    mask_ref: (2, H*W)           row0: 1.0 where j-1 >= 0, row1: 1.0 where j+1 <= W-1
    o_ref:    (1, 2, 2, Cout, H*W)  parity-major output (lane-dense (Cout, H*W) stores)
    """
    HW = H * W
    f32 = jnp.float32

    xc = x_ref[0]                                   # (Cin, HW)
    s1 = bn_ref[:, 0:1]
    b1 = bn_ref[:, 1:2]
    b2 = bn_ref[:, 2:3]
    b3 = bn_ref[:, 3:4]
    b4 = b4_ref[...]                                # (Cout, 1)

    # ---- stage 1 at LOW resolution: bn1 + leaky + conv1(1x1 as MXU matmul) + bn2 + leaky ----
    a1 = _leaky_relu(xc * s1 + b1)                  # (Cin, HW)
    y1 = jnp.dot(w1_ref[...], a1, preferred_element_type=f32)   # bn2 scale folded into w1
    a2 = _leaky_relu(y1 + b2)                       # (Cin, HW)

    # ---- 9 spatially shifted low-res slabs (flat lane shifts + masks, no reshapes) ----------
    Cin = a2.shape[0]
    zpad = jnp.zeros((Cin, W + 1), f32)
    padded = jnp.concatenate([zpad, a2, zpad], axis=1)   # (Cin, HW + 2W + 2)

    mask_l = mask_ref[0:1, :]                        # (1, HW) valid where j-1 >= 0
    mask_r = mask_ref[1:2, :]                        # (1, HW) valid where j+1 <= W-1

    base = W + 1
    shifted = {}
    for dr in (-1, 0, 1):
        for dc in (-1, 0, 1):
            off = base + dr * W + dc
            raw = padded[:, off:off + HW]            # value at (i+dr, j+dc), row OOB -> pad zeros
            if dc == -1:
                raw = raw * mask_l                   # column OOB -> zero
            elif dc == 1:
                raw = raw * mask_r
            shifted[(dr, dc)] = raw                  # (Cin, HW)

    # ---- per-parity 2x2 depthwise conv + bn3 + leaky + conv3(1x1) + bn4 + sigmoid ------------
    wq = weff_ref[...]                               # (Cin, 16), bn3 scale folded
    w3 = w3_ref[...]                                 # (Cout, Cin), bn4 scale folded

    for a in (0, 1):
        for b in (0, 1):
            acc = None
            for u in (0, 1):
                for v in (0, 1):
                    k = ((a * 2 + b) * 2 + u) * 2 + v
                    tap = wq[:, k:k + 1]             # (Cin, 1)
                    term = tap * shifted[(a + u - 1, b + v - 1)]
                    acc = term if acc is None else acc + term
            a3 = _leaky_relu(acc + b3)               # (Cin, HW)
            y3 = jnp.dot(w3, a3, preferred_element_type=f32)   # (Cout, HW) on MXU
            o_ref[0, a, b, :, :] = jax.nn.sigmoid(y3 + b4)     # lane-dense store


# Row map of the 3x3 taps onto the 2 low-res taps of each output parity (nearest x2 upsample).
_A = jnp.array([[[1., 0., 0.], [0., 1., 1.]],        # parity 0: offsets (-1, 0)
                [[1., 1., 0.], [0., 0., 1.]]],       # parity 1: offsets (0, +1)
               jnp.float32)


def prepare_params(p):
    """One-time (off hot path) folding/packing of module parameters into kernel operands."""
    hp = jax.lax.Precision.HIGHEST
    w1f = p["w1"] * p["s2"][:, None]                 # bn2 scale folded per output channel
    w3f = p["w3"] * p["s4"][:, None]                 # bn4 scale folded per output channel
    # effective 2x2 depthwise taps per output parity: weff[a,b,u,v,c] = sum_{r,s} A[a,u,r]A[b,v,s]w[c,r,s]
    weff = jnp.einsum("aur,bvs,crs->abuvc", _A, _A, p["wdw"], precision=hp)
    weff = weff * p["s3"]                            # bn3 scale folded per channel
    weff = weff.reshape(16, -1).T                    # (Cin, 16), col k = ((a*2+b)*2+u)*2+v
    bn_col = jnp.stack([p["s1"], p["b1"], p["b2"], p["b3"]], axis=1)   # (Cin, 4)
    b4_col = p["b4"][:, None]                                           # (Cout, 1)
    return dict(w1=w1f, weff=weff, w3=w3f, bn_col=bn_col, b4=b4_col)


def up_bottleneck_forward(x_nchw, kp, *, interpret=False):
    """NCHW in -> NCHW out, matching the PyTorch forward (inference-mode BN)."""
    N, Cin, H, W = x_nchw.shape
    HW = H * W
    Cout = kp["w3"].shape[0]

    x_flat = x_nchw.reshape(N, Cin, HW).astype(jnp.float32)   # free contiguous reshape

    # lane masks for the column wrap of the flat spatial shifts (precomputed, tiny input)
    j = jnp.arange(HW, dtype=jnp.int32) % W
    masks = jnp.stack([(j >= 1).astype(jnp.float32),
                       (j <= W - 2).astype(jnp.float32)], axis=0)       # (2, HW)

    kernel = functools.partial(upbottleneck_kernel, H=H, W=W)

    out = pl.pallas_call(
        kernel,
        out_shape=jax.ShapeDtypeStruct((N, 2, 2, Cout, HW), jnp.float32),
        grid_spec=pltpu.PrefetchScalarGridSpec(
            num_scalar_prefetch=0,
            grid=(N,),
            in_specs=[
                pl.BlockSpec((1, Cin, HW), lambda n: (n, 0, 0)),   # x (low-res, NCHW-flat)
                pl.BlockSpec((Cin, Cin), lambda n: (0, 0)),        # w1 (bn2 folded)
                pl.BlockSpec((Cin, 16), lambda n: (0, 0)),         # effective 2x2 taps (bn3 folded)
                pl.BlockSpec((Cout, Cin), lambda n: (0, 0)),       # w3 (bn4 folded)
                pl.BlockSpec((Cin, 4), lambda n: (0, 0)),          # [s1, b1, b2, b3]
                pl.BlockSpec((Cout, 1), lambda n: (0, 0)),         # b4
                pl.BlockSpec((2, HW), lambda n: (0, 0)),           # column-wrap masks
            ],
            out_specs=pl.BlockSpec((1, 2, 2, Cout, HW), lambda n: (n, 0, 0, 0, 0)),
        ),
        compiler_params=pltpu.CompilerParams(
            dimension_semantics=("parallel",)),
        interpret=interpret,
    )(x_flat, kp["w1"], kp["weff"], kp["w3"], kp["bn_col"], kp["b4"], masks)

    # interleave the 4 parity images back into NCHW (one cheap XLA pass over the small output)
    out = out.reshape(N, 2, 2, Cout, H, W)
    out = out.transpose(0, 3, 4, 1, 5, 2)            # (N, Cout, H, 2, W, 2)
    return out.reshape(N, Cout, 2 * H, 2 * W)


def make_params(key, cin=32, cout=64):
    """Deterministic synthetic parameters matching UpBottleNeck.__init__ shapes (torch layouts)."""
    keys = jax.random.split(key, 20)

    def folded_bn(kg, kb, km, kv, c):
        gamma = 1.0 + 0.1 * jax.random.normal(kg, (c,), jnp.float32)
        beta = 0.1 * jax.random.normal(kb, (c,), jnp.float32)
        mean = 0.1 * jax.random.normal(km, (c,), jnp.float32)
        var = jax.random.uniform(kv, (c,), jnp.float32, minval=0.5, maxval=1.5)
        scale = gamma / jnp.sqrt(var + BN_EPS)
        shift = beta - mean * scale
        return scale, shift

    s1, b1 = folded_bn(keys[0], keys[1], keys[2], keys[3], cin)
    s2, b2 = folded_bn(keys[4], keys[5], keys[6], keys[7], cin)
    s3, b3 = folded_bn(keys[8], keys[9], keys[10], keys[11], cin)
    s4, b4 = folded_bn(keys[12], keys[13], keys[14], keys[15], cout)

    w1 = 0.1 * jax.random.normal(keys[16], (cin, cin), jnp.float32)       # torch (out, in)
    wdw = 0.1 * jax.random.normal(keys[17], (cin, 3, 3), jnp.float32)     # torch (c, kh, kw)
    w3 = 0.1 * jax.random.normal(keys[18], (cout, cin), jnp.float32)      # torch (out, in)

    return dict(w1=w1, wdw=wdw, w3=w3,
                s1=s1, b1=b1, s2=s2, b2=b2, s3=s3, b3=b3, s4=s4, b4=b4)


def reference_forward(x_nchw, p):
    """Pure-JAX reference in PyTorch order (upsample first, unfolded BN) for validation."""
    hp = jax.lax.Precision.HIGHEST
    x = jnp.transpose(x_nchw, (0, 2, 3, 1)).astype(jnp.float32)   # NHWC
    x = jnp.repeat(jnp.repeat(x, 2, axis=1), 2, axis=2)           # nearest x2
    a1 = _leaky_relu(x * p["s1"] + p["b1"])
    y1 = jnp.einsum("nhwc,dc->nhwd", a1, p["w1"], precision=hp)
    a2 = _leaky_relu(y1 * p["s2"] + p["b2"])
    Hu, Wu = a2.shape[1], a2.shape[2]
    ap = jnp.pad(a2, ((0, 0), (1, 1), (1, 1), (0, 0)))
    acc = jnp.zeros_like(a2)
    for r in range(3):
        for s in range(3):
            acc = acc + ap[:, r:r + Hu, s:s + Wu, :] * p["wdw"][:, r, s]
    a3 = _leaky_relu(acc * p["s3"] + p["b3"])
    y3 = jnp.einsum("nhwc,dc->nhwd", a3, p["w3"], precision=hp)
    a4 = jax.nn.sigmoid(y3 * p["s4"] + p["b4"])
    return jnp.transpose(a4, (0, 3, 1, 2))


if __name__ == "__main__":
    key = jax.random.PRNGKey(0)
    kx, kp = jax.random.split(key)

    N, Cin, H, W = 2, 32, 16, 16        # module defaults: in_channels=32, out_channels=64
    Cout = 64
    x = jax.random.normal(kx, (N, Cin, H, W), jnp.float32)
    params = make_params(kp, cin=Cin, cout=Cout)
    kparams = prepare_params(params)    # BN folding / upsample-into-conv folding, off the hot path

    out = jax.block_until_ready(up_bottleneck_forward(x, kparams))
    ref = jax.block_until_ready(reference_forward(x, params))

    assert out.shape == (N, Cout, 2 * H, 2 * W), out.shape
    err = float(jnp.max(jnp.abs(out - ref)))
    assert err < 1e-3, f"mismatch vs reference: max abs err = {err}"

    print("KERNEL_OK")
</pallas_src>

<mosaic_0001>
module attributes {stable_mosaic.version = 11 : i64} {
  func.func @upbottleneck_kernel(%arg0: i32, %arg1: memref<1x32x256xf32, #tpu.memory_space<vmem>>, %arg2: memref<32x32xf32, #tpu.memory_space<vmem>>, %arg3: memref<32x16xf32, #tpu.memory_space<vmem>>, %arg4: memref<64x32xf32, #tpu.memory_space<vmem>>, %arg5: memref<32x4xf32, #tpu.memory_space<vmem>>, %arg6: memref<64x1xf32, #tpu.memory_space<vmem>>, %arg7: memref<2x256xf32, #tpu.memory_space<vmem>>, %arg8: memref<1x2x2x64x256xf32, #tpu.memory_space<vmem>>) attributes {dimension_semantics = [#tpu.dimension_semantics<parallel>], iteration_bounds = array<i64: 2>, scalar_prefetch = 0 : i64, scratch_operands = 0 : i64, tpu.core_type = #tpu.core_type<tc>, window_params = [{transform_indices = @transform_0, window_bounds = array<i64: 1, 32, 256>}, {pipeline_mode = #tpu.pipeline_mode<synchronous>, transform_indices = @transform_1, window_bounds = array<i64: 32, 32>}, {pipeline_mode = #tpu.pipeline_mode<synchronous>, transform_indices = @transform_2, window_bounds = array<i64: 32, 16>}, {pipeline_mode = #tpu.pipeline_mode<synchronous>, transform_indices = @transform_3, window_bounds = array<i64: 64, 32>}, {pipeline_mode = #tpu.pipeline_mode<synchronous>, transform_indices = @transform_4, window_bounds = array<i64: 32, 4>}, {pipeline_mode = #tpu.pipeline_mode<synchronous>, transform_indices = @transform_5, window_bounds = array<i64: 64, 1>}, {pipeline_mode = #tpu.pipeline_mode<synchronous>, transform_indices = @transform_6, window_bounds = array<i64: 2, 256>}, {transform_indices = @transform_7, window_bounds = array<i64: 1, 2, 2, 64, 256>}]} {
    %c0 = arith.constant 0 : index
    %c0_0 = arith.constant 0 : index
    %c0_1 = arith.constant 0 : index
    %0 = vector.load %arg1[%c0, %c0_0, %c0_1] : memref<1x32x256xf32, #tpu.memory_space<vmem>>, vector<1x32x256xf32>
    %1 = vector.shape_cast %0 : vector<1x32x256xf32> to vector<32x256xf32>
    %c0_2 = arith.constant 0 : index
    %c0_3 = arith.constant 0 : index
    %2 = vector.load %arg5[%c0_2, %c0_3] : memref<32x4xf32, #tpu.memory_space<vmem>>, vector<32x1xf32>
    %c0_4 = arith.constant 0 : index
    %c1 = arith.constant 1 : index
    %3 = vector.load %arg5[%c0_4, %c1] : memref<32x4xf32, #tpu.memory_space<vmem>>, vector<32x1xf32>
    %c0_5 = arith.constant 0 : index
    %c2 = arith.constant 2 : index
    %4 = vector.load %arg5[%c0_5, %c2] : memref<32x4xf32, #tpu.memory_space<vmem>>, vector<32x1xf32>
    %c0_6 = arith.constant 0 : index
    %c3 = arith.constant 3 : index
    %5 = vector.load %arg5[%c0_6, %c3] : memref<32x4xf32, #tpu.memory_space<vmem>>, vector<32x1xf32>
    %c0_7 = arith.constant 0 : index
    %c0_8 = arith.constant 0 : index
    %6 = vector.load %arg6[%c0_7, %c0_8] : memref<64x1xf32, #tpu.memory_space<vmem>>, vector<64x1xf32>
    %7 = vector.broadcast %2 : vector<32x1xf32> to vector<32x256xf32>
    %8 = arith.mulf %1, %7 : vector<32x256xf32>
    %9 = vector.broadcast %3 : vector<32x1xf32> to vector<32x256xf32>
    %10 = arith.addf %8, %9 : vector<32x256xf32>
    %cst = arith.constant 0.000000e+00 : f32
    %11 = vector.broadcast %cst : f32 to vector<32x256xf32>
    %12 = arith.cmpf oge, %10, %11 : vector<32x256xf32>
    %cst_9 = arith.constant 0.00999999977 : f32
    %13 = vector.broadcast %cst_9 : f32 to vector<32x256xf32>
    %14 = arith.mulf %13, %10 : vector<32x256xf32>
    %15 = arith.select %12, %10, %14 : vector<32x256xi1>, vector<32x256xf32>
    %c0_10 = arith.constant 0 : index
    %c0_11 = arith.constant 0 : index
    %16 = vector.load %arg2[%c0_10, %c0_11] : memref<32x32xf32, #tpu.memory_space<vmem>>, vector<32x32xf32>
    %cst_12 = arith.constant dense<0.000000e+00> : vector<32x256xf32>
    %17 = tpu.matmul %16, %15, %cst_12 {dimension_numbers = #tpu.dot_dimension_numbers<[1], [0], [0], [1], [0, 0, 1, 1], [], []>} : vector<32x32xf32>, vector<32x256xf32>, vector<32x256xf32> -> vector<32x256xf32>
    %18 = vector.broadcast %4 : vector<32x1xf32> to vector<32x256xf32>
    %19 = arith.addf %17, %18 : vector<32x256xf32>
    %cst_13 = arith.constant 0.000000e+00 : f32
    %20 = vector.broadcast %cst_13 : f32 to vector<32x256xf32>
    %21 = arith.cmpf oge, %19, %20 : vector<32x256xf32>
    %cst_14 = arith.constant 0.00999999977 : f32
    %22 = vector.broadcast %cst_14 : f32 to vector<32x256xf32>
    %23 = arith.mulf %22, %19 : vector<32x256xf32>
    %24 = arith.select %21, %19, %23 : vector<32x256xi1>, vector<32x256xf32>
    %cst_15 = arith.constant 0.000000e+00 : f32
    %25 = vector.broadcast %cst_15 : f32 to vector<32x17xf32>
    %26 = tpu.concatenate %25, %24, %25 in 1 : vector<32x17xf32>, vector<32x256xf32>, vector<32x17xf32> -> vector<32x290xf32>
    %c0_16 = arith.constant 0 : index
    %c0_17 = arith.constant 0 : index
    %27 = vector.load %arg7[%c0_16, %c0_17] : memref<2x256xf32, #tpu.memory_space<vmem>>, vector<1x256xf32>
    %c1_18 = arith.constant 1 : index
    %c0_19 = arith.constant 0 : index
    %28 = vector.load %arg7[%c1_18, %c0_19] : memref<2x256xf32, #tpu.memory_space<vmem>>, vector<1x256xf32>
    %29 = vector.extract_strided_slice %26 {offsets = [0, 0], sizes = [32, 256], strides = [1, 1]} : vector<32x290xf32> to vector<32x256xf32>
    %30 = vector.broadcast %27 : vector<1x256xf32> to vector<32x256xf32>
    %31 = arith.mulf %29, %30 : vector<32x256xf32>
    %32 = vector.extract_strided_slice %26 {offsets = [0, 1], sizes = [32, 256], strides = [1, 1]} : vector<32x290xf32> to vector<32x256xf32>
    %33 = vector.extract_strided_slice %26 {offsets = [0, 2], sizes = [32, 256], strides = [1, 1]} : vector<32x290xf32> to vector<32x256xf32>
    %34 = vector.broadcast %28 : vector<1x256xf32> to vector<32x256xf32>
    %35 = arith.mulf %33, %34 : vector<32x256xf32>
    %36 = vector.extract_strided_slice %26 {offsets = [0, 16], sizes = [32, 256], strides = [1, 1]} : vector<32x290xf32> to vector<32x256xf32>
    %37 = vector.broadcast %27 : vector<1x256xf32> to vector<32x256xf32>
    %38 = arith.mulf %36, %37 : vector<32x256xf32>
    %39 = vector.extract_strided_slice %26 {offsets = [0, 17], sizes = [32, 256], strides = [1, 1]} : vector<32x290xf32> to vector<32x256xf32>
    %40 = vector.extract_strided_slice %26 {offsets = [0, 18], sizes = [32, 256], strides = [1, 1]} : vector<32x290xf32> to vector<32x256xf32>
    %41 = vector.broadcast %28 : vector<1x256xf32> to vector<32x256xf32>
    %42 = arith.mulf %40, %41 : vector<32x256xf32>
    %43 = vector.extract_strided_slice %26 {offsets = [0, 32], sizes = [32, 256], strides = [1, 1]} : vector<32x290xf32> to vector<32x256xf32>
    %44 = vector.broadcast %27 : vector<1x256xf32> to vector<32x256xf32>
    %45 = arith.mulf %43, %44 : vector<32x256xf32>
    %46 = vector.extract_strided_slice %26 {offsets = [0, 33], sizes = [32, 256], strides = [1, 1]} : vector<32x290xf32> to vector<32x256xf32>
    %47 = vector.extract_strided_slice %26 {offsets = [0, 34], sizes = [32, 256], strides = [1, 1]} : vector<32x290xf32> to vector<32x256xf32>
    %48 = vector.broadcast %28 : vector<1x256xf32> to vector<32x256xf32>
    %49 = arith.mulf %47, %48 : vector<32x256xf32>
    %c0_20 = arith.constant 0 : index
    %c0_21 = arith.constant 0 : index
    %50 = vector.load %arg3[%c0_20, %c0_21] : memref<32x16xf32, #tpu.memory_space<vmem>>, vector<32x16xf32>
    %c0_22 = arith.constant 0 : index
    %c0_23 = arith.constant 0 : index
    %51 = vector.load %arg4[%c0_22, %c0_23] : memref<64x32xf32, #tpu.memory_space<vmem>>, vector<64x32xf32>
    %52 = vector.extract_strided_slice %50 {offsets = [0, 0], sizes = [32, 1], strides = [1, 1]} : vector<32x16xf32> to vector<32x1xf32>
    %53 = vector.broadcast %52 : vector<32x1xf32> to vector<32x256xf32>
    %54 = arith.mulf %53, %31 : vector<32x256xf32>
    %55 = vector.extract_strided_slice %50 {offsets = [0, 1], sizes = [32, 1], strides = [1, 1]} : vector<32x16xf32> to vector<32x1xf32>
    %56 = vector.broadcast %55 : vector<32x1xf32> to vector<32x256xf32>
    %57 = arith.mulf %56, %32 : vector<32x256xf32>
    %58 = arith.addf %54, %57 : vector<32x256xf32>
    %59 = vector.extract_strided_slice %50 {offsets = [0, 2], sizes = [32, 1], strides = [1, 1]} : vector<32x16xf32> to vector<32x1xf32>
    %60 = vector.broadcast %59 : vector<32x1xf32> to vector<32x256xf32>
    %61 = arith.mulf %60, %38 : vector<32x256xf32>
    %62 = arith.addf %58, %61 : vector<32x256xf32>
    %63 = vector.extract_strided_slice %50 {offsets = [0, 3], sizes = [32, 1], strides = [1, 1]} : vector<32x16xf32> to vector<32x1xf32>
    %64 = vector.broadcast %63 : vector<32x1xf32> to vector<32x256xf32>
    %65 = arith.mulf %64, %39 : vector<32x256xf32>
    %66 = arith.addf %62, %65 : vector<32x256xf32>
    %67 = vector.broadcast %5 : vector<32x1xf32> to vector<32x256xf32>
    %68 = arith.addf %66, %67 : vector<32x256xf32>
    %cst_24 = arith.constant 0.000000e+00 : f32
    %69 = vector.broadcast %cst_24 : f32 to vector<32x256xf32>
    %70 = arith.cmpf oge, %68, %69 : vector<32x256xf32>
    %cst_25 = arith.constant 0.00999999977 : f32
    %71 = vector.broadcast %cst_25 : f32 to vector<32x256xf32>
    %72 = arith.mulf %71, %68 : vector<32x256xf32>
    %73 = arith.select %70, %68, %72 : vector<32x256xi1>, vector<32x256xf32>
    %cst_26 = arith.constant dense<0.000000e+00> : vector<64x256xf32>
    %74 = tpu.matmul %51, %73, %cst_26 {dimension_numbers = #tpu.dot_dimension_numbers<[1], [0], [0], [1], [0, 0, 1, 1], [], []>} : vector<64x32xf32>, vector<32x256xf32>, vector<64x256xf32> -> vector<64x256xf32>
    %75 = vector.broadcast %6 : vector<64x1xf32> to vector<64x256xf32>
    %76 = arith.addf %74, %75 : vector<64x256xf32>
    %77 = arith.negf %76 : vector<64x256xf32>
    %78 = math.exp %77 : vector<64x256xf32>
    %cst_27 = arith.constant 1.000000e+00 : f32
    %79 = vector.broadcast %cst_27 : f32 to vector<64x256xf32>
    %80 = arith.addf %79, %78 : vector<64x256xf32>
    %81 = arith.divf %79, %80 : vector<64x256xf32>
    %c0_28 = arith.constant 0 : index
    %c0_29 = arith.constant 0 : index
    %c0_30 = arith.constant 0 : index
    %c0_31 = arith.constant 0 : index
    %c0_32 = arith.constant 0 : index
    %82 = vector.load %arg8[%c0_28, %c0_29, %c0_30, %c0_31, %c0_32] : memref<1x2x2x64x256xf32, #tpu.memory_space<vmem>>, vector<1x1x1x64x256xf32>
    %83 = vector.shape_cast %82 : vector<1x1x1x64x256xf32> to vector<64x256xf32>
    %84 = vector.shape_cast %81 : vector<64x256xf32> to vector<1x1x1x64x256xf32>
    tpu.vector_store %arg8[%c0_28, %c0_29, %c0_30, %c0_31, %c0_32], %84 {strides = array<i32>} : memref<1x2x2x64x256xf32, #tpu.memory_space<vmem>>, vector<1x1x1x64x256xf32>,
    %85 = vector.extract_strided_slice %50 {offsets = [0, 4], sizes = [32, 1], strides = [1, 1]} : vector<32x16xf32> to vector<32x1xf32>
    %86 = vector.broadcast %85 : vector<32x1xf32> to vector<32x256xf32>
    %87 = arith.mulf %86, %32 : vector<32x256xf32>
    %88 = vector.extract_strided_slice %50 {offsets = [0, 5], sizes = [32, 1], strides = [1, 1]} : vector<32x16xf32> to vector<32x1xf32>
    %89 = vector.broadcast %88 : vector<32x1xf32> to vector<32x256xf32>
    %90 = arith.mulf %89, %35 : vector<32x256xf32>
    %91 = arith.addf %87, %90 : vector<32x256xf32>
    %92 = vector.extract_strided_slice %50 {offsets = [0, 6], sizes = [32, 1], strides = [1, 1]} : vector<32x16xf32> to vector<32x1xf32>
    %93 = vector.broadcast %92 : vector<32x1xf32> to vector<32x256xf32>
    %94 = arith.mulf %93, %39 : vector<32x256xf32>
    %95 = arith.addf %91, %94 : vector<32x256xf32>
    %96 = vector.extract_strided_slice %50 {offsets = [0, 7], sizes = [32, 1], strides = [1, 1]} : vector<32x16xf32> to vector<32x1xf32>
    %97 = vector.broadcast %96 : vector<32x1xf32> to vector<32x256xf32>
    %98 = arith.mulf %97, %42 : vector<32x256xf32>
    %99 = arith.addf %95, %98 : vector<32x256xf32>
    %100 = vector.broadcast %5 : vector<32x1xf32> to vector<32x256xf32>
    %101 = arith.addf %99, %100 : vector<32x256xf32>
    %cst_33 = arith.constant 0.000000e+00 : f32
    %102 = vector.broadcast %cst_33 : f32 to vector<32x256xf32>
    %103 = arith.cmpf oge, %101, %102 : vector<32x256xf32>
    %cst_34 = arith.constant 0.00999999977 : f32
    %104 = vector.broadcast %cst_34 : f32 to vector<32x256xf32>
    %105 = arith.mulf %104, %101 : vector<32x256xf32>
    %106 = arith.select %103, %101, %105 : vector<32x256xi1>, vector<32x256xf32>
    %cst_35 = arith.constant dense<0.000000e+00> : vector<64x256xf32>
    %107 = tpu.matmul %51, %106, %cst_35 {dimension_numbers = #tpu.dot_dimension_numbers<[1], [0], [0], [1], [0, 0, 1, 1], [], []>} : vector<64x32xf32>, vector<32x256xf32>, vector<64x256xf32> -> vector<64x256xf32>
    %108 = vector.broadcast %6 : vector<64x1xf32> to vector<64x256xf32>
    %109 = arith.addf %107, %108 : vector<64x256xf32>
    %110 = arith.negf %109 : vector<64x256xf32>
    %111 = math.exp %110 : vector<64x256xf32>
    %cst_36 = arith.constant 1.000000e+00 : f32
    %112 = vector.broadcast %cst_36 : f32 to vector<64x256xf32>
    %113 = arith.addf %112, %111 : vector<64x256xf32>
    %114 = arith.divf %112, %113 : vector<64x256xf32>
    %c0_37 = arith.constant 0 : index
    %c0_38 = arith.constant 0 : index
    %c1_39 = arith.constant 1 : index
    %c0_40 = arith.constant 0 : index
    %c0_41 = arith.constant 0 : index
    %115 = vector.load %arg8[%c0_37, %c0_38, %c1_39, %c0_40, %c0_41] : memref<1x2x2x64x256xf32, #tpu.memory_space<vmem>>, vector<1x1x1x64x256xf32>
    %116 = vector.shape_cast %115 : vector<1x1x1x64x256xf32> to vector<64x256xf32>
    %117 = vector.shape_cast %114 : vector<64x256xf32> to vector<1x1x1x64x256xf32>
    tpu.vector_store %arg8[%c0_37, %c0_38, %c1_39, %c0_40, %c0_41], %117 {strides = array<i32>} : memref<1x2x2x64x256xf32, #tpu.memory_space<vmem>>, vector<1x1x1x64x256xf32>,
    %118 = vector.extract_strided_slice %50 {offsets = [0, 8], sizes = [32, 1], strides = [1, 1]} : vector<32x16xf32> to vector<32x1xf32>
    %119 = vector.broadcast %118 : vector<32x1xf32> to vector<32x256xf32>
    %120 = arith.mulf %119, %38 : vector<32x256xf32>
    %121 = vector.extract_strided_slice %50 {offsets = [0, 9], sizes = [32, 1], strides = [1, 1]} : vector<32x16xf32> to vector<32x1xf32>
    %122 = vector.broadcast %121 : vector<32x1xf32> to vector<32x256xf32>
    %123 = arith.mulf %122, %39 : vector<32x256xf32>
    %124 = arith.addf %120, %123 : vector<32x256xf32>
    %125 = vector.extract_strided_slice %50 {offsets = [0, 10], sizes = [32, 1], strides = [1, 1]} : vector<32x16xf32> to vector<32x1xf32>
    %126 = vector.broadcast %125 : vector<32x1xf32> to vector<32x256xf32>
    %127 = arith.mulf %126, %45 : vector<32x256xf32>
    %128 = arith.addf %124, %127 : vector<32x256xf32>
    %129 = vector.extract_strided_slice %50 {offsets = [0, 11], sizes = [32, 1], strides = [1, 1]} : vector<32x16xf32> to vector<32x1xf32>
    %130 = vector.broadcast %129 : vector<32x1xf32> to vector<32x256xf32>
    %131 = arith.mulf %130, %46 : vector<32x256xf32>
    %132 = arith.addf %128, %131 : vector<32x256xf32>
    %133 = vector.broadcast %5 : vector<32x1xf32> to vector<32x256xf32>
    %134 = arith.addf %132, %133 : vector<32x256xf32>
    %cst_42 = arith.constant 0.000000e+00 : f32
    %135 = vector.broadcast %cst_42 : f32 to vector<32x256xf32>
    %136 = arith.cmpf oge, %134, %135 : vector<32x256xf32>
    %cst_43 = arith.constant 0.00999999977 : f32
    %137 = vector.broadcast %cst_43 : f32 to vector<32x256xf32>
    %138 = arith.mulf %137, %134 : vector<32x256xf32>
    %139 = arith.select %136, %134, %138 : vector<32x256xi1>, vector<32x256xf32>
    %cst_44 = arith.constant dense<0.000000e+00> : vector<64x256xf32>
    %140 = tpu.matmul %51, %139, %cst_44 {dimension_numbers = #tpu.dot_dimension_numbers<[1], [0], [0], [1], [0, 0, 1, 1], [], []>} : vector<64x32xf32>, vector<32x256xf32>, vector<64x256xf32> -> vector<64x256xf32>
    %141 = vector.broadcast %6 : vector<64x1xf32> to vector<64x256xf32>
    %142 = arith.addf %140, %141 : vector<64x256xf32>
    %143 = arith.negf %142 : vector<64x256xf32>
    %144 = math.exp %143 : vector<64x256xf32>
    %cst_45 = arith.constant 1.000000e+00 : f32
    %145 = vector.broadcast %cst_45 : f32 to vector<64x256xf32>
    %146 = arith.addf %145, %144 : vector<64x256xf32>
    %147 = arith.divf %145, %146 : vector<64x256xf32>
    %c0_46 = arith.constant 0 : index
    %c1_47 = arith.constant 1 : index
    %c0_48 = arith.constant 0 : index
    %c0_49 = arith.constant 0 : index
    %c0_50 = arith.constant 0 : index
    %148 = vector.load %arg8[%c0_46, %c1_47, %c0_48, %c0_49, %c0_50] : memref<1x2x2x64x256xf32, #tpu.memory_space<vmem>>, vector<1x1x1x64x256xf32>
    %149 = vector.shape_cast %148 : vector<1x1x1x64x256xf32> to vector<64x256xf32>
    %150 = vector.shape_cast %147 : vector<64x256xf32> to vector<1x1x1x64x256xf32>
    tpu.vector_store %arg8[%c0_46, %c1_47, %c0_48, %c0_49, %c0_50], %150 {strides = array<i32>} : memref<1x2x2x64x256xf32, #tpu.memory_space<vmem>>, vector<1x1x1x64x256xf32>,
    %151 = vector.extract_strided_slice %50 {offsets = [0, 12], sizes = [32, 1], strides = [1, 1]} : vector<32x16xf32> to vector<32x1xf32>
    %152 = vector.broadcast %151 : vector<32x1xf32> to vector<32x256xf32>
    %153 = arith.mulf %152, %39 : vector<32x256xf32>
    %154 = vector.extract_strided_slice %50 {offsets = [0, 13], sizes = [32, 1], strides = [1, 1]} : vector<32x16xf32> to vector<32x1xf32>
    %155 = vector.broadcast %154 : vector<32x1xf32> to vector<32x256xf32>
    %156 = arith.mulf %155, %42 : vector<32x256xf32>
    %157 = arith.addf %153, %156 : vector<32x256xf32>
    %158 = vector.extract_strided_slice %50 {offsets = [0, 14], sizes = [32, 1], strides = [1, 1]} : vector<32x16xf32> to vector<32x1xf32>
    %159 = vector.broadcast %158 : vector<32x1xf32> to vector<32x256xf32>
    %160 = arith.mulf %159, %46 : vector<32x256xf32>
    %161 = arith.addf %157, %160 : vector<32x256xf32>
    %162 = vector.extract_strided_slice %50 {offsets = [0, 15], sizes = [32, 1], strides = [1, 1]} : vector<32x16xf32> to vector<32x1xf32>
    %163 = vector.broadcast %162 : vector<32x1xf32> to vector<32x256xf32>
    %164 = arith.mulf %163, %49 : vector<32x256xf32>
    %165 = arith.addf %161, %164 : vector<32x256xf32>
    %166 = vector.broadcast %5 : vector<32x1xf32> to vector<32x256xf32>
    %167 = arith.addf %165, %166 : vector<32x256xf32>
    %cst_51 = arith.constant 0.000000e+00 : f32
    %168 = vector.broadcast %cst_51 : f32 to vector<32x256xf32>
    %169 = arith.cmpf oge, %167, %168 : vector<32x256xf32>
    %cst_52 = arith.constant 0.00999999977 : f32
    %170 = vector.broadcast %cst_52 : f32 to vector<32x256xf32>
    %171 = arith.mulf %170, %167 : vector<32x256xf32>
    %172 = arith.select %169, %167, %171 : vector<32x256xi1>, vector<32x256xf32>
    %cst_53 = arith.constant dense<0.000000e+00> : vector<64x256xf32>
    %173 = tpu.matmul %51, %172, %cst_53 {dimension_numbers = #tpu.dot_dimension_numbers<[1], [0], [0], [1], [0, 0, 1, 1], [], []>} : vector<64x32xf32>, vector<32x256xf32>, vector<64x256xf32> -> vector<64x256xf32>
    %174 = vector.broadcast %6 : vector<64x1xf32> to vector<64x256xf32>
    %175 = arith.addf %173, %174 : vector<64x256xf32>
    %176 = arith.negf %175 : vector<64x256xf32>
    %177 = math.exp %176 : vector<64x256xf32>
    %cst_54 = arith.constant 1.000000e+00 : f32
    %178 = vector.broadcast %cst_54 : f32 to vector<64x256xf32>
    %179 = arith.addf %178, %177 : vector<64x256xf32>
    %180 = arith.divf %178, %179 : vector<64x256xf32>
    %c0_55 = arith.constant 0 : index
    %c1_56 = arith.constant 1 : index
    %c1_57 = arith.constant 1 : index
    %c0_58 = arith.constant 0 : index
    %c0_59 = arith.constant 0 : index
    %181 = vector.load %arg8[%c0_55, %c1_56, %c1_57, %c0_58, %c0_59] : memref<1x2x2x64x256xf32, #tpu.memory_space<vmem>>, vector<1x1x1x64x256xf32>
    %182 = vector.shape_cast %181 : vector<1x1x1x64x256xf32> to vector<64x256xf32>
    %183 = vector.shape_cast %180 : vector<64x256xf32> to vector<1x1x1x64x256xf32>
    tpu.vector_store %arg8[%c0_55, %c1_56, %c1_57, %c0_58, %c0_59], %183 {strides = array<i32>} : memref<1x2x2x64x256xf32, #tpu.memory_space<vmem>>, vector<1x1x1x64x256xf32>,
    return
  }
  func.func @transform_0(%arg0: i32) -> (i32, i32, i32) {
    %c0_i32 = arith.constant 0 : i32
    %c0_i32_0 = arith.constant 0 : i32
    %c0_i32_1 = arith.constant 0 : i32
    return %arg0, %c0_i32, %c0_i32_0 : i32, i32, i32
  }
  func.func @transform_1(%arg0: i32) -> (i32, i32) {
    %c0_i32 = arith.constant 0 : i32
    %c0_i32_0 = arith.constant 0 : i32
    %c0_i32_1 = arith.constant 0 : i32
    return %c0_i32, %c0_i32_0 : i32, i32
  }
  func.func @transform_2(%arg0: i32) -> (i32, i32) {
    %c0_i32 = arith.constant 0 : i32
    %c0_i32_0 = arith.constant 0 : i32
    %c0_i32_1 = arith.constant 0 : i32
    return %c0_i32, %c0_i32_0 : i32, i32
  }
  func.func @transform_3(%arg0: i32) -> (i32, i32) {
    %c0_i32 = arith.constant 0 : i32
    %c0_i32_0 = arith.constant 0 : i32
    %c0_i32_1 = arith.constant 0 : i32
    return %c0_i32, %c0_i32_0 : i32, i32
  }
  func.func @transform_4(%arg0: i32) -> (i32, i32) {
    %c0_i32 = arith.constant 0 : i32
    %c0_i32_0 = arith.constant 0 : i32
    %c0_i32_1 = arith.constant 0 : i32
    return %c0_i32, %c0_i32_0 : i32, i32
  }
  func.func @transform_5(%arg0: i32) -> (i32, i32) {
    %c0_i32 = arith.constant 0 : i32
    %c0_i32_0 = arith.constant 0 : i32
    %c0_i32_1 = arith.constant 0 : i32
    return %c0_i32, %c0_i32_0 : i32, i32
  }
  func.func @transform_6(%arg0: i32) -> (i32, i32) {
    %c0_i32 = arith.constant 0 : i32
    %c0_i32_0 = arith.constant 0 : i32
    %c0_i32_1 = arith.constant 0 : i32
    return %c0_i32, %c0_i32_0 : i32, i32
  }
  func.func @transform_7(%arg0: i32) -> (i32, i32, i32, i32, i32) {
    %c0_i32 = arith.constant 0 : i32
    %c0_i32_0 = arith.constant 0 : i32
    %c0_i32_1 = arith.constant 0 : i32
    %c0_i32_2 = arith.constant 0 : i32
    %c0_i32_3 = arith.constant 0 : i32
    return %arg0, %c0_i32, %c0_i32_0, %c0_i32_1, %c0_i32_2 : i32, i32, i32, i32, i32
  }
}

</mosaic_0001>

<llo_original>
// kernel: tpu_custom_call.1
$region0: #{tpu_custom_call.1}
  #allocation0 [shape = 'u32[]', space=smem, size = 0x4, offset = 0x4, fixed_abs, tag = 'smem constant byte address 0x4 - core index']
  #allocation1 [shape = 'u32[144,128]{1,0:T(1,128)}', space=vmem, size = 0x12000, scoped, tag = 'internal scratch']
  %s0 = inlined_call_operand.vmem [shape: f32[2,32,256], index: 0, kind: input, shape index: {}]
  %s1 = inlined_call_operand.vmem [shape: f32[32,32], index: 1, kind: input, shape index: {}]
  %s2 = inlined_call_operand.vmem [shape: f32[32,16], index: 2, kind: input, shape index: {}]
  %s3 = inlined_call_operand.vmem [shape: f32[64,32], index: 3, kind: input, shape index: {}]
  %s4 = inlined_call_operand.vmem [shape: f32[32,4], index: 4, kind: input, shape index: {}]
  %s5 = inlined_call_operand.vmem [shape: f32[64,1], index: 5, kind: input, shape index: {}]
  %s6 = inlined_call_operand.vmem [shape: f32[2,256], index: 6, kind: input, shape index: {}]
  %s7 = inlined_call_operand.hbm [shape: f32[2,2,2,64,256], index: 7, kind: output, shape index: {}]
  %s8 = sld [smem:[#allocation0]]
  $region61: #{tpu_custom_call.1} parent=0
    _
  %s10 = ssub.s32 1, %s8
  %s11 = scalar_select 0, %s10, %s8
  $region1: #{tpu_custom_call.1} parent=0
    #allocation2 [shape = 'u8[524288]{0}', space=vmem, size = 0x80000, scoped, tag = 'output window, operand 0']
    #allocation3 [shape = 's32[2]{0}', space=sflag, size = 0x8, scoped, tag = 'scoped memory for tpu_custom_call.1']
    %12 = vsyncpa [#allocation3], 0
    %s13 = scalar_lea.sflag [#allocation3], 1
    %14 = vsyncpa %s13, 0
    loop: start=0, step=1, limit=4
    $region2: #{tpu_custom_call.1} parent=1 // loop_pre_header
      _
    $region3: #{tpu_custom_call.1} parent=1 // loop_header
      %s16 = sphi 0, %s20
      %p17 = scmp.ge.s32.totalorder %s16, 4
      %s26 = sphi 0, %s28
      %s29 = sphi 0, %s26
      %s30 = sphi 0, %s29
      %s46 = sphi 0, %s30
      %s50 = sphi 0, %s50
      %s52 = sphi 0, %s50
      %s53 = sphi 0, %s52
      %s67 = sphi 0, %s53
      %s71 = sphi 0, %s71
      %s73 = sphi 0, %s71
      %s74 = sphi 0, %s73
      %s88 = sphi 0, %s74
      %s92 = sphi 0, %s92
      %s94 = sphi 0, %s92
      %s95 = sphi 0, %s94
      %s109 = sphi 0, %s95
      %s113 = sphi 0, %s113
      %s115 = sphi 0, %s113
      %s116 = sphi 0, %s115
      %s130 = sphi 0, %s116
      %s134 = sphi 0, %s134
      %s136 = sphi 0, %s134
      %s137 = sphi 0, %s136
      %s151 = sphi 0, %s137
      %s155 = sphi 0, %s155
      %s157 = sphi 0, %s155
      %s158 = sphi 0, %s157
      %s172 = sphi 0, %s158
      %s178 = sphi 0, %s180
      %s181 = sphi 0, %s178
      %s182 = sphi 0, %s181
      %s198 = sphi 0, %s182
    $region4: #{tpu_custom_call.1} parent=1 // loop_header_branch
      %19 = sbr.rel (%p17) target = $region8
    $region5: #{tpu_custom_call.1} parent=1 // loop_body
      %s21 = ssub.s32 %s16, 1
      %s22 = ssub.s32 %s16, 2
      %s23 = sadd.s32 %s16, 1
      %s24 = ssub.s32 %s16, %s23
      %p25 = scmp.eq.s32.totalorder %s24, 0
      %s27 = sadd.s32 %s26, 1
      %s28 = scalar_select %p25, %s26, %s27
      %p31 = pneg %p25
      %p32 = scmp.eq.s32.totalorder %s16, 1
      %p33 = por %p31, %p32
      %p34 = scmp.ne.s32.totalorder %s26, %s29
      %p35 = scmp.eq.s32.totalorder %s16, 0
      %p36 = por %p34, %p35
      %p37 = scmp.ne.s32.totalorder %s26, %s29
      %p38 = scmp.eq.s32.totalorder %s21, 1
      %p39 = por %p37, %p38
      %p40 = scmp.ne.s32.totalorder %s29, %s30
      %p41 = scmp.eq.s32.totalorder %s21, 0
      %p42 = por %p40, %p41
      %p43 = scmp.ne.s32.totalorder %s29, %s30
      %p44 = scmp.eq.s32.totalorder %s22, 1
      %p45 = por %p43, %p44
      %p47 = scmp.ne.s32.totalorder %s30, %s46
      %p48 = scmp.eq.s32.totalorder %s22, 0
      %p49 = por %p47, %p48
      %s51 = sadd.s32 %s50, 1
      %p54 = scmp.eq.s32.totalorder %s16, 1
      %p55 = scmp.ne.s32.totalorder %s50, %s52
      %p56 = scmp.eq.s32.totalorder %s16, 0
      %p57 = por %p55, %p56
      %p58 = scmp.ne.s32.totalorder %s50, %s52
      %p59 = scmp.eq.s32.totalorder %s21, 1
      %p60 = por %p58, %p59
      %p61 = scmp.ne.s32.totalorder %s52, %s53
      %p62 = scmp.eq.s32.totalorder %s21, 0
      %p63 = por %p61, %p62
      %p64 = scmp.ne.s32.totalorder %s52, %s53
      %p65 = scmp.eq.s32.totalorder %s22, 1
      %p66 = por %p64, %p65
      %p68 = scmp.ne.s32.totalorder %s53, %s67
      %p69 = scmp.eq.s32.totalorder %s22, 0
      %p70 = por %p68, %p69
      %s72 = sadd.s32 %s71, 1
      %p75 = scmp.eq.s32.totalorder %s16, 1
      %p76 = scmp.ne.s32.totalorder %s71, %s73
      %p77 = scmp.eq.s32.totalorder %s16, 0
      %p78 = por %p76, %p77
      %p79 = scmp.ne.s32.totalorder %s71, %s73
      %p80 = scmp.eq.s32.totalorder %s21, 1
      %p81 = por %p79, %p80
      %p82 = scmp.ne.s32.totalorder %s73, %s74
      %p83 = scmp.eq.s32.totalorder %s21, 0
      %p84 = por %p82, %p83
      %p85 = scmp.ne.s32.totalorder %s73, %s74
      %p86 = scmp.eq.s32.totalorder %s22, 1
      %p87 = por %p85, %p86
      %p89 = scmp.ne.s32.totalorder %s74, %s88
      %p90 = scmp.eq.s32.totalorder %s22, 0
      %p91 = por %p89, %p90
      %s93 = sadd.s32 %s92, 1
      %p96 = scmp.eq.s32.totalorder %s16, 1
      %p97 = scmp.ne.s32.totalorder %s92, %s94
      %p98 = scmp.eq.s32.totalorder %s16, 0
      %p99 = por %p97, %p98
      %p100 = scmp.ne.s32.totalorder %s92, %s94
      %p101 = scmp.eq.s32.totalorder %s21, 1
      %p102 = por %p100, %p101
      %p103 = scmp.ne.s32.totalorder %s94, %s95
      %p104 = scmp.eq.s32.totalorder %s21, 0
      %p105 = por %p103, %p104
      %p106 = scmp.ne.s32.totalorder %s94, %s95
      %p107 = scmp.eq.s32.totalorder %s22, 1
      %p108 = por %p106, %p107
      %p110 = scmp.ne.s32.totalorder %s95, %s109
      %p111 = scmp.eq.s32.totalorder %s22, 0
      %p112 = por %p110, %p111
      %s114 = sadd.s32 %s113, 1
      %p117 = scmp.eq.s32.totalorder %s16, 1
      %p118 = scmp.ne.s32.totalorder %s113, %s115
      %p119 = scmp.eq.s32.totalorder %s16, 0
      %p120 = por %p118, %p119
      %p121 = scmp.ne.s32.totalorder %s113, %s115
      %p122 = scmp.eq.s32.totalorder %s21, 1
      %p123 = por %p121, %p122
      %p124 = scmp.ne.s32.totalorder %s115, %s116
      %p125 = scmp.eq.s32.totalorder %s21, 0
      %p126 = por %p124, %p125
      %p127 = scmp.ne.s32.totalorder %s115, %s116
      %p128 = scmp.eq.s32.totalorder %s22, 1
      %p129 = por %p127, %p128
      %p131 = scmp.ne.s32.totalorder %s116, %s130
      %p132 = scmp.eq.s32.totalorder %s22, 0
      %p133 = por %p131, %p132
      %s135 = sadd.s32 %s134, 1
      %p138 = scmp.eq.s32.totalorder %s16, 1
      %p139 = scmp.ne.s32.totalorder %s134, %s136
      %p140 = scmp.eq.s32.totalorder %s16, 0
      %p141 = por %p139, %p140
      %p142 = scmp.ne.s32.totalorder %s134, %s136
      %p143 = scmp.eq.s32.totalorder %s21, 1
      %p144 = por %p142, %p143
      %p145 = scmp.ne.s32.totalorder %s136, %s137
      %p146 = scmp.eq.s32.totalorder %s21, 0
      %p147 = por %p145, %p146
      %p148 = scmp.ne.s32.totalorder %s136, %s137
      %p149 = scmp.eq.s32.totalorder %s22, 1
      %p150 = por %p148, %p149
      %p152 = scmp.ne.s32.totalorder %s137, %s151
      %p153 = scmp.eq.s32.totalorder %s22, 0
      %p154 = por %p152, %p153
      %s156 = sadd.s32 %s155, 1
      %p159 = scmp.eq.s32.totalorder %s16, 1
      %p160 = scmp.ne.s32.totalorder %s155, %s157
      %p161 = scmp.eq.s32.totalorder %s16, 0
      %p162 = por %p160, %p161
      %p163 = scmp.ne.s32.totalorder %s155, %s157
      %p164 = scmp.eq.s32.totalorder %s21, 1
      %p165 = por %p163, %p164
      %p166 = scmp.ne.s32.totalorder %s157, %s158
      %p167 = scmp.eq.s32.totalorder %s21, 0
      %p168 = por %p166, %p167
      %p169 = scmp.ne.s32.totalorder %s157, %s158
      %p170 = scmp.eq.s32.totalorder %s22, 1
      %p171 = por %p169, %p170
      %p173 = scmp.ne.s32.totalorder %s158, %s172
      %p174 = scmp.eq.s32.totalorder %s22, 0
      %p175 = por %p173, %p174
      %s176 = ssub.s32 %s16, %s23
      %p177 = scmp.eq.s32.totalorder %s176, 0
      %s179 = sadd.s32 %s178, 1
      %s180 = scalar_select %p177, %s178, %s179
      %p183 = pneg %p177
      %p184 = scmp.eq.s32.totalorder %s16, 1
      %p185 = por %p183, %p184
      %p186 = scmp.ne.s32.totalorder %s178, %s181
      %p187 = scmp.eq.s32.totalorder %s16, 0
      %p188 = por %p186, %p187
      %p189 = scmp.ne.s32.totalorder %s178, %s181
      %p190 = scmp.eq.s32.totalorder %s21, 1
      %p191 = por %p189, %p190
      %p192 = scmp.ne.s32.totalorder %s181, %s182
      %p193 = scmp.eq.s32.totalorder %s21, 0
      %p194 = por %p192, %p193
      %p195 = scmp.ne.s32.totalorder %s181, %s182
      %p196 = scmp.eq.s32.totalorder %s22, 1
      %p197 = por %p195, %p196
      %p199 = scmp.ne.s32.totalorder %s182, %s198
      %p200 = scmp.eq.s32.totalorder %s22, 0
      %p201 = por %p199, %p200
      %p202 = scmp.le.s32.totalorder 1, %s16
      %p203 = scmp.lt.s32.totalorder %s16, 3
      %p204 = pnand %p202, %p203
      %p205 = pneg %p204
      // Predicated region
      $region9: #{tpu_custom_call.1} parent=5 // pred_check
        _
      $region10: #{tpu_custom_call.1} parent=5 // pred_check_branch
        %207 = sbr.rel (%p204) target = $region12
      $region11: #{tpu_custom_call.1} parent=5 // pred_region
        %s208 = ssub.s32 %s16, 1
        // Predicated region
        $region13: #{tpu_custom_call.1} parent=11 // pred_check
          %p209 = pneg %p63
        $region14: #{tpu_custom_call.1} parent=11 // pred_check_branch
          %211 = sbr.rel (%p209) target = $region16
        $region15: #{tpu_custom_call.1} parent=11 // pred_region
          _
        $region16: #{tpu_custom_call.1} parent=11 // pred_fallthru
          _
        // Predicated region
        $region17: #{tpu_custom_call.1} parent=11 // pred_check
          %p212 = pneg %p84
        $region18: #{tpu_custom_call.1} parent=11 // pred_check_branch
          %214 = sbr.rel (%p212) target = $region20
        $region19: #{tpu_custom_call.1} parent=11 // pred_region
          _
        $region20: #{tpu_custom_call.1} parent=11 // pred_fallthru
          _
        // Predicated region
        $region21: #{tpu_custom_call.1} parent=11 // pred_check
          %p215 = pneg %p105
        $region22: #{tpu_custom_call.1} parent=11 // pred_check_branch
          %217 = sbr.rel (%p215) target = $region24
        $region23: #{tpu_custom_call.1} parent=11 // pred_region
          _
        $region24: #{tpu_custom_call.1} parent=11 // pred_fallthru
          _
        // Predicated region
        $region25: #{tpu_custom_call.1} parent=11 // pred_check
          %p218 = pneg %p126
        $region26: #{tpu_custom_call.1} parent=11 // pred_check_branch
          %220 = sbr.rel (%p218) target = $region28
        $region27: #{tpu_custom_call.1} parent=11 // pred_region
          _
        $region28: #{tpu_custom_call.1} parent=11 // pred_fallthru
          _
        // Predicated region
        $region29: #{tpu_custom_call.1} parent=11 // pred_check
          %p221 = pneg %p147
        $region30: #{tpu_custom_call.1} parent=11 // pred_check_branch
          %223 = sbr.rel (%p221) target = $region32
        $region31: #{tpu_custom_call.1} parent=11 // pred_region
          _
        $region32: #{tpu_custom_call.1} parent=11 // pred_fallthru
          _
        // Predicated region
        $region33: #{tpu_custom_call.1} parent=11 // pred_check
          %p224 = pneg %p168
        $region34: #{tpu_custom_call.1} parent=11 // pred_check_branch
          %226 = sbr.rel (%p224) target = $region36
        $region35: #{tpu_custom_call.1} parent=11 // pred_region
          _
        $region36: #{tpu_custom_call.1} parent=11 // pred_fallthru
          _
      $region12: #{tpu_custom_call.1} parent=5 // pred_fallthru
        _
      %p227 = scmp.lt.s32.totalorder %s16, 2
      // Predicated region
      $region37: #{tpu_custom_call.1} parent=5 // pred_check
        %p228 = pneg %p227
      $region38: #{tpu_custom_call.1} parent=5 // pred_check_branch
        %230 = sbr.rel (%p228) target = $region40
      $region39: #{tpu_custom_call.1} parent=5 // pred_region
        // Predicated region
        $region41: #{tpu_custom_call.1} parent=39 // pred_check
          %p231 = pneg %p36
        $region42: #{tpu_custom_call.1} parent=39 // pred_check_branch
          %233 = sbr.rel (%p231) target = $region44
        $region43: #{tpu_custom_call.1} parent=39 // pred_region
          %p234 = scmp.lt.s32.totalorder %s16, 1
          %s235 = scalar_select %p234, %s16, 1
          %s236 = smul.addr %s235, 8
          %s237 = smul.addr %s236, 8
          %s238 = scalar_lea.vmem %s0, %s237
        $region44: #{tpu_custom_call.1} parent=39 // pred_fallthru
          _
      $region40: #{tpu_custom_call.1} parent=5 // pred_fallthru
        _
      %p239 = scmp.le.s32.totalorder 1, %s16
      %p240 = scmp.lt.s32.totalorder %s16, 3
      %p241 = pnand %p239, %p240
      %p242 = pneg %p241
      // Predicated region
      $region45: #{tpu_custom_call.1} parent=5 // pred_check
        _
      $region46: #{tpu_custom_call.1} parent=5 // pred_check_branch
        %244 = sbr.rel (%p241) target = $region48
      $region47: #{tpu_custom_call.1} parent=5 // pred_region
        %s245 = ssub.s32 %s16, 1
        %p246 = scmp.lt.s32.totalorder %s21, 1
        %s247 = scalar_select %p246, %s21, 1
        %s248 = smul.addr %s247, 8
        %s249 = smul.addr %s248, 8
        %s250 = scalar_lea.vmem %s0, %s249
        %p251 = pneg %p42
        %p252 = pneg %p39
        %p253 = pneg %p63
        %p254 = pneg %p60
        %p255 = pneg %p84
        %p256 = pneg %p81
        %p257 = pneg %p105
        %p258 = pneg %p102
        %p259 = pneg %p126
        %p260 = pneg %p123
        %p261 = pneg %p147
        %p262 = pneg %p144
        %p263 = pneg %p168
        %p264 = pneg %p165
        %p265 = pneg %p194
        %p266 = pneg %p191
        %s267 = sand.u32 %s181, 1
        %s268 = scalar_lea.sflag [#allocation3], %s267
        %s269 = sand.u32 %s181, 1
        %s270 = smul.addr %s269, 512
        %s271 = scalar_lea.vmem [#allocation2], %s270
        %p272 = scmp.lt.s32.totalorder %s21, 1
        %s273 = scalar_select %p272, %s21, 1
        %s274 = smul.addr %s273, 8
        %s275 = smul.addr %s274, 8
        %s276 = scalar_lea.vmem %s0, %s275
        %v277 = vld [vmem:[%s276] sm:$0xff]
        %v278 = vld [vmem:[%s276 + $0x8] sm:$0xff]
        %v279 = vld [vmem:[%s276 + $0x10] sm:$0xff]
        %v280 = vld [vmem:[%s276 + $0x18] sm:$0xff]
        %v281 = vld [vmem:[%s276 + $0x20] sm:$0xff]
        %v282 = vld [vmem:[%s276 + $0x28] sm:$0xff]
        %v283 = vld [vmem:[%s276 + $0x30] sm:$0xff]
        %v284 = vld [vmem:[%s276 + $0x38] sm:$0xff]
        %v285 = vld [vmem:[%s4] sm:$0xff]
        %v286 = vld [vmem:[%s4 + $0x8] sm:$0xff]
        %v287 = vld [vmem:[%s4 + $0x10] sm:$0xff]
        %v288 = vld [vmem:[%s4 + $0x18] sm:$0xff]
        %v289 = vld [vmem:[%s5] sm:$0xff]
        %v290 = vld [vmem:[%s5 + $0x8] sm:$0xff]
        %v291 = vld [vmem:[%s5 + $0x10] sm:$0xff]
        %v292 = vld [vmem:[%s5 + $0x18] sm:$0xff]
        %v293 = vld [vmem:[%s5 + $0x20] sm:$0xff]
        %v294 = vld [vmem:[%s5 + $0x28] sm:$0xff]
        %v295 = vld [vmem:[%s5 + $0x30] sm:$0xff]
        %v296 = vld [vmem:[%s5 + $0x38] sm:$0xff]
        %298 = vset.pattern.permute.xlu0 0
        %299 = vperm.xlu0 %298, %v285
        %v300 = vpop.permute.xlu0 %299
        %303 = vset.pattern.permute.xlu0 0
        %304 = vperm.xlu0 %303, %v286
        %v305 = vpop.permute.xlu0 %304
        %308 = vset.pattern.permute.xlu0 0
        %309 = vperm.xlu0 %308, %v287
        %v310 = vpop.permute.xlu0 %309
        %313 = vset.pattern.permute.xlu0 0
        %314 = vperm.xlu0 %313, %v288
        %v315 = vpop.permute.xlu0 %314
        %v317 = vmul.f32 %v277, %v300
        %v318 = vmul.f32 %v278, %v300
        %v319 = vmul.f32 %v279, %v305
        %v320 = vmul.f32 %v280, %v305
        %v321 = vmul.f32 %v281, %v310
        %v322 = vmul.f32 %v282, %v310
        %v323 = vmul.f32 %v283, %v315
        %v324 = vmul.f32 %v284, %v315
        %325 = vset.pattern.permute.xlu0 1
        %326 = vperm.xlu0 %325, %v285
        %v327 = vpop.permute.xlu0 %326
        %329 = vset.pattern.permute.xlu0 1
        %330 = vperm.xlu0 %329, %v286
        %v331 = vpop.permute.xlu0 %330
        %333 = vset.pattern.permute.xlu0 1
        %334 = vperm.xlu0 %333, %v287
        %v335 = vpop.permute.xlu0 %334
        %337 = vset.pattern.permute.xlu0 1
        %338 = vperm.xlu0 %337, %v288
        %v339 = vpop.permute.xlu0 %338
        %v341 = vadd.f32 %v317, %v327
        %v342 = vadd.f32 %v318, %v327
        %v343 = vadd.f32 %v319, %v331
        %v344 = vadd.f32 %v320, %v331
        %v345 = vadd.f32 %v321, %v335
        %v346 = vadd.f32 %v322, %v335
        %v347 = vadd.f32 %v323, %v339
        %v348 = vadd.f32 %v324, %v339
        %vm349 = vcmp.ge.f32.partialorder %v341, 0.0
        %vm350 = vcmp.ge.f32.partialorder %v342, 0.0
        %vm351 = vcmp.ge.f32.partialorder %v343, 0.0
        %vm352 = vcmp.ge.f32.partialorder %v344, 0.0
        %vm353 = vcmp.ge.f32.partialorder %v345, 0.0
        %vm354 = vcmp.ge.f32.partialorder %v346, 0.0
        %vm355 = vcmp.ge.f32.partialorder %v347, 0.0
        %vm356 = vcmp.ge.f32.partialorder %v348, 0.0
        %v357 = vmul.f32 %v341, 0.01
        %v358 = vmul.f32 %v342, 0.01
        %v359 = vmul.f32 %v343, 0.01
        %v360 = vmul.f32 %v344, 0.01
        %v361 = vmul.f32 %v345, 0.01
        %v362 = vmul.f32 %v346, 0.01
        %v363 = vmul.f32 %v347, 0.01
        %v364 = vmul.f32 %v348, 0.01
        %v365 = vsel %vm349, %v341, %v357
        %v366 = vsel %vm350, %v342, %v358
        %v367 = vsel %vm351, %v343, %v359
        %v368 = vsel %vm352, %v344, %v360
        %v369 = vsel %vm353, %v345, %v361
        %v370 = vsel %vm354, %v346, %v362
        %v371 = vsel %vm355, %v347, %v363
        %v372 = vsel %vm356, %v348, %v364
        %v373 = vld [vmem:[%s1] sm:$0xff]
        %v374 = vld [vmem:[%s1 + $0x8] sm:$0xff]
        %v375 = vld [vmem:[%s1 + $0x10] sm:$0xff]
        %v376 = vld [vmem:[%s1 + $0x18] sm:$0xff]
        %377 = vset.pattern.permute.xlu0 2
        %378 = vperm.xlu0 %377, %v285
        %v379 = vpop.permute.xlu0 %378
        %381 = vset.pattern.permute.xlu0 2
        %382 = vperm.xlu0 %381, %v286
        %v383 = vpop.permute.xlu0 %382
        %385 = vset.pattern.permute.xlu0 2
        %386 = vperm.xlu0 %385, %v287
        %v387 = vpop.permute.xlu0 %386
        %389 = vset.pattern.permute.xlu0 2
        %390 = vperm.xlu0 %389, %v288
        %v391 = vpop.permute.xlu0 %390
        %vm393 = vcmask 261120
        %v395 = vsel %vm393, %v373, 0
        %v398 = vsel %vm393, %v374, 0
        %v401 = vsel %vm393, %v375, 0
        %v404 = vsel %vm393, %v376, 0
        %406 = vmatprep.subr.mxu0 %v366
        %407 = vmatpush1.msra.mxu0 %v365
        %408 = vmatprep.subr.mxu0 %v368
        %409 = vmatpush1.msra.mxu0 %v367
        %410 = vmatprep.subr.mxu0 %v370
        %411 = vmatpush1.msra.mxu0 %v369
        %412 = vmatprep.subr.mxu0 %v372
        %413 = vmatpush1.msra.mxu0 %v371
        %414 = vmatprep.subr.mxu0 0.0
        %415 = vmatpush1.msra.mxu0 0.0
        %416 = vmatprep.subr.mxu0 0.0
        %417 = vmatpush1.msra.mxu0 0.0
        %418 = vmatprep.subr.mxu0 0.0
        %419 = vmatpush1.msra.mxu0 0.0
        %420 = vmatprep.subr.mxu0 0.0
        %421 = vmatpush1.msra.mxu0 0.0
        %422 = vmatprep.subr.mxu0 0.0
        %423 = vmatpush1.msra.mxu0 0.0
        %424 = vmatprep.subr.mxu0 0.0
        %425 = vmatpush1.msra.mxu0 0.0
        %426 = vmatprep.subr.mxu0 0.0
        %427 = vmatpush1.msra.mxu0 0.0
        %428 = vmatprep.subr.mxu0 0.0
        %429 = vmatpush1.msra.mxu0 0.0
        %430 = vmatprep.subr.mxu0 0.0
        %431 = vmatpush1.msra.mxu0 0.0
        %432 = vmatprep.subr.mxu0 0.0
        %433 = vmatpush1.msra.mxu0 0.0
        %434 = vmatprep.subr.mxu0 0.0
        %435 = vmatpush1.msra.mxu0 0.0
        %436 = vmatprep.subr.mxu0 0.0
        %437 = vmatpush1.msra.mxu0 0.0
        %438 = vmatprep.subr.mxu0 0.0
        %439 = vmatpush1.msra.mxu0 0.0
        %440 = vmatprep.subr.mxu0 0.0
        %441 = vmatpush1.msra.mxu0 0.0
        %442 = vmatprep.subr.mxu0 0.0
        %443 = vmatpush1.msra.mxu0 0.0
        %444 = vmatprep.subr.mxu0 0.0
        %445 = vmatpush1.msra.mxu0 0.0
        %446 = vmatprep.subr.mxu0 0.0
        %447 = vmatpush1.msra.mxu0 0.0
        %448 = vmatprep.subr.mxu0 0.0
        %449 = vmatpush1.msra.mxu0 0.0
        %450 = vmatprep.subr.mxu0 0.0
        %451 = vmatpush1.msra.mxu0 0.0
        %452 = vmatprep.subr.mxu0 0.0
        %453 = vmatpush1.msra.mxu0 0.0
        %454 = vmatprep.subr.mxu0 0.0
        %455 = vmatpush1.msra.mxu0 0.0
        %456 = vmatprep.subr.mxu0 0.0
        %457 = vmatpush1.msra.mxu0 0.0
        %458 = vmatprep.subr.mxu0 0.0
        %459 = vmatpush1.msra.mxu0 0.0
        %460 = vmatprep.subr.mxu0 0.0
        %461 = vmatpush1.msra.mxu0 0.0
        %462 = vmatprep.subr.mxu0 0.0
        %463 = vmatpush1.msra.mxu0 0.0
        %464 = vmatprep.subr.mxu0 0.0
        %465 = vmatpush1.msra.mxu0 0.0
        %466 = vmatprep.subr.mxu0 0.0
        %467 = vmatpush1.msra.mxu0 0.0
        %468 = vmatprep.subr.mxu0 0.0
        %469 = vmatpush1.msra.mxu0 0.0
        %470 = vmatprep.mubr.f32.mxu0 0.0
        %471 = vmatmul.mubr.f32.gmra.mrb[0].mxu0 %v395
        %v472 = vpop.f32.mrb[0].mxu0
        %v473 = vadd.f32 %v379, %v472
        %v474 = vpop.f32.mrb[0].mxu0
        %v475 = vadd.f32 %v379, %v474
        %476 = vmatprep.mubr.f32.mxu0 0.0
        %477 = vmatmul.mubr.f32.gmra.mrb[0].mxu0 %v398
        %v478 = vpop.f32.mrb[0].mxu0
        %v479 = vadd.f32 %v383, %v478
        %v480 = vpop.f32.mrb[0].mxu0
        %v481 = vadd.f32 %v383, %v480
        %482 = vmatprep.mubr.f32.mxu0 0.0
        %483 = vmatmul.mubr.f32.gmra.mrb[0].mxu0 %v401
        %v484 = vpop.f32.mrb[0].mxu0
        %v485 = vadd.f32 %v387, %v484
        %v486 = vpop.f32.mrb[0].mxu0
        %v487 = vadd.f32 %v387, %v486
        %488 = vmatprep.mubr.f32.mxu0 0.0
        %489 = vmatmul.mubr.f32.gmra.mrb[0].mxu0 %v404
        %v490 = vpop.f32.mrb[0].mxu0
        %v491 = vadd.f32 %v391, %v490
        %v492 = vpop.f32.mrb[0].mxu0
        %v493 = vadd.f32 %v391, %v492
        %494 = vdwg.mxu0
        %vm495 = vcmp.ge.f32.partialorder %v473, 0.0
        %vm496 = vcmp.ge.f32.partialorder %v475, 0.0
        %vm497 = vcmp.ge.f32.partialorder %v479, 0.0
        %vm498 = vcmp.ge.f32.partialorder %v481, 0.0
        %vm499 = vcmp.ge.f32.partialorder %v485, 0.0
        %vm500 = vcmp.ge.f32.partialorder %v487, 0.0
        %vm501 = vcmp.ge.f32.partialorder %v491, 0.0
        %vm502 = vcmp.ge.f32.partialorder %v493, 0.0
        %v503 = vmul.f32 %v473, 0.01
        %v504 = vmul.f32 %v475, 0.01
        %v505 = vmul.f32 %v479, 0.01
        %v506 = vmul.f32 %v481, 0.01
        %v507 = vmul.f32 %v485, 0.01
        %v508 = vmul.f32 %v487, 0.01
        %v509 = vmul.f32 %v491, 0.01
        %v510 = vmul.f32 %v493, 0.01
        %v511 = vsel %vm495, %v473, %v503
        %v512 = vsel %vm496, %v475, %v504
        %v513 = vsel %vm497, %v479, %v505
        %v514 = vsel %vm498, %v481, %v506
        %v515 = vsel %vm499, %v485, %v507
        %v516 = vsel %vm500, %v487, %v508
        %v517 = vsel %vm501, %v491, %v509
        %v518 = vsel %vm502, %v493, %v510
        %527 = vrot.lane.b32.xlu0 %v511, 17
        %v528 = vpop.permute.xlu0 %527
        %529 = vrot.lane.b32.xlu0 %v512, 17
        %v530 = vpop.permute.xlu0 %529
        %531 = vrot.lane.b32.xlu0 %v513, 17
        %v532 = vpop.permute.xlu0 %531
        %533 = vrot.lane.b32.xlu0 %v514, 17
        %v534 = vpop.permute.xlu0 %533
        %535 = vrot.lane.b32.xlu0 %v515, 17
        %v536 = vpop.permute.xlu0 %535
        %537 = vrot.lane.b32.xlu0 %v516, 17
        %v538 = vpop.permute.xlu0 %537
        %539 = vrot.lane.b32.xlu0 %v517, 17
        %v540 = vpop.permute.xlu0 %539
        %541 = vrot.lane.b32.xlu0 %v518, 17
        %v542 = vpop.permute.xlu0 %541
        %vm543 = vcmask 138240
        %v544 = vsel %vm543, %v528, %v530
        %v545 = vsel %vm543, %v532, %v534
        %v546 = vsel %vm543, %v536, %v538
        %v547 = vsel %vm543, %v540, %v542
        %v560 = vsel %vm543, 0.0, %v528
        %v561 = vsel %vm543, 0.0, %v532
        %v562 = vsel %vm543, 0.0, %v536
        %v563 = vsel %vm543, 0.0, %v540
        %v564 = vsel %vm543, %v530, 0.0
        %v565 = vsel %vm543, %v534, 0.0
        %v566 = vsel %vm543, %v538, 0.0
        %v567 = vsel %vm543, %v542, 0.0
        %v568 = vld [vmem:[%s6] ss:$2 sm:$0x3]
        %s569 = scalar_lea.vmem %s6, 1
        %v570 = vld [vmem:[%s569] ss:$2 sm:$0x3]
        %v572 = vlaneseq
        %v573 = vshrl.u32 %v572, 7
        %v574 = vsub.s32 0, %v573
        %v575 = vrot.slane %v568, %v574
        %v576 = vlaneseq
        %v577 = vshrl.u32 %v576, 7
        %v578 = vsub.s32 1, %v577
        %v579 = vrot.slane %v568, %v578
        %v582 = vmul.f32 %v560, %v575
        %v583 = vmul.f32 %v544, %v579
        %v584 = vmul.f32 %v561, %v575
        %v585 = vmul.f32 %v545, %v579
        %v586 = vmul.f32 %v562, %v575
        %v587 = vmul.f32 %v546, %v579
        %v588 = vmul.f32 %v563, %v575
        %v589 = vmul.f32 %v547, %v579
        %v591 = vlaneseq
        %v592 = vshrl.u32 %v591, 7
        %v593 = vsub.s32 0, %v592
        %v594 = vrot.slane %v570, %v593
        %v595 = vlaneseq
        %v596 = vshrl.u32 %v595, 7
        %v597 = vsub.s32 1, %v596
        %v598 = vrot.slane %v570, %v597
        %599 = vrot.lane.b32.xlu0 %v594, 2
        %v600 = vpop.permute.xlu0 %599
        %601 = vrot.lane.b32.xlu0 %v598, 2
        %v602 = vpop.permute.xlu0 %601
        %vm603 = vcmask 15360
        %v604 = vsel %vm603, %v600, %v602
        %v608 = vmul.f32 %v560, %v600
        %v609 = vmul.f32 %v544, %v604
        %v610 = vmul.f32 %v564, %v602
        %v611 = vmul.f32 %v561, %v600
        %v612 = vmul.f32 %v545, %v604
        %v613 = vmul.f32 %v565, %v602
        %v614 = vmul.f32 %v562, %v600
        %v615 = vmul.f32 %v546, %v604
        %v616 = vmul.f32 %v566, %v602
        %v617 = vmul.f32 %v563, %v600
        %v618 = vmul.f32 %v547, %v604
        %v619 = vmul.f32 %v567, %v602
        %620 = vrot.lane.b32.xlu0 %v575, 16
        %v621 = vpop.permute.xlu0 %620
        %622 = vrot.lane.b32.xlu0 %v579, 16
        %v623 = vpop.permute.xlu0 %622
        %vm624 = vcmask 130048
        %v625 = vsel %vm624, %v621, %v623
        %v629 = vmul.f32 %v560, %v621
        %v630 = vmul.f32 %v544, %v625
        %v631 = vmul.f32 %v564, %v623
        %v632 = vmul.f32 %v561, %v621
        %v633 = vmul.f32 %v545, %v625
        %v634 = vmul.f32 %v565, %v623
        %v635 = vmul.f32 %v562, %v621
        %v636 = vmul.f32 %v546, %v625
        %v637 = vmul.f32 %v566, %v623
        %v638 = vmul.f32 %v563, %v621
        %v639 = vmul.f32 %v547, %v625
        %v640 = vmul.f32 %v567, %v623
        %641 = vrot.lane.b32.xlu0 %v594, 18
        %v642 = vpop.permute.xlu0 %641
        %643 = vrot.lane.b32.xlu0 %v598, 18
        %v644 = vpop.permute.xlu0 %643
        %vm645 = vcmask 146432
        %v646 = vsel %vm645, %v642, %v644
        %v650 = vmul.f32 %v560, %v642
        %v651 = vmul.f32 %v544, %v646
        %v652 = vmul.f32 %v564, %v644
        %v653 = vmul.f32 %v561, %v642
        %v654 = vmul.f32 %v545, %v646
        %v655 = vmul.f32 %v565, %v644
        %v656 = vmul.f32 %v562, %v642
        %v657 = vmul.f32 %v546, %v646
        %v658 = vmul.f32 %v566, %v644
        %v659 = vmul.f32 %v563, %v642
        %v660 = vmul.f32 %v547, %v646
        %v661 = vmul.f32 %v567, %v644
        %662 = vrot.lane.b32.xlu0 %v575, 32
        %v663 = vpop.permute.xlu0 %662
        %664 = vrot.lane.b32.xlu0 %v579, 32
        %v665 = vpop.permute.xlu0 %664
        %v666 = vsel %vm393, %v663, %v665
        %v670 = vmul.f32 %v560, %v663
        %v671 = vmul.f32 %v544, %v666
        %v672 = vmul.f32 %v564, %v665
        %v673 = vmul.f32 %v561, %v663
        %v674 = vmul.f32 %v545, %v666
        %v675 = vmul.f32 %v565, %v665
        %v676 = vmul.f32 %v562, %v663
        %v677 = vmul.f32 %v546, %v666
        %v678 = vmul.f32 %v566, %v665
        %v679 = vmul.f32 %v563, %v663
        %v680 = vmul.f32 %v547, %v666
        %v681 = vmul.f32 %v567, %v665
        %682 = vrot.lane.b32.xlu0 %v594, 34
        %v683 = vpop.permute.xlu0 %682
        %684 = vrot.lane.b32.xlu0 %v598, 34
        %v685 = vpop.permute.xlu0 %684
        %vm686 = vcmask 277504
        %v687 = vsel %vm686, %v683, %v685
        %v691 = vmul.f32 %v560, %v683
        %v692 = vmul.f32 %v544, %v687
        %v693 = vmul.f32 %v564, %v685
        %v694 = vmul.f32 %v561, %v683
        %v695 = vmul.f32 %v545, %v687
        %v696 = vmul.f32 %v565, %v685
        %v697 = vmul.f32 %v562, %v683
        %v698 = vmul.f32 %v546, %v687
        %v699 = vmul.f32 %v566, %v685
        %v700 = vmul.f32 %v563, %v683
        %v701 = vmul.f32 %v547, %v687
        %v702 = vmul.f32 %v567, %v685
        %v703 = vld [vmem:[%s2] sm:$0xff]
        %v704 = vld [vmem:[%s2 + $0x8] sm:$0xff]
        %v705 = vld [vmem:[%s2 + $0x10] sm:$0xff]
        %v706 = vld [vmem:[%s2 + $0x18] sm:$0xff]
        %v707 = vld [vmem:[%s3] sm:$0xff]
        %v708 = vld [vmem:[%s3 + $0x8] sm:$0xff]
        %v709 = vld [vmem:[%s3 + $0x10] sm:$0xff]
        %v710 = vld [vmem:[%s3 + $0x18] sm:$0xff]
        %v711 = vld [vmem:[%s3 + $0x20] sm:$0xff]
        %v712 = vld [vmem:[%s3 + $0x28] sm:$0xff]
        %v713 = vld [vmem:[%s3 + $0x30] sm:$0xff]
        %v714 = vld [vmem:[%s3 + $0x38] sm:$0xff]
        %716 = vset.pattern.permute.xlu0 0
        %717 = vperm.xlu0 %716, %v703
        %v718 = vpop.permute.xlu0 %717
        %721 = vset.pattern.permute.xlu0 0
        %722 = vperm.xlu0 %721, %v704
        %v723 = vpop.permute.xlu0 %722
        %726 = vset.pattern.permute.xlu0 0
        %727 = vperm.xlu0 %726, %v705
        %v728 = vpop.permute.xlu0 %727
        %731 = vset.pattern.permute.xlu0 0
        %732 = vperm.xlu0 %731, %v706
        %v733 = vpop.permute.xlu0 %732
        %v735 = vmul.f32 %v718, %v582
        %v736 = vmul.f32 %v718, %v583
        %v737 = vmul.f32 %v723, %v584
        %v738 = vmul.f32 %v723, %v585
        %v739 = vmul.f32 %v728, %v586
        %v740 = vmul.f32 %v728, %v587
        %v741 = vmul.f32 %v733, %v588
        %v742 = vmul.f32 %v733, %v589
        %743 = vset.pattern.permute.xlu0 1
        %744 = vperm.xlu0 %743, %v703
        %v745 = vpop.permute.xlu0 %744
        %747 = vset.pattern.permute.xlu0 1
        %748 = vperm.xlu0 %747, %v704
        %v749 = vpop.permute.xlu0 %748
        %751 = vset.pattern.permute.xlu0 1
        %752 = vperm.xlu0 %751, %v705
        %v753 = vpop.permute.xlu0 %752
        %755 = vset.pattern.permute.xlu0 1
        %756 = vperm.xlu0 %755, %v706
        %v757 = vpop.permute.xlu0 %756
        %v759 = vmul.f32 %v745, %v560
        %v760 = vmul.f32 %v745, %v544
        %v761 = vmul.f32 %v745, %v564
        %v762 = vmul.f32 %v749, %v561
        %v763 = vmul.f32 %v749, %v545
        %v764 = vmul.f32 %v749, %v565
        %v765 = vmul.f32 %v753, %v562
        %v766 = vmul.f32 %v753, %v546
        %v767 = vmul.f32 %v753, %v566
        %v768 = vmul.f32 %v757, %v563
        %v769 = vmul.f32 %v757, %v547
        %v770 = vmul.f32 %v757, %v567
        %783 = vrot.lane.b32.xlu0 %v759, 127
        %v784 = vpop.permute.xlu0 %783
        %785 = vrot.lane.b32.xlu0 %v760, 127
        %v786 = vpop.permute.xlu0 %785
        %787 = vrot.lane.b32.xlu0 %v761, 127
        %v788 = vpop.permute.xlu0 %787
        %789 = vrot.lane.b32.xlu0 %v762, 127
        %v790 = vpop.permute.xlu0 %789
        %791 = vrot.lane.b32.xlu0 %v763, 127
        %v792 = vpop.permute.xlu0 %791
        %793 = vrot.lane.b32.xlu0 %v764, 127
        %v794 = vpop.permute.xlu0 %793
        %795 = vrot.lane.b32.xlu0 %v765, 127
        %v796 = vpop.permute.xlu0 %795
        %797 = vrot.lane.b32.xlu0 %v766, 127
        %v798 = vpop.permute.xlu0 %797
        %799 = vrot.lane.b32.xlu0 %v767, 127
        %v800 = vpop.permute.xlu0 %799
        %801 = vrot.lane.b32.xlu0 %v768, 127
        %v802 = vpop.permute.xlu0 %801
        %803 = vrot.lane.b32.xlu0 %v769, 127
        %v804 = vpop.permute.xlu0 %803
        %805 = vrot.lane.b32.xlu0 %v770, 127
        %v806 = vpop.permute.xlu0 %805
        %vm807 = vcmask 1039360
        %v808 = vsel %vm807, %v784, %v786
        %v809 = vsel %vm807, %v786, %v788
        %v810 = vsel %vm807, %v790, %v792
        %v811 = vsel %vm807, %v792, %v794
        %v812 = vsel %vm807, %v796, %v798
        %v813 = vsel %vm807, %v798, %v800
        %v814 = vsel %vm807, %v802, %v804
        %v815 = vsel %vm807, %v804, %v806
        %v824 = vadd.f32 %v735, %v808
        %v825 = vadd.f32 %v736, %v809
        %v826 = vadd.f32 %v737, %v810
        %v827 = vadd.f32 %v738, %v811
        %v828 = vadd.f32 %v739, %v812
        %v829 = vadd.f32 %v740, %v813
        %v830 = vadd.f32 %v741, %v814
        %v831 = vadd.f32 %v742, %v815
        %832 = vset.pattern.permute.xlu0 2
        %833 = vperm.xlu0 %832, %v703
        %v834 = vpop.permute.xlu0 %833
        %836 = vset.pattern.permute.xlu0 2
        %837 = vperm.xlu0 %836, %v704
        %v838 = vpop.permute.xlu0 %837
        %840 = vset.pattern.permute.xlu0 2
        %841 = vperm.xlu0 %840, %v705
        %v842 = vpop.permute.xlu0 %841
        %844 = vset.pattern.permute.xlu0 2
        %845 = vperm.xlu0 %844, %v706
        %v846 = vpop.permute.xlu0 %845
        %v848 = vmul.f32 %v834, %v629
        %v849 = vmul.f32 %v834, %v630
        %v850 = vmul.f32 %v834, %v631
        %v851 = vmul.f32 %v838, %v632
        %v852 = vmul.f32 %v838, %v633
        %v853 = vmul.f32 %v838, %v634
        %v854 = vmul.f32 %v842, %v635
        %v855 = vmul.f32 %v842, %v636
        %v856 = vmul.f32 %v842, %v637
        %v857 = vmul.f32 %v846, %v638
        %v858 = vmul.f32 %v846, %v639
        %v859 = vmul.f32 %v846, %v640
        %872 = vrot.lane.b32.xlu0 %v848, 112
        %v873 = vpop.permute.xlu0 %872
        %874 = vrot.lane.b32.xlu0 %v849, 112
        %v875 = vpop.permute.xlu0 %874
        %876 = vrot.lane.b32.xlu0 %v850, 112
        %v877 = vpop.permute.xlu0 %876
        %878 = vrot.lane.b32.xlu0 %v851, 112
        %v879 = vpop.permute.xlu0 %878
        %880 = vrot.lane.b32.xlu0 %v852, 112
        %v881 = vpop.permute.xlu0 %880
        %882 = vrot.lane.b32.xlu0 %v853, 112
        %v883 = vpop.permute.xlu0 %882
        %884 = vrot.lane.b32.xlu0 %v854, 112
        %v885 = vpop.permute.xlu0 %884
        %886 = vrot.lane.b32.xlu0 %v855, 112
        %v887 = vpop.permute.xlu0 %886
        %888 = vrot.lane.b32.xlu0 %v856, 112
        %v889 = vpop.permute.xlu0 %888
        %890 = vrot.lane.b32.xlu0 %v857, 112
        %v891 = vpop.permute.xlu0 %890
        %892 = vrot.lane.b32.xlu0 %v858, 112
        %v893 = vpop.permute.xlu0 %892
        %894 = vrot.lane.b32.xlu0 %v859, 112
        %v895 = vpop.permute.xlu0 %894
        %vm896 = vcmask 916480
        %v897 = vsel %vm896, %v873, %v875
        %v898 = vsel %vm896, %v875, %v877
        %v899 = vsel %vm896, %v879, %v881
        %v900 = vsel %vm896, %v881, %v883
        %v901 = vsel %vm896, %v885, %v887
        %v902 = vsel %vm896, %v887, %v889
        %v903 = vsel %vm896, %v891, %v893
        %v904 = vsel %vm896, %v893, %v895
        %v913 = vadd.f32 %v824, %v897
        %v914 = vadd.f32 %v825, %v898
        %v915 = vadd.f32 %v826, %v899
        %v916 = vadd.f32 %v827, %v900
        %v917 = vadd.f32 %v828, %v901
        %v918 = vadd.f32 %v829, %v902
        %v919 = vadd.f32 %v830, %v903
        %v920 = vadd.f32 %v831, %v904
        %921 = vset.pattern.permute.xlu0 3
        %922 = vperm.xlu0 %921, %v703
        %v923 = vpop.permute.xlu0 %922
        %925 = vset.pattern.permute.xlu0 3
        %926 = vperm.xlu0 %925, %v704
        %v927 = vpop.permute.xlu0 %926
        %929 = vset.pattern.permute.xlu0 3
        %930 = vperm.xlu0 %929, %v705
        %v931 = vpop.permute.xlu0 %930
        %933 = vset.pattern.permute.xlu0 3
        %934 = vperm.xlu0 %933, %v706
        %v935 = vpop.permute.xlu0 %934
        %v937 = vmul.f32 %v923, %v560
        %v938 = vmul.f32 %v923, %v544
        %v939 = vmul.f32 %v923, %v564
        %v940 = vmul.f32 %v927, %v561
        %v941 = vmul.f32 %v927, %v545
        %v942 = vmul.f32 %v927, %v565
        %v943 = vmul.f32 %v931, %v562
        %v944 = vmul.f32 %v931, %v546
        %v945 = vmul.f32 %v931, %v566
        %v946 = vmul.f32 %v935, %v563
        %v947 = vmul.f32 %v935, %v547
        %v948 = vmul.f32 %v935, %v567
        %961 = vrot.lane.b32.xlu0 %v937, 111
        %v962 = vpop.permute.xlu0 %961
        %963 = vrot.lane.b32.xlu0 %v938, 111
        %v964 = vpop.permute.xlu0 %963
        %965 = vrot.lane.b32.xlu0 %v939, 111
        %v966 = vpop.permute.xlu0 %965
        %967 = vrot.lane.b32.xlu0 %v940, 111
        %v968 = vpop.permute.xlu0 %967
        %969 = vrot.lane.b32.xlu0 %v941, 111
        %v970 = vpop.permute.xlu0 %969
        %971 = vrot.lane.b32.xlu0 %v942, 111
        %v972 = vpop.permute.xlu0 %971
        %973 = vrot.lane.b32.xlu0 %v943, 111
        %v974 = vpop.permute.xlu0 %973
        %975 = vrot.lane.b32.xlu0 %v944, 111
        %v976 = vpop.permute.xlu0 %975
        %977 = vrot.lane.b32.xlu0 %v945, 111
        %v978 = vpop.permute.xlu0 %977
        %979 = vrot.lane.b32.xlu0 %v946, 111
        %v980 = vpop.permute.xlu0 %979
        %981 = vrot.lane.b32.xlu0 %v947, 111
        %v982 = vpop.permute.xlu0 %981
        %983 = vrot.lane.b32.xlu0 %v948, 111
        %v984 = vpop.permute.xlu0 %983
        %vm985 = vcmask 908288
        %v986 = vsel %vm985, %v962, %v964
        %v987 = vsel %vm985, %v964, %v966
        %v988 = vsel %vm985, %v968, %v970
        %v989 = vsel %vm985, %v970, %v972
        %v990 = vsel %vm985, %v974, %v976
        %v991 = vsel %vm985, %v976, %v978
        %v992 = vsel %vm985, %v980, %v982
        %v993 = vsel %vm985, %v982, %v984
        %v1002 = vadd.f32 %v913, %v986
        %v1003 = vadd.f32 %v914, %v987
        %v1004 = vadd.f32 %v915, %v988
        %v1005 = vadd.f32 %v916, %v989
        %v1006 = vadd.f32 %v917, %v990
        %v1007 = vadd.f32 %v918, %v991
        %v1008 = vadd.f32 %v919, %v992
        %v1009 = vadd.f32 %v920, %v993
        %1010 = vset.pattern.permute.xlu0 3
        %1011 = vperm.xlu0 %1010, %v285
        %v1012 = vpop.permute.xlu0 %1011
        %1014 = vset.pattern.permute.xlu0 3
        %1015 = vperm.xlu0 %1014, %v286
        %v1016 = vpop.permute.xlu0 %1015
        %1018 = vset.pattern.permute.xlu0 3
        %1019 = vperm.xlu0 %1018, %v287
        %v1020 = vpop.permute.xlu0 %1019
        %1022 = vset.pattern.permute.xlu0 3
        %1023 = vperm.xlu0 %1022, %v288
        %v1024 = vpop.permute.xlu0 %1023
        %v1026 = vadd.f32 %v1002, %v1012
        %v1027 = vadd.f32 %v1003, %v1012
        %v1028 = vadd.f32 %v1004, %v1016
        %v1029 = vadd.f32 %v1005, %v1016
        %v1030 = vadd.f32 %v1006, %v1020
        %v1031 = vadd.f32 %v1007, %v1020
        %v1032 = vadd.f32 %v1008, %v1024
        %v1033 = vadd.f32 %v1009, %v1024
        %vm1034 = vcmp.ge.f32.partialorder %v1026, 0.0
        %vm1035 = vcmp.ge.f32.partialorder %v1027, 0.0
        %vm1036 = vcmp.ge.f32.partialorder %v1028, 0.0
        %vm1037 = vcmp.ge.f32.partialorder %v1029, 0.0
        %vm1038 = vcmp.ge.f32.partialorder %v1030, 0.0
        %vm1039 = vcmp.ge.f32.partialorder %v1031, 0.0
        %vm1040 = vcmp.ge.f32.partialorder %v1032, 0.0
        %vm1041 = vcmp.ge.f32.partialorder %v1033, 0.0
        %v1042 = vmul.f32 %v1026, 0.01
        %v1043 = vmul.f32 %v1027, 0.01
        %v1044 = vmul.f32 %v1028, 0.01
        %v1045 = vmul.f32 %v1029, 0.01
        %v1046 = vmul.f32 %v1030, 0.01
        %v1047 = vmul.f32 %v1031, 0.01
        %v1048 = vmul.f32 %v1032, 0.01
        %v1049 = vmul.f32 %v1033, 0.01
        %v1050 = vsel %vm1034, %v1026, %v1042
        %v1051 = vsel %vm1035, %v1027, %v1043
        %v1052 = vsel %vm1036, %v1028, %v1044
        %v1053 = vsel %vm1037, %v1029, %v1045
        %v1054 = vsel %vm1038, %v1030, %v1046
        %v1055 = vsel %vm1039, %v1031, %v1047
        %v1056 = vsel %vm1040, %v1032, %v1048
        %v1057 = vsel %vm1041, %v1033, %v1049
        %1059 = vset.pattern.permute.xlu0 0
        %1060 = vperm.xlu0 %1059, %v289
        %v1061 = vpop.permute.xlu0 %1060
        %1064 = vset.pattern.permute.xlu0 0
        %1065 = vperm.xlu0 %1064, %v290
        %v1066 = vpop.permute.xlu0 %1065
        %1069 = vset.pattern.permute.xlu0 0
        %1070 = vperm.xlu0 %1069, %v291
        %v1071 = vpop.permute.xlu0 %1070
        %1074 = vset.pattern.permute.xlu0 0
        %1075 = vperm.xlu0 %1074, %v292
        %v1076 = vpop.permute.xlu0 %1075
        %1079 = vset.pattern.permute.xlu0 0
        %1080 = vperm.xlu0 %1079, %v293
        %v1081 = vpop.permute.xlu0 %1080
        %1084 = vset.pattern.permute.xlu0 0
        %1085 = vperm.xlu0 %1084, %v294
        %v1086 = vpop.permute.xlu0 %1085
        %1089 = vset.pattern.permute.xlu0 0
        %1090 = vperm.xlu0 %1089, %v295
        %v1091 = vpop.permute.xlu0 %1090
        %1094 = vset.pattern.permute.xlu0 0
        %1095 = vperm.xlu0 %1094, %v296
        %v1096 = vpop.permute.xlu0 %1095
        %v1099 = vsel %vm393, %v707, 0
        %v1102 = vsel %vm393, %v708, 0
        %v1105 = vsel %vm393, %v709, 0
        %v1108 = vsel %vm393, %v710, 0
        %v1111 = vsel %vm393, %v711, 0
        %v1114 = vsel %vm393, %v712, 0
        %v1117 = vsel %vm393, %v713, 0
        %v1120 = vsel %vm393, %v714, 0
        %1122 = vmatprep.subr.mxu0 %v1051
        %1123 = vmatpush1.msra.mxu0 %v1050
        %1124 = vmatprep.subr.mxu0 %v1053
        %1125 = vmatpush1.msra.mxu0 %v1052
        %1126 = vmatprep.subr.mxu0 %v1055
        %1127 = vmatpush1.msra.mxu0 %v1054
        %1128 = vmatprep.subr.mxu0 %v1057
        %1129 = vmatpush1.msra.mxu0 %v1056
        %1130 = vmatprep.subr.mxu0 0.0
        %1131 = vmatpush1.msra.mxu0 0.0
        %1132 = vmatprep.subr.mxu0 0.0
        %1133 = vmatpush1.msra.mxu0 0.0
        %1134 = vmatprep.subr.mxu0 0.0
        %1135 = vmatpush1.msra.mxu0 0.0
        %1136 = vmatprep.subr.mxu0 0.0
        %1137 = vmatpush1.msra.mxu0 0.0
        %1138 = vmatprep.subr.mxu0 0.0
        %1139 = vmatpush1.msra.mxu0 0.0
        %1140 = vmatprep.subr.mxu0 0.0
        %1141 = vmatpush1.msra.mxu0 0.0
        %1142 = vmatprep.subr.mxu0 0.0
        %1143 = vmatpush1.msra.mxu0 0.0
        %1144 = vmatprep.subr.mxu0 0.0
        %1145 = vmatpush1.msra.mxu0 0.0
        %1146 = vmatprep.subr.mxu0 0.0
        %1147 = vmatpush1.msra.mxu0 0.0
        %1148 = vmatprep.subr.mxu0 0.0
        %1149 = vmatpush1.msra.mxu0 0.0
        %1150 = vmatprep.subr.mxu0 0.0
        %1151 = vmatpush1.msra.mxu0 0.0
        %1152 = vmatprep.subr.mxu0 0.0
        %1153 = vmatpush1.msra.mxu0 0.0
        %1154 = vmatprep.subr.mxu0 0.0
        %1155 = vmatpush1.msra.mxu0 0.0
        %1156 = vmatprep.subr.mxu0 0.0
        %1157 = vmatpush1.msra.mxu0 0.0
        %1158 = vmatprep.subr.mxu0 0.0
        %1159 = vmatpush1.msra.mxu0 0.0
        %1160 = vmatprep.subr.mxu0 0.0
        %1161 = vmatpush1.msra.mxu0 0.0
        %1162 = vmatprep.subr.mxu0 0.0
        %1163 = vmatpush1.msra.mxu0 0.0
        %1164 = vmatprep.subr.mxu0 0.0
        %1165 = vmatpush1.msra.mxu0 0.0
        %1166 = vmatprep.subr.mxu0 0.0
        %1167 = vmatpush1.msra.mxu0 0.0
        %1168 = vmatprep.subr.mxu0 0.0
        %1169 = vmatpush1.msra.mxu0 0.0
        %1170 = vmatprep.subr.mxu0 0.0
        %1171 = vmatpush1.msra.mxu0 0.0
        %1172 = vmatprep.subr.mxu0 0.0
        %1173 = vmatpush1.msra.mxu0 0.0
        %1174 = vmatprep.subr.mxu0 0.0
        %1175 = vmatpush1.msra.mxu0 0.0
        %1176 = vmatprep.subr.mxu0 0.0
        %1177 = vmatpush1.msra.mxu0 0.0
        %1178 = vmatprep.subr.mxu0 0.0
        %1179 = vmatpush1.msra.mxu0 0.0
        %1180 = vmatprep.subr.mxu0 0.0
        %1181 = vmatpush1.msra.mxu0 0.0
        %1182 = vmatprep.subr.mxu0 0.0
        %1183 = vmatpush1.msra.mxu0 0.0
        %1184 = vmatprep.subr.mxu0 0.0
        %1185 = vmatpush1.msra.mxu0 0.0
        %1186 = vmatprep.mubr.f32.mxu0 0.0
        %1187 = vmatmul.mubr.f32.gmra.mrb[0].mxu0 %v1099
        %v1188 = vpop.f32.mrb[0].mxu0
        %v1189 = vadd.f32 %v1061, %v1188
        %v1190 = vpop.f32.mrb[0].mxu0
        %v1191 = vadd.f32 %v1061, %v1190
        %1192 = vmatprep.mubr.f32.mxu0 0.0
        %1193 = vmatmul.mubr.f32.gmra.mrb[0].mxu0 %v1102
        %v1194 = vpop.f32.mrb[0].mxu0
        %v1195 = vadd.f32 %v1066, %v1194
        %v1196 = vpop.f32.mrb[0].mxu0
        %v1197 = vadd.f32 %v1066, %v1196
        %1198 = vmatprep.mubr.f32.mxu0 0.0
        %1199 = vmatmul.mubr.f32.gmra.mrb[0].mxu0 %v1105
        %v1200 = vpop.f32.mrb[0].mxu0
        %v1201 = vadd.f32 %v1071, %v1200
        %v1202 = vpop.f32.mrb[0].mxu0
        %v1203 = vadd.f32 %v1071, %v1202
        %1204 = vmatprep.mubr.f32.mxu0 0.0
        %1205 = vmatmul.mubr.f32.gmra.mrb[0].mxu0 %v1108
        %v1206 = vpop.f32.mrb[0].mxu0
        %v1207 = vadd.f32 %v1076, %v1206
        %v1208 = vpop.f32.mrb[0].mxu0
        %v1209 = vadd.f32 %v1076, %v1208
        %1210 = vmatprep.mubr.f32.mxu0 0.0
        %1211 = vmatmul.mubr.f32.gmra.mrb[0].mxu0 %v1111
        %v1212 = vpop.f32.mrb[0].mxu0
        %v1213 = vadd.f32 %v1081, %v1212
        %v1214 = vpop.f32.mrb[0].mxu0
        %v1215 = vadd.f32 %v1081, %v1214
        %1216 = vmatprep.mubr.f32.mxu0 0.0
        %1217 = vmatmul.mubr.f32.gmra.mrb[0].mxu0 %v1114
        %v1218 = vpop.f32.mrb[0].mxu0
        %v1219 = vadd.f32 %v1086, %v1218
        %v1220 = vpop.f32.mrb[0].mxu0
        %v1221 = vadd.f32 %v1086, %v1220
        %1222 = vmatprep.mubr.f32.mxu0 0.0
        %1223 = vmatmul.mubr.f32.gmra.mrb[0].mxu0 %v1117
        %v1224 = vpop.f32.mrb[0].mxu0
        %v1225 = vadd.f32 %v1091, %v1224
        %v1226 = vpop.f32.mrb[0].mxu0
        %v1227 = vadd.f32 %v1091, %v1226
        %1228 = vmatprep.mubr.f32.mxu0 0.0
        %1229 = vmatmul.mubr.f32.gmra.mrb[0].mxu0 %v1120
        %v1230 = vpop.f32.mrb[0].mxu0
        %v1231 = vadd.f32 %v1096, %v1230
        %v1232 = vpop.f32.mrb[0].mxu0
        %v1233 = vadd.f32 %v1096, %v1232
        %1234 = vdwg.mxu0
        %v1235 = vxor.u32 %v1189, 2147483648
        %v1236 = vxor.u32 %v1191, 2147483648
        %v1237 = vxor.u32 %v1195, 2147483648
        %v1238 = vxor.u32 %v1197, 2147483648
        %v1239 = vxor.u32 %v1201, 2147483648
        %v1240 = vxor.u32 %v1203, 2147483648
        %v1241 = vxor.u32 %v1207, 2147483648
        %v1242 = vxor.u32 %v1209, 2147483648
        %v1243 = vxor.u32 %v1213, 2147483648
        %v1244 = vxor.u32 %v1215, 2147483648
        %v1245 = vxor.u32 %v1219, 2147483648
        %v1246 = vxor.u32 %v1221, 2147483648
        %v1247 = vxor.u32 %v1225, 2147483648
        %v1248 = vxor.u32 %v1227, 2147483648
        %v1249 = vxor.u32 %v1231, 2147483648
        %v1250 = vxor.u32 %v1233, 2147483648
        %v1251 = vmul.f32 %v1235, 1.442695
        %v1252 = vpow.pop %v1251
        %v1253 = vmul.f32 %v1236, 1.442695
        %v1254 = vpow.pop %v1253
        %v1255 = vmul.f32 %v1237, 1.442695
        %v1256 = vpow.pop %v1255
        %v1257 = vmul.f32 %v1238, 1.442695
        %v1258 = vpow.pop %v1257
        %v1259 = vmul.f32 %v1239, 1.442695
        %v1260 = vpow.pop %v1259
        %v1261 = vmul.f32 %v1240, 1.442695
        %v1262 = vpow.pop %v1261
        %v1263 = vmul.f32 %v1241, 1.442695
        %v1264 = vpow.pop %v1263
        %v1265 = vmul.f32 %v1242, 1.442695
        %v1266 = vpow.pop %v1265
        %v1267 = vmul.f32 %v1243, 1.442695
        %v1268 = vpow.pop %v1267
        %v1269 = vmul.f32 %v1244, 1.442695
        %v1270 = vpow.pop %v1269
        %v1271 = vmul.f32 %v1245, 1.442695
        %v1272 = vpow.pop %v1271
        %v1273 = vmul.f32 %v1246, 1.442695
        %v1274 = vpow.pop %v1273
        %v1275 = vmul.f32 %v1247, 1.442695
        %v1276 = vpow.pop %v1275
        %v1277 = vmul.f32 %v1248, 1.442695
        %v1278 = vpow.pop %v1277
        %v1279 = vmul.f32 %v1249, 1.442695
        %v1280 = vpow.pop %v1279
        %v1281 = vmul.f32 %v1250, 1.442695
        %v1282 = vpow.pop %v1281
        %v1283 = vadd.f32 %v1252, 1.0
        %v1284 = vadd.f32 %v1254, 1.0
        %v1285 = vadd.f32 %v1256, 1.0
        %v1286 = vadd.f32 %v1258, 1.0
        %v1287 = vadd.f32 %v1260, 1.0
        %v1288 = vadd.f32 %v1262, 1.0
        %v1289 = vadd.f32 %v1264, 1.0
        %v1290 = vadd.f32 %v1266, 1.0
        %v1291 = vadd.f32 %v1268, 1.0
        %v1292 = vadd.f32 %v1270, 1.0
        %v1293 = vadd.f32 %v1272, 1.0
        %v1294 = vadd.f32 %v1274, 1.0
        %v1295 = vadd.f32 %v1276, 1.0
        %v1296 = vadd.f32 %v1278, 1.0
        %v1297 = vadd.f32 %v1280, 1.0
        %v1298 = vadd.f32 %v1282, 1.0
        %v1299 = vrcp.pop %v1283
        %v1300 = vmul.f32 1.0, %v1299
        %v1301 = vrcp.pop %v1284
        %v1302 = vmul.f32 1.0, %v1301
        %v1303 = vrcp.pop %v1285
        %v1304 = vmul.f32 1.0, %v1303
        %v1305 = vrcp.pop %v1286
        %v1306 = vmul.f32 1.0, %v1305
        %v1307 = vrcp.pop %v1287
        %v1308 = vmul.f32 1.0, %v1307
        %v1309 = vrcp.pop %v1288
        %v1310 = vmul.f32 1.0, %v1309
        %v1311 = vrcp.pop %v1289
        %v1312 = vmul.f32 1.0, %v1311
        %v1313 = vrcp.pop %v1290
        %v1314 = vmul.f32 1.0, %v1313
        %v1315 = vrcp.pop %v1291
        %v1316 = vmul.f32 1.0, %v1315
        %v1317 = vrcp.pop %v1292
        %v1318 = vmul.f32 1.0, %v1317
        %v1319 = vrcp.pop %v1293
        %v1320 = vmul.f32 1.0, %v1319
        %v1321 = vrcp.pop %v1294
        %v1322 = vmul.f32 1.0, %v1321
        %v1323 = vrcp.pop %v1295
        %v1324 = vmul.f32 1.0, %v1323
        %v1325 = vrcp.pop %v1296
        %v1326 = vmul.f32 1.0, %v1325
        %v1327 = vrcp.pop %v1297
        %v1328 = vmul.f32 1.0, %v1327
        %v1329 = vrcp.pop %v1298
        %v1330 = vmul.f32 1.0, %v1329
        %1331 = vst [vmem:[%s271] sm:$0xff] %v1300
        %1332 = vst [vmem:[%s271 + $0x8] sm:$0xff] %v1302
        %1333 = vst [vmem:[%s271 + $0x10] sm:$0xff] %v1304
        %1334 = vst [vmem:[%s271 + $0x18] sm:$0xff] %v1306
        %1335 = vst [vmem:[%s271 + $0x20] sm:$0xff] %v1308
        %1336 = vst [vmem:[%s271 + $0x28] sm:$0xff] %v1310
        %1337 = vst [vmem:[%s271 + $0x30] sm:$0xff] %v1312
        %1338 = vst [vmem:[%s271 + $0x38] sm:$0xff] %v1314
        %1339 = vst [vmem:[%s271 + $0x40] sm:$0xff] %v1316
        %1340 = vst [vmem:[%s271 + $0x48] sm:$0xff] %v1318
        %1341 = vst [vmem:[%s271 + $0x50] sm:$0xff] %v1320
        %1342 = vst [vmem:[%s271 + $0x58] sm:$0xff] %v1322
        %1343 = vst [vmem:[%s271 + $0x60] sm:$0xff] %v1324
        %1344 = vst [vmem:[%s271 + $0x68] sm:$0xff] %v1326
        %1345 = vst [vmem:[%s271 + $0x70] sm:$0xff] %v1328
        %1346 = vst [vmem:[%s271 + $0x78] sm:$0xff] %v1330
        %1347 = vset.pattern.permute.xlu0 4
        %1348 = vperm.xlu0 %1347, %v703
        %v1349 = vpop.permute.xlu0 %1348
        %1351 = vset.pattern.permute.xlu0 4
        %1352 = vperm.xlu0 %1351, %v704
        %v1353 = vpop.permute.xlu0 %1352
        %1355 = vset.pattern.permute.xlu0 4
        %1356 = vperm.xlu0 %1355, %v705
        %v1357 = vpop.permute.xlu0 %1356
        %1359 = vset.pattern.permute.xlu0 4
        %1360 = vperm.xlu0 %1359, %v706
        %v1361 = vpop.permute.xlu0 %1360
        %v1363 = vmul.f32 %v1349, %v560
        %v1364 = vmul.f32 %v1349, %v544
        %v1365 = vmul.f32 %v1349, %v564
        %v1366 = vmul.f32 %v1353, %v561
        %v1367 = vmul.f32 %v1353, %v545
        %v1368 = vmul.f32 %v1353, %v565
        %v1369 = vmul.f32 %v1357, %v562
        %v1370 = vmul.f32 %v1357, %v546
        %v1371 = vmul.f32 %v1357, %v566
        %v1372 = vmul.f32 %v1361, %v563
        %v1373 = vmul.f32 %v1361, %v547
        %v1374 = vmul.f32 %v1361, %v567
        %1375 = vset.pattern.permute.xlu0 5
        %1376 = vperm.xlu0 %1375, %v703
        %v1377 = vpop.permute.xlu0 %1376
        %1379 = vset.pattern.permute.xlu0 5
        %1380 = vperm.xlu0 %1379, %v704
        %v1381 = vpop.permute.xlu0 %1380
        %1383 = vset.pattern.permute.xlu0 5
        %1384 = vperm.xlu0 %1383, %v705
        %v1385 = vpop.permute.xlu0 %1384
        %1387 = vset.pattern.permute.xlu0 5
        %1388 = vperm.xlu0 %1387, %v706
        %v1389 = vpop.permute.xlu0 %1388
        %v1391 = vmul.f32 %v1377, %v608
        %v1392 = vmul.f32 %v1377, %v609
        %v1393 = vmul.f32 %v1377, %v610
        %v1394 = vmul.f32 %v1381, %v611
        %v1395 = vmul.f32 %v1381, %v612
        %v1396 = vmul.f32 %v1381, %v613
        %v1397 = vmul.f32 %v1385, %v614
        %v1398 = vmul.f32 %v1385, %v615
        %v1399 = vmul.f32 %v1385, %v616
        %v1400 = vmul.f32 %v1389, %v617
        %v1401 = vmul.f32 %v1389, %v618
        %v1402 = vmul.f32 %v1389, %v619
        %1415 = vrot.lane.b32.xlu0 %v1391, 127
        %v1416 = vpop.permute.xlu0 %1415
        %1417 = vrot.lane.b32.xlu0 %v1392, 127
        %v1418 = vpop.permute.xlu0 %1417
        %1419 = vrot.lane.b32.xlu0 %v1393, 127
        %v1420 = vpop.permute.xlu0 %1419
        %1421 = vrot.lane.b32.xlu0 %v1394, 127
        %v1422 = vpop.permute.xlu0 %1421
        %1423 = vrot.lane.b32.xlu0 %v1395, 127
        %v1424 = vpop.permute.xlu0 %1423
        %1425 = vrot.lane.b32.xlu0 %v1396, 127
        %v1426 = vpop.permute.xlu0 %1425
        %1427 = vrot.lane.b32.xlu0 %v1397, 127
        %v1428 = vpop.permute.xlu0 %1427
        %1429 = vrot.lane.b32.xlu0 %v1398, 127
        %v1430 = vpop.permute.xlu0 %1429
        %1431 = vrot.lane.b32.xlu0 %v1399, 127
        %v1432 = vpop.permute.xlu0 %1431
        %1433 = vrot.lane.b32.xlu0 %v1400, 127
        %v1434 = vpop.permute.xlu0 %1433
        %1435 = vrot.lane.b32.xlu0 %v1401, 127
        %v1436 = vpop.permute.xlu0 %1435
        %1437 = vrot.lane.b32.xlu0 %v1402, 127
        %v1438 = vpop.permute.xlu0 %1437
        %v1439 = vsel %vm807, %v1416, %v1418
        %v1440 = vsel %vm807, %v1418, %v1420
        %v1441 = vsel %vm807, %v1422, %v1424
        %v1442 = vsel %vm807, %v1424, %v1426
        %v1443 = vsel %vm807, %v1428, %v1430
        %v1444 = vsel %vm807, %v1430, %v1432
        %v1445 = vsel %vm807, %v1434, %v1436
        %v1446 = vsel %vm807, %v1436, %v1438
        %v1459 = vadd.f32 %v1363, %v1439
        %v1460 = vadd.f32 %v1364, %v1440
        %v1461 = vadd.f32 %v1365, %v1420
        %v1462 = vadd.f32 %v1366, %v1441
        %v1463 = vadd.f32 %v1367, %v1442
        %v1464 = vadd.f32 %v1368, %v1426
        %v1465 = vadd.f32 %v1369, %v1443
        %v1466 = vadd.f32 %v1370, %v1444
        %v1467 = vadd.f32 %v1371, %v1432
        %v1468 = vadd.f32 %v1372, %v1445
        %v1469 = vadd.f32 %v1373, %v1446
        %v1470 = vadd.f32 %v1374, %v1438
        %1471 = vset.pattern.permute.xlu0 6
        %1472 = vperm.xlu0 %1471, %v703
        %v1473 = vpop.permute.xlu0 %1472
        %1475 = vset.pattern.permute.xlu0 6
        %1476 = vperm.xlu0 %1475, %v704
        %v1477 = vpop.permute.xlu0 %1476
        %1479 = vset.pattern.permute.xlu0 6
        %1480 = vperm.xlu0 %1479, %v705
        %v1481 = vpop.permute.xlu0 %1480
        %1483 = vset.pattern.permute.xlu0 6
        %1484 = vperm.xlu0 %1483, %v706
        %v1485 = vpop.permute.xlu0 %1484
        %v1487 = vmul.f32 %v1473, %v560
        %v1488 = vmul.f32 %v1473, %v544
        %v1489 = vmul.f32 %v1473, %v564
        %v1490 = vmul.f32 %v1477, %v561
        %v1491 = vmul.f32 %v1477, %v545
        %v1492 = vmul.f32 %v1477, %v565
        %v1493 = vmul.f32 %v1481, %v562
        %v1494 = vmul.f32 %v1481, %v546
        %v1495 = vmul.f32 %v1481, %v566
        %v1496 = vmul.f32 %v1485, %v563
        %v1497 = vmul.f32 %v1485, %v547
        %v1498 = vmul.f32 %v1485, %v567
        %1511 = vrot.lane.b32.xlu0 %v1487, 112
        %v1512 = vpop.permute.xlu0 %1511
        %1513 = vrot.lane.b32.xlu0 %v1488, 112
        %v1514 = vpop.permute.xlu0 %1513
        %1515 = vrot.lane.b32.xlu0 %v1489, 112
        %v1516 = vpop.permute.xlu0 %1515
        %1517 = vrot.lane.b32.xlu0 %v1490, 112
        %v1518 = vpop.permute.xlu0 %1517
        %1519 = vrot.lane.b32.xlu0 %v1491, 112
        %v1520 = vpop.permute.xlu0 %1519
        %1521 = vrot.lane.b32.xlu0 %v1492, 112
        %v1522 = vpop.permute.xlu0 %1521
        %1523 = vrot.lane.b32.xlu0 %v1493, 112
        %v1524 = vpop.permute.xlu0 %1523
        %1525 = vrot.lane.b32.xlu0 %v1494, 112
        %v1526 = vpop.permute.xlu0 %1525
        %1527 = vrot.lane.b32.xlu0 %v1495, 112
        %v1528 = vpop.permute.xlu0 %1527
        %1529 = vrot.lane.b32.xlu0 %v1496, 112
        %v1530 = vpop.permute.xlu0 %1529
        %1531 = vrot.lane.b32.xlu0 %v1497, 112
        %v1532 = vpop.permute.xlu0 %1531
        %1533 = vrot.lane.b32.xlu0 %v1498, 112
        %v1534 = vpop.permute.xlu0 %1533
        %v1535 = vsel %vm896, %v1512, %v1514
        %v1536 = vsel %vm896, %v1514, %v1516
        %v1537 = vsel %vm896, %v1518, %v1520
        %v1538 = vsel %vm896, %v1520, %v1522
        %v1539 = vsel %vm896, %v1524, %v1526
        %v1540 = vsel %vm896, %v1526, %v1528
        %v1541 = vsel %vm896, %v1530, %v1532
        %v1542 = vsel %vm896, %v1532, %v1534
        %v1555 = vadd.f32 %v1459, %v1535
        %v1556 = vadd.f32 %v1460, %v1536
        %v1557 = vadd.f32 %v1461, %v1516
        %v1558 = vadd.f32 %v1462, %v1537
        %v1559 = vadd.f32 %v1463, %v1538
        %v1560 = vadd.f32 %v1464, %v1522
        %v1561 = vadd.f32 %v1465, %v1539
        %v1562 = vadd.f32 %v1466, %v1540
        %v1563 = vadd.f32 %v1467, %v1528
        %v1564 = vadd.f32 %v1468, %v1541
        %v1565 = vadd.f32 %v1469, %v1542
        %v1566 = vadd.f32 %v1470, %v1534
        %1567 = vset.pattern.permute.xlu0 7
        %1568 = vperm.xlu0 %1567, %v703
        %v1569 = vpop.permute.xlu0 %1568
        %1571 = vset.pattern.permute.xlu0 7
        %1572 = vperm.xlu0 %1571, %v704
        %v1573 = vpop.permute.xlu0 %1572
        %1575 = vset.pattern.permute.xlu0 7
        %1576 = vperm.xlu0 %1575, %v705
        %v1577 = vpop.permute.xlu0 %1576
        %1579 = vset.pattern.permute.xlu0 7
        %1580 = vperm.xlu0 %1579, %v706
        %v1581 = vpop.permute.xlu0 %1580
        %v1583 = vmul.f32 %v1569, %v650
        %v1584 = vmul.f32 %v1569, %v651
        %v1585 = vmul.f32 %v1569, %v652
        %v1586 = vmul.f32 %v1573, %v653
        %v1587 = vmul.f32 %v1573, %v654
        %v1588 = vmul.f32 %v1573, %v655
        %v1589 = vmul.f32 %v1577, %v656
        %v1590 = vmul.f32 %v1577, %v657
        %v1591 = vmul.f32 %v1577, %v658
        %v1592 = vmul.f32 %v1581, %v659
        %v1593 = vmul.f32 %v1581, %v660
        %v1594 = vmul.f32 %v1581, %v661
        %1607 = vrot.lane.b32.xlu0 %v1583, 111
        %v1608 = vpop.permute.xlu0 %1607
        %1609 = vrot.lane.b32.xlu0 %v1584, 111
        %v1610 = vpop.permute.xlu0 %1609
        %1611 = vrot.lane.b32.xlu0 %v1585, 111
        %v1612 = vpop.permute.xlu0 %1611
        %1613 = vrot.lane.b32.xlu0 %v1586, 111
        %v1614 = vpop.permute.xlu0 %1613
        %1615 = vrot.lane.b32.xlu0 %v1587, 111
        %v1616 = vpop.permute.xlu0 %1615
        %1617 = vrot.lane.b32.xlu0 %v1588, 111
        %v1618 = vpop.permute.xlu0 %1617
        %1619 = vrot.lane.b32.xlu0 %v1589, 111
        %v1620 = vpop.permute.xlu0 %1619
        %1621 = vrot.lane.b32.xlu0 %v1590, 111
        %v1622 = vpop.permute.xlu0 %1621
        %1623 = vrot.lane.b32.xlu0 %v1591, 111
        %v1624 = vpop.permute.xlu0 %1623
        %1625 = vrot.lane.b32.xlu0 %v1592, 111
        %v1626 = vpop.permute.xlu0 %1625
        %1627 = vrot.lane.b32.xlu0 %v1593, 111
        %v1628 = vpop.permute.xlu0 %1627
        %1629 = vrot.lane.b32.xlu0 %v1594, 111
        %v1630 = vpop.permute.xlu0 %1629
        %v1631 = vsel %vm985, %v1608, %v1610
        %v1632 = vsel %vm985, %v1610, %v1612
        %v1633 = vsel %vm985, %v1614, %v1616
        %v1634 = vsel %vm985, %v1616, %v1618
        %v1635 = vsel %vm985, %v1620, %v1622
        %v1636 = vsel %vm985, %v1622, %v1624
        %v1637 = vsel %vm985, %v1626, %v1628
        %v1638 = vsel %vm985, %v1628, %v1630
        %v1651 = vadd.f32 %v1555, %v1631
        %v1652 = vadd.f32 %v1556, %v1632
        %v1653 = vadd.f32 %v1557, %v1612
        %v1654 = vadd.f32 %v1558, %v1633
        %v1655 = vadd.f32 %v1559, %v1634
        %v1656 = vadd.f32 %v1560, %v1618
        %v1657 = vadd.f32 %v1561, %v1635
        %v1658 = vadd.f32 %v1562, %v1636
        %v1659 = vadd.f32 %v1563, %v1624
        %v1660 = vadd.f32 %v1564, %v1637
        %v1661 = vadd.f32 %v1565, %v1638
        %v1662 = vadd.f32 %v1566, %v1630
        %v1663 = vadd.f32 %v1651, %v1012
        %v1664 = vadd.f32 %v1652, %v1012
        %v1665 = vadd.f32 %v1653, %v1012
        %v1666 = vadd.f32 %v1654, %v1016
        %v1667 = vadd.f32 %v1655, %v1016
        %v1668 = vadd.f32 %v1656, %v1016
        %v1669 = vadd.f32 %v1657, %v1020
        %v1670 = vadd.f32 %v1658, %v1020
        %v1671 = vadd.f32 %v1659, %v1020
        %v1672 = vadd.f32 %v1660, %v1024
        %v1673 = vadd.f32 %v1661, %v1024
        %v1674 = vadd.f32 %v1662, %v1024
        %vm1675 = vcmp.ge.f32.partialorder %v1663, 0.0
        %vm1676 = vcmp.ge.f32.partialorder %v1664, 0.0
        %vm1677 = vcmp.ge.f32.partialorder %v1665, 0.0
        %vm1678 = vcmp.ge.f32.partialorder %v1666, 0.0
        %vm1679 = vcmp.ge.f32.partialorder %v1667, 0.0
        %vm1680 = vcmp.ge.f32.partialorder %v1668, 0.0
        %vm1681 = vcmp.ge.f32.partialorder %v1669, 0.0
        %vm1682 = vcmp.ge.f32.partialorder %v1670, 0.0
        %vm1683 = vcmp.ge.f32.partialorder %v1671, 0.0
        %vm1684 = vcmp.ge.f32.partialorder %v1672, 0.0
        %vm1685 = vcmp.ge.f32.partialorder %v1673, 0.0
        %vm1686 = vcmp.ge.f32.partialorder %v1674, 0.0
        %v1687 = vmul.f32 %v1663, 0.01
        %v1688 = vmul.f32 %v1664, 0.01
        %v1689 = vmul.f32 %v1665, 0.01
        %v1690 = vmul.f32 %v1666, 0.01
        %v1691 = vmul.f32 %v1667, 0.01
        %v1692 = vmul.f32 %v1668, 0.01
        %v1693 = vmul.f32 %v1669, 0.01
        %v1694 = vmul.f32 %v1670, 0.01
        %v1695 = vmul.f32 %v1671, 0.01
        %v1696 = vmul.f32 %v1672, 0.01
        %v1697 = vmul.f32 %v1673, 0.01
        %v1698 = vmul.f32 %v1674, 0.01
        %v1699 = vsel %vm1675, %v1663, %v1687
        %v1700 = vsel %vm1676, %v1664, %v1688
        %v1701 = vsel %vm1677, %v1665, %v1689
        %v1702 = vsel %vm1678, %v1666, %v1690
        %v1703 = vsel %vm1679, %v1667, %v1691
        %v1704 = vsel %vm1680, %v1668, %v1692
        %v1705 = vsel %vm1681, %v1669, %v1693
        %v1706 = vsel %vm1682, %v1670, %v1694
        %v1707 = vsel %vm1683, %v1671, %v1695
        %v1708 = vsel %vm1684, %v1672, %v1696
        %v1709 = vsel %vm1685, %v1673, %v1697
        %v1710 = vsel %vm1686, %v1674, %v1698
        %1723 = vrot.lane.b32.xlu0 %v1699, 127
        %v1724 = vpop.permute.xlu0 %1723
        %1725 = vrot.lane.b32.xlu0 %v1700, 127
        %v1726 = vpop.permute.xlu0 %1725
        %1727 = vrot.lane.b32.xlu0 %v1701, 127
        %v1728 = vpop.permute.xlu0 %1727
        %1729 = vrot.lane.b32.xlu0 %v1702, 127
        %v1730 = vpop.permute.xlu0 %1729
        %1731 = vrot.lane.b32.xlu0 %v1703, 127
        %v1732 = vpop.permute.xlu0 %1731
        %1733 = vrot.lane.b32.xlu0 %v1704, 127
        %v1734 = vpop.permute.xlu0 %1733
        %1735 = vrot.lane.b32.xlu0 %v1705, 127
        %v1736 = vpop.permute.xlu0 %1735
        %1737 = vrot.lane.b32.xlu0 %v1706, 127
        %v1738 = vpop.permute.xlu0 %1737
        %1739 = vrot.lane.b32.xlu0 %v1707, 127
        %v1740 = vpop.permute.xlu0 %1739
        %1741 = vrot.lane.b32.xlu0 %v1708, 127
        %v1742 = vpop.permute.xlu0 %1741
        %1743 = vrot.lane.b32.xlu0 %v1709, 127
        %v1744 = vpop.permute.xlu0 %1743
        %1745 = vrot.lane.b32.xlu0 %v1710, 127
        %v1746 = vpop.permute.xlu0 %1745
        %v1747 = vsel %vm807, %v1724, %v1726
        %v1748 = vsel %vm807, %v1726, %v1728
        %v1749 = vsel %vm807, %v1730, %v1732
        %v1750 = vsel %vm807, %v1732, %v1734
        %v1751 = vsel %vm807, %v1736, %v1738
        %v1752 = vsel %vm807, %v1738, %v1740
        %v1753 = vsel %vm807, %v1742, %v1744
        %v1754 = vsel %vm807, %v1744, %v1746
        %1763 = vmatprep.subr.mxu0 %v1748
        %1764 = vmatpush1.msra.mxu0 %v1747
        %1765 = vmatprep.subr.mxu0 %v1750
        %1766 = vmatpush1.msra.mxu0 %v1749
        %1767 = vmatprep.subr.mxu0 %v1752
        %1768 = vmatpush1.msra.mxu0 %v1751
        %1769 = vmatprep.subr.mxu0 %v1754
        %1770 = vmatpush1.msra.mxu0 %v1753
        %1771 = vmatprep.subr.mxu0 0.0
        %1772 = vmatpush1.msra.mxu0 0.0
        %1773 = vmatprep.subr.mxu0 0.0
        %1774 = vmatpush1.msra.mxu0 0.0
        %1775 = vmatprep.subr.mxu0 0.0
        %1776 = vmatpush1.msra.mxu0 0.0
        %1777 = vmatprep.subr.mxu0 0.0
        %1778 = vmatpush1.msra.mxu0 0.0
        %1779 = vmatprep.subr.mxu0 0.0
        %1780 = vmatpush1.msra.mxu0 0.0
        %1781 = vmatprep.subr.mxu0 0.0
        %1782 = vmatpush1.msra.mxu0 0.0
        %1783 = vmatprep.subr.mxu0 0.0
        %1784 = vmatpush1.msra.mxu0 0.0
        %1785 = vmatprep.subr.mxu0 0.0
        %1786 = vmatpush1.msra.mxu0 0.0
        %1787 = vmatprep.subr.mxu0 0.0
        %1788 = vmatpush1.msra.mxu0 0.0
        %1789 = vmatprep.subr.mxu0 0.0
        %1790 = vmatpush1.msra.mxu0 0.0
        %1791 = vmatprep.subr.mxu0 0.0
        %1792 = vmatpush1.msra.mxu0 0.0
        %1793 = vmatprep.subr.mxu0 0.0
        %1794 = vmatpush1.msra.mxu0 0.0
        %1795 = vmatprep.subr.mxu0 0.0
        %1796 = vmatpush1.msra.mxu0 0.0
        %1797 = vmatprep.subr.mxu0 0.0
        %1798 = vmatpush1.msra.mxu0 0.0
        %1799 = vmatprep.subr.mxu0 0.0
        %1800 = vmatpush1.msra.mxu0 0.0
        %1801 = vmatprep.subr.mxu0 0.0
        %1802 = vmatpush1.msra.mxu0 0.0
        %1803 = vmatprep.subr.mxu0 0.0
        %1804 = vmatpush1.msra.mxu0 0.0
        %1805 = vmatprep.subr.mxu0 0.0
        %1806 = vmatpush1.msra.mxu0 0.0
        %1807 = vmatprep.subr.mxu0 0.0
        %1808 = vmatpush1.msra.mxu0 0.0
        %1809 = vmatprep.subr.mxu0 0.0
        %1810 = vmatpush1.msra.mxu0 0.0
        %1811 = vmatprep.subr.mxu0 0.0
        %1812 = vmatpush1.msra.mxu0 0.0
        %1813 = vmatprep.subr.mxu0 0.0
        %1814 = vmatpush1.msra.mxu0 0.0
        %1815 = vmatprep.subr.mxu0 0.0
        %1816 = vmatpush1.msra.mxu0 0.0
        %1817 = vmatprep.subr.mxu0 0.0
        %1818 = vmatpush1.msra.mxu0 0.0
        %1819 = vmatprep.subr.mxu0 0.0
        %1820 = vmatpush1.msra.mxu0 0.0
        %1821 = vmatprep.subr.mxu0 0.0
        %1822 = vmatpush1.msra.mxu0 0.0
        %1823 = vmatprep.subr.mxu0 0.0
        %1824 = vmatpush1.msra.mxu0 0.0
        %1825 = vmatprep.subr.mxu0 0.0
        %1826 = vmatpush1.msra.mxu0 0.0
        %1827 = vmatprep.mubr.f32.mxu0 0.0
        %1828 = vmatmul.mubr.f32.gmra.mrb[0].mxu0 %v1099
        %v1829 = vpop.f32.mrb[0].mxu0
        %v1830 = vadd.f32 %v1061, %v1829
        %v1831 = vpop.f32.mrb[0].mxu0
        %v1832 = vadd.f32 %v1061, %v1831
        %1833 = vmatprep.mubr.f32.mxu0 0.0
        %1834 = vmatmul.mubr.f32.gmra.mrb[0].mxu0 %v1102
        %v1835 = vpop.f32.mrb[0].mxu0
        %v1836 = vadd.f32 %v1066, %v1835
        %v1837 = vpop.f32.mrb[0].mxu0
        %v1838 = vadd.f32 %v1066, %v1837
        %1839 = vmatprep.mubr.f32.mxu0 0.0
        %1840 = vmatmul.mubr.f32.gmra.mrb[0].mxu0 %v1105
        %v1841 = vpop.f32.mrb[0].mxu0
        %v1842 = vadd.f32 %v1071, %v1841
        %v1843 = vpop.f32.mrb[0].mxu0
        %v1844 = vadd.f32 %v1071, %v1843
        %1845 = vmatprep.mubr.f32.mxu0 0.0
        %1846 = vmatmul.mubr.f32.gmra.mrb[0].mxu0 %v1108
        %v1847 = vpop.f32.mrb[0].mxu0
        %v1848 = vadd.f32 %v1076, %v1847
        %v1849 = vpop.f32.mrb[0].mxu0
        %v1850 = vadd.f32 %v1076, %v1849
        %1851 = vmatprep.mubr.f32.mxu0 0.0
        %1852 = vmatmul.mubr.f32.gmra.mrb[0].mxu0 %v1111
        %v1853 = vpop.f32.mrb[0].mxu0
        %v1854 = vadd.f32 %v1081, %v1853
        %v1855 = vpop.f32.mrb[0].mxu0
        %v1856 = vadd.f32 %v1081, %v1855
        %1857 = vmatprep.mubr.f32.mxu0 0.0
        %1858 = vmatmul.mubr.f32.gmra.mrb[0].mxu0 %v1114
        %v1859 = vpop.f32.mrb[0].mxu0
        %v1860 = vadd.f32 %v1086, %v1859
        %v1861 = vpop.f32.mrb[0].mxu0
        %v1862 = vadd.f32 %v1086, %v1861
        %1863 = vmatprep.mubr.f32.mxu0 0.0
        %1864 = vmatmul.mubr.f32.gmra.mrb[0].mxu0 %v1117
        %v1865 = vpop.f32.mrb[0].mxu0
        %v1866 = vadd.f32 %v1091, %v1865
        %v1867 = vpop.f32.mrb[0].mxu0
        %v1868 = vadd.f32 %v1091, %v1867
        %1869 = vmatprep.mubr.f32.mxu0 0.0
        %1870 = vmatmul.mubr.f32.gmra.mrb[0].mxu0 %v1120
        %v1871 = vpop.f32.mrb[0].mxu0
        %v1872 = vadd.f32 %v1096, %v1871
        %v1873 = vpop.f32.mrb[0].mxu0
        %v1874 = vadd.f32 %v1096, %v1873
        %1875 = vdwg.mxu0
        %v1876 = vxor.u32 %v1830, 2147483648
        %v1877 = vxor.u32 %v1832, 2147483648
        %v1878 = vxor.u32 %v1836, 2147483648
        %v1879 = vxor.u32 %v1838, 2147483648
        %v1880 = vxor.u32 %v1842, 2147483648
        %v1881 = vxor.u32 %v1844, 2147483648
        %v1882 = vxor.u32 %v1848, 2147483648
        %v1883 = vxor.u32 %v1850, 2147483648
        %v1884 = vxor.u32 %v1854, 2147483648
        %v1885 = vxor.u32 %v1856, 2147483648
        %v1886 = vxor.u32 %v1860, 2147483648
        %v1887 = vxor.u32 %v1862, 2147483648
        %v1888 = vxor.u32 %v1866, 2147483648
        %v1889 = vxor.u32 %v1868, 2147483648
        %v1890 = vxor.u32 %v1872, 2147483648
        %v1891 = vxor.u32 %v1874, 2147483648
        %v1892 = vmul.f32 %v1876, 1.442695
        %v1893 = vpow.pop %v1892
        %v1894 = vmul.f32 %v1877, 1.442695
        %v1895 = vpow.pop %v1894
        %v1896 = vmul.f32 %v1878, 1.442695
        %v1897 = vpow.pop %v1896
        %v1898 = vmul.f32 %v1879, 1.442695
        %v1899 = vpow.pop %v1898
        %v1900 = vmul.f32 %v1880, 1.442695
        %v1901 = vpow.pop %v1900
        %v1902 = vmul.f32 %v1881, 1.442695
        %v1903 = vpow.pop %v1902
        %v1904 = vmul.f32 %v1882, 1.442695
        %v1905 = vpow.pop %v1904
        %v1906 = vmul.f32 %v1883, 1.442695
        %v1907 = vpow.pop %v1906
        %v1908 = vmul.f32 %v1884, 1.442695
        %v1909 = vpow.pop %v1908
        %v1910 = vmul.f32 %v1885, 1.442695
        %v1911 = vpow.pop %v1910
        %v1912 = vmul.f32 %v1886, 1.442695
        %v1913 = vpow.pop %v1912
        %v1914 = vmul.f32 %v1887, 1.442695
        %v1915 = vpow.pop %v1914
        %v1916 = vmul.f32 %v1888, 1.442695
        %v1917 = vpow.pop %v1916
        %v1918 = vmul.f32 %v1889, 1.442695
        %v1919 = vpow.pop %v1918
        %v1920 = vmul.f32 %v1890, 1.442695
        %v1921 = vpow.pop %v1920
        %v1922 = vmul.f32 %v1891, 1.442695
        %v1923 = vpow.pop %v1922
        %v1924 = vadd.f32 %v1893, 1.0
        %v1925 = vadd.f32 %v1895, 1.0
        %v1926 = vadd.f32 %v1897, 1.0
        %v1927 = vadd.f32 %v1899, 1.0
        %v1928 = vadd.f32 %v1901, 1.0
        %v1929 = vadd.f32 %v1903, 1.0
        %v1930 = vadd.f32 %v1905, 1.0
        %v1931 = vadd.f32 %v1907, 1.0
        %v1932 = vadd.f32 %v1909, 1.0
        %v1933 = vadd.f32 %v1911, 1.0
        %v1934 = vadd.f32 %v1913, 1.0
        %v1935 = vadd.f32 %v1915, 1.0
        %v1936 = vadd.f32 %v1917, 1.0
        %v1937 = vadd.f32 %v1919, 1.0
        %v1938 = vadd.f32 %v1921, 1.0
        %v1939 = vadd.f32 %v1923, 1.0
        %v1940 = vrcp.pop %v1924
        %v1941 = vmul.f32 1.0, %v1940
        %v1942 = vrcp.pop %v1925
        %v1943 = vmul.f32 1.0, %v1942
        %v1944 = vrcp.pop %v1926
        %v1945 = vmul.f32 1.0, %v1944
        %v1946 = vrcp.pop %v1927
        %v1947 = vmul.f32 1.0, %v1946
        %v1948 = vrcp.pop %v1928
        %v1949 = vmul.f32 1.0, %v1948
        %v1950 = vrcp.pop %v1929
        %v1951 = vmul.f32 1.0, %v1950
        %v1952 = vrcp.pop %v1930
        %v1953 = vmul.f32 1.0, %v1952
        %v1954 = vrcp.pop %v1931
        %v1955 = vmul.f32 1.0, %v1954
        %v1956 = vrcp.pop %v1932
        %v1957 = vmul.f32 1.0, %v1956
        %v1958 = vrcp.pop %v1933
        %v1959 = vmul.f32 1.0, %v1958
        %v1960 = vrcp.pop %v1934
        %v1961 = vmul.f32 1.0, %v1960
        %v1962 = vrcp.pop %v1935
        %v1963 = vmul.f32 1.0, %v1962
        %v1964 = vrcp.pop %v1936
        %v1965 = vmul.f32 1.0, %v1964
        %v1966 = vrcp.pop %v1937
        %v1967 = vmul.f32 1.0, %v1966
        %v1968 = vrcp.pop %v1938
        %v1969 = vmul.f32 1.0, %v1968
        %v1970 = vrcp.pop %v1939
        %v1971 = vmul.f32 1.0, %v1970
        %s1972 = scalar_lea.vmem %s271, 128 [#allocation2]
        %1973 = vst [vmem:[%s1972] sm:$0xff] %v1941
        %1974 = vst [vmem:[%s1972 + $0x8] sm:$0xff] %v1943
        %1975 = vst [vmem:[%s1972 + $0x10] sm:$0xff] %v1945
        %1976 = vst [vmem:[%s1972 + $0x18] sm:$0xff] %v1947
        %1977 = vst [vmem:[%s1972 + $0x20] sm:$0xff] %v1949
        %1978 = vst [vmem:[%s1972 + $0x28] sm:$0xff] %v1951
        %1979 = vst [vmem:[%s1972 + $0x30] sm:$0xff] %v1953
        %1980 = vst [vmem:[%s1972 + $0x38] sm:$0xff] %v1955
        %1981 = vst [vmem:[%s1972 + $0x40] sm:$0xff] %v1957
        %1982 = vst [vmem:[%s1972 + $0x48] sm:$0xff] %v1959
        %1983 = vst [vmem:[%s1972 + $0x50] sm:$0xff] %v1961
        %1984 = vst [vmem:[%s1972 + $0x58] sm:$0xff] %v1963
        %1985 = vst [vmem:[%s1972 + $0x60] sm:$0xff] %v1965
        %1986 = vst [vmem:[%s1972 + $0x68] sm:$0xff] %v1967
        %1987 = vst [vmem:[%s1972 + $0x70] sm:$0xff] %v1969
        %1988 = vst [vmem:[%s1972 + $0x78] sm:$0xff] %v1971
        %1989 = vset.pattern.permute.xlu0 8
        %1990 = vperm.xlu0 %1989, %v703
        %v1991 = vpop.permute.xlu0 %1990
        %1993 = vset.pattern.permute.xlu0 8
        %1994 = vperm.xlu0 %1993, %v704
        %v1995 = vpop.permute.xlu0 %1994
        %1997 = vset.pattern.permute.xlu0 8
        %1998 = vperm.xlu0 %1997, %v705
        %v1999 = vpop.permute.xlu0 %1998
        %2001 = vset.pattern.permute.xlu0 8
        %2002 = vperm.xlu0 %2001, %v706
        %v2003 = vpop.permute.xlu0 %2002
        %v2005 = vmul.f32 %v1991, %v629
        %v2006 = vmul.f32 %v1991, %v630
        %v2007 = vmul.f32 %v1991, %v631
        %v2008 = vmul.f32 %v1995, %v632
        %v2009 = vmul.f32 %v1995, %v633
        %v2010 = vmul.f32 %v1995, %v634
        %v2011 = vmul.f32 %v1999, %v635
        %v2012 = vmul.f32 %v1999, %v636
        %v2013 = vmul.f32 %v1999, %v637
        %v2014 = vmul.f32 %v2003, %v638
        %v2015 = vmul.f32 %v2003, %v639
        %v2016 = vmul.f32 %v2003, %v640
        %2017 = vset.pattern.permute.xlu0 9
        %2018 = vperm.xlu0 %2017, %v703
        %v2019 = vpop.permute.xlu0 %2018
        %2021 = vset.pattern.permute.xlu0 9
        %2022 = vperm.xlu0 %2021, %v704
        %v2023 = vpop.permute.xlu0 %2022
        %2025 = vset.pattern.permute.xlu0 9
        %2026 = vperm.xlu0 %2025, %v705
        %v2027 = vpop.permute.xlu0 %2026
        %2029 = vset.pattern.permute.xlu0 9
        %2030 = vperm.xlu0 %2029, %v706
        %v2031 = vpop.permute.xlu0 %2030
        %v2033 = vmul.f32 %v2019, %v560
        %v2034 = vmul.f32 %v2019, %v544
        %v2035 = vmul.f32 %v2019, %v564
        %v2036 = vmul.f32 %v2023, %v561
        %v2037 = vmul.f32 %v2023, %v545
        %v2038 = vmul.f32 %v2023, %v565
        %v2039 = vmul.f32 %v2027, %v562
        %v2040 = vmul.f32 %v2027, %v546
        %v2041 = vmul.f32 %v2027, %v566
        %v2042 = vmul.f32 %v2031, %v563
        %v2043 = vmul.f32 %v2031, %v547
        %v2044 = vmul.f32 %v2031, %v567
        %2057 = vrot.lane.b32.xlu0 %v2033, 127
        %v2058 = vpop.permute.xlu0 %2057
        %2059 = vrot.lane.b32.xlu0 %v2034, 127
        %v2060 = vpop.permute.xlu0 %2059
        %2061 = vrot.lane.b32.xlu0 %v2035, 127
        %v2062 = vpop.permute.xlu0 %2061
        %2063 = vrot.lane.b32.xlu0 %v2036, 127
        %v2064 = vpop.permute.xlu0 %2063
        %2065 = vrot.lane.b32.xlu0 %v2037, 127
        %v2066 = vpop.permute.xlu0 %2065
        %2067 = vrot.lane.b32.xlu0 %v2038, 127
        %v2068 = vpop.permute.xlu0 %2067
        %2069 = vrot.lane.b32.xlu0 %v2039, 127
        %v2070 = vpop.permute.xlu0 %2069
        %2071 = vrot.lane.b32.xlu0 %v2040, 127
        %v2072 = vpop.permute.xlu0 %2071
        %2073 = vrot.lane.b32.xlu0 %v2041, 127
        %v2074 = vpop.permute.xlu0 %2073
        %2075 = vrot.lane.b32.xlu0 %v2042, 127
        %v2076 = vpop.permute.xlu0 %2075
        %2077 = vrot.lane.b32.xlu0 %v2043, 127
        %v2078 = vpop.permute.xlu0 %2077
        %2079 = vrot.lane.b32.xlu0 %v2044, 127
        %v2080 = vpop.permute.xlu0 %2079
        %v2081 = vsel %vm807, %v2058, %v2060
        %v2082 = vsel %vm807, %v2060, %v2062
        %v2083 = vsel %vm807, %v2064, %v2066
        %v2084 = vsel %vm807, %v2066, %v2068
        %v2085 = vsel %vm807, %v2070, %v2072
        %v2086 = vsel %vm807, %v2072, %v2074
        %v2087 = vsel %vm807, %v2076, %v2078
        %v2088 = vsel %vm807, %v2078, %v2080
        %v2101 = vadd.f32 %v2005, %v2081
        %v2102 = vadd.f32 %v2006, %v2082
        %v2103 = vadd.f32 %v2007, %v2062
        %v2104 = vadd.f32 %v2008, %v2083
        %v2105 = vadd.f32 %v2009, %v2084
        %v2106 = vadd.f32 %v2010, %v2068
        %v2107 = vadd.f32 %v2011, %v2085
        %v2108 = vadd.f32 %v2012, %v2086
        %v2109 = vadd.f32 %v2013, %v2074
        %v2110 = vadd.f32 %v2014, %v2087
        %v2111 = vadd.f32 %v2015, %v2088
        %v2112 = vadd.f32 %v2016, %v2080
        %2113 = vset.pattern.permute.xlu0 10
        %2114 = vperm.xlu0 %2113, %v703
        %v2115 = vpop.permute.xlu0 %2114
        %2117 = vset.pattern.permute.xlu0 10
        %2118 = vperm.xlu0 %2117, %v704
        %v2119 = vpop.permute.xlu0 %2118
        %2121 = vset.pattern.permute.xlu0 10
        %2122 = vperm.xlu0 %2121, %v705
        %v2123 = vpop.permute.xlu0 %2122
        %2125 = vset.pattern.permute.xlu0 10
        %2126 = vperm.xlu0 %2125, %v706
        %v2127 = vpop.permute.xlu0 %2126
        %v2129 = vmul.f32 %v2115, %v670
        %v2130 = vmul.f32 %v2115, %v671
        %v2131 = vmul.f32 %v2115, %v672
        %v2132 = vmul.f32 %v2119, %v673
        %v2133 = vmul.f32 %v2119, %v674
        %v2134 = vmul.f32 %v2119, %v675
        %v2135 = vmul.f32 %v2123, %v676
        %v2136 = vmul.f32 %v2123, %v677
        %v2137 = vmul.f32 %v2123, %v678
        %v2138 = vmul.f32 %v2127, %v679
        %v2139 = vmul.f32 %v2127, %v680
        %v2140 = vmul.f32 %v2127, %v681
        %2153 = vrot.lane.b32.xlu0 %v2129, 112
        %v2154 = vpop.permute.xlu0 %2153
        %2155 = vrot.lane.b32.xlu0 %v2130, 112
        %v2156 = vpop.permute.xlu0 %2155
        %2157 = vrot.lane.b32.xlu0 %v2131, 112
        %v2158 = vpop.permute.xlu0 %2157
        %2159 = vrot.lane.b32.xlu0 %v2132, 112
        %v2160 = vpop.permute.xlu0 %2159
        %2161 = vrot.lane.b32.xlu0 %v2133, 112
        %v2162 = vpop.permute.xlu0 %2161
        %2163 = vrot.lane.b32.xlu0 %v2134, 112
        %v2164 = vpop.permute.xlu0 %2163
        %2165 = vrot.lane.b32.xlu0 %v2135, 112
        %v2166 = vpop.permute.xlu0 %2165
        %2167 = vrot.lane.b32.xlu0 %v2136, 112
        %v2168 = vpop.permute.xlu0 %2167
        %2169 = vrot.lane.b32.xlu0 %v2137, 112
        %v2170 = vpop.permute.xlu0 %2169
        %2171 = vrot.lane.b32.xlu0 %v2138, 112
        %v2172 = vpop.permute.xlu0 %2171
        %2173 = vrot.lane.b32.xlu0 %v2139, 112
        %v2174 = vpop.permute.xlu0 %2173
        %2175 = vrot.lane.b32.xlu0 %v2140, 112
        %v2176 = vpop.permute.xlu0 %2175
        %v2177 = vsel %vm896, %v2154, %v2156
        %v2178 = vsel %vm896, %v2156, %v2158
        %v2179 = vsel %vm896, %v2160, %v2162
        %v2180 = vsel %vm896, %v2162, %v2164
        %v2181 = vsel %vm896, %v2166, %v2168
        %v2182 = vsel %vm896, %v2168, %v2170
        %v2183 = vsel %vm896, %v2172, %v2174
        %v2184 = vsel %vm896, %v2174, %v2176
        %v2197 = vadd.f32 %v2101, %v2177
        %v2198 = vadd.f32 %v2102, %v2178
        %v2199 = vadd.f32 %v2103, %v2158
        %v2200 = vadd.f32 %v2104, %v2179
        %v2201 = vadd.f32 %v2105, %v2180
        %v2202 = vadd.f32 %v2106, %v2164
        %v2203 = vadd.f32 %v2107, %v2181
        %v2204 = vadd.f32 %v2108, %v2182
        %v2205 = vadd.f32 %v2109, %v2170
        %v2206 = vadd.f32 %v2110, %v2183
        %v2207 = vadd.f32 %v2111, %v2184
        %v2208 = vadd.f32 %v2112, %v2176
        %2209 = vset.pattern.permute.xlu0 11
        %2210 = vperm.xlu0 %2209, %v703
        %v2211 = vpop.permute.xlu0 %2210
        %2213 = vset.pattern.permute.xlu0 11
        %2214 = vperm.xlu0 %2213, %v704
        %v2215 = vpop.permute.xlu0 %2214
        %2217 = vset.pattern.permute.xlu0 11
        %2218 = vperm.xlu0 %2217, %v705
        %v2219 = vpop.permute.xlu0 %2218
        %2221 = vset.pattern.permute.xlu0 11
        %2222 = vperm.xlu0 %2221, %v706
        %v2223 = vpop.permute.xlu0 %2222
        %v2225 = vmul.f32 %v2211, %v560
        %v2226 = vmul.f32 %v2211, %v544
        %v2227 = vmul.f32 %v2211, %v564
        %v2228 = vmul.f32 %v2215, %v561
        %v2229 = vmul.f32 %v2215, %v545
        %v2230 = vmul.f32 %v2215, %v565
        %v2231 = vmul.f32 %v2219, %v562
        %v2232 = vmul.f32 %v2219, %v546
        %v2233 = vmul.f32 %v2219, %v566
        %v2234 = vmul.f32 %v2223, %v563
        %v2235 = vmul.f32 %v2223, %v547
        %v2236 = vmul.f32 %v2223, %v567
        %2249 = vrot.lane.b32.xlu0 %v2225, 111
        %v2250 = vpop.permute.xlu0 %2249
        %2251 = vrot.lane.b32.xlu0 %v2226, 111
        %v2252 = vpop.permute.xlu0 %2251
        %2253 = vrot.lane.b32.xlu0 %v2227, 111
        %v2254 = vpop.permute.xlu0 %2253
        %2255 = vrot.lane.b32.xlu0 %v2228, 111
        %v2256 = vpop.permute.xlu0 %2255
        %2257 = vrot.lane.b32.xlu0 %v2229, 111
        %v2258 = vpop.permute.xlu0 %2257
        %2259 = vrot.lane.b32.xlu0 %v2230, 111
        %v2260 = vpop.permute.xlu0 %2259
        %2261 = vrot.lane.b32.xlu0 %v2231, 111
        %v2262 = vpop.permute.xlu0 %2261
        %2263 = vrot.lane.b32.xlu0 %v2232, 111
        %v2264 = vpop.permute.xlu0 %2263
        %2265 = vrot.lane.b32.xlu0 %v2233, 111
        %v2266 = vpop.permute.xlu0 %2265
        %2267 = vrot.lane.b32.xlu0 %v2234, 111
        %v2268 = vpop.permute.xlu0 %2267
        %2269 = vrot.lane.b32.xlu0 %v2235, 111
        %v2270 = vpop.permute.xlu0 %2269
        %2271 = vrot.lane.b32.xlu0 %v2236, 111
        %v2272 = vpop.permute.xlu0 %2271
        %v2273 = vsel %vm985, %v2250, %v2252
        %v2274 = vsel %vm985, %v2252, %v2254
        %v2275 = vsel %vm985, %v2256, %v2258
        %v2276 = vsel %vm985, %v2258, %v2260
        %v2277 = vsel %vm985, %v2262, %v2264
        %v2278 = vsel %vm985, %v2264, %v2266
        %v2279 = vsel %vm985, %v2268, %v2270
        %v2280 = vsel %vm985, %v2270, %v2272
        %v2293 = vadd.f32 %v2197, %v2273
        %v2294 = vadd.f32 %v2198, %v2274
        %v2295 = vadd.f32 %v2199, %v2254
        %v2296 = vadd.f32 %v2200, %v2275
        %v2297 = vadd.f32 %v2201, %v2276
        %v2298 = vadd.f32 %v2202, %v2260
        %v2299 = vadd.f32 %v2203, %v2277
        %v2300 = vadd.f32 %v2204, %v2278
        %v2301 = vadd.f32 %v2205, %v2266
        %v2302 = vadd.f32 %v2206, %v2279
        %v2303 = vadd.f32 %v2207, %v2280
        %v2304 = vadd.f32 %v2208, %v2272
        %v2305 = vadd.f32 %v2293, %v1012
        %v2306 = vadd.f32 %v2294, %v1012
        %v2307 = vadd.f32 %v2295, %v1012
        %v2308 = vadd.f32 %v2296, %v1016
        %v2309 = vadd.f32 %v2297, %v1016
        %v2310 = vadd.f32 %v2298, %v1016
        %v2311 = vadd.f32 %v2299, %v1020
        %v2312 = vadd.f32 %v2300, %v1020
        %v2313 = vadd.f32 %v2301, %v1020
        %v2314 = vadd.f32 %v2302, %v1024
        %v2315 = vadd.f32 %v2303, %v1024
        %v2316 = vadd.f32 %v2304, %v1024
        %vm2317 = vcmp.ge.f32.partialorder %v2305, 0.0
        %vm2318 = vcmp.ge.f32.partialorder %v2306, 0.0
        %vm2319 = vcmp.ge.f32.partialorder %v2307, 0.0
        %vm2320 = vcmp.ge.f32.partialorder %v2308, 0.0
        %vm2321 = vcmp.ge.f32.partialorder %v2309, 0.0
        %vm2322 = vcmp.ge.f32.partialorder %v2310, 0.0
        %vm2323 = vcmp.ge.f32.partialorder %v2311, 0.0
        %vm2324 = vcmp.ge.f32.partialorder %v2312, 0.0
        %vm2325 = vcmp.ge.f32.partialorder %v2313, 0.0
        %vm2326 = vcmp.ge.f32.partialorder %v2314, 0.0
        %vm2327 = vcmp.ge.f32.partialorder %v2315, 0.0
        %vm2328 = vcmp.ge.f32.partialorder %v2316, 0.0
        %v2329 = vmul.f32 %v2305, 0.01
        %v2330 = vmul.f32 %v2306, 0.01
        %v2331 = vmul.f32 %v2307, 0.01
        %v2332 = vmul.f32 %v2308, 0.01
        %v2333 = vmul.f32 %v2309, 0.01
        %v2334 = vmul.f32 %v2310, 0.01
        %v2335 = vmul.f32 %v2311, 0.01
        %v2336 = vmul.f32 %v2312, 0.01
        %v2337 = vmul.f32 %v2313, 0.01
        %v2338 = vmul.f32 %v2314, 0.01
        %v2339 = vmul.f32 %v2315, 0.01
        %v2340 = vmul.f32 %v2316, 0.01
        %v2341 = vsel %vm2317, %v2305, %v2329
        %v2342 = vsel %vm2318, %v2306, %v2330
        %v2343 = vsel %vm2319, %v2307, %v2331
        %v2344 = vsel %vm2320, %v2308, %v2332
        %v2345 = vsel %vm2321, %v2309, %v2333
        %v2346 = vsel %vm2322, %v2310, %v2334
        %v2347 = vsel %vm2323, %v2311, %v2335
        %v2348 = vsel %vm2324, %v2312, %v2336
        %v2349 = vsel %vm2325, %v2313, %v2337
        %v2350 = vsel %vm2326, %v2314, %v2338
        %v2351 = vsel %vm2327, %v2315, %v2339
        %v2352 = vsel %vm2328, %v2316, %v2340
        %2365 = vrot.lane.b32.xlu0 %v2341, 112
        %v2366 = vpop.permute.xlu0 %2365
        %2367 = vrot.lane.b32.xlu0 %v2342, 112
        %v2368 = vpop.permute.xlu0 %2367
        %2369 = vrot.lane.b32.xlu0 %v2343, 112
        %v2370 = vpop.permute.xlu0 %2369
        %2371 = vrot.lane.b32.xlu0 %v2344, 112
        %v2372 = vpop.permute.xlu0 %2371
        %2373 = vrot.lane.b32.xlu0 %v2345, 112
        %v2374 = vpop.permute.xlu0 %2373
        %2375 = vrot.lane.b32.xlu0 %v2346, 112
        %v2376 = vpop.permute.xlu0 %2375
        %2377 = vrot.lane.b32.xlu0 %v2347, 112
        %v2378 = vpop.permute.xlu0 %2377
        %2379 = vrot.lane.b32.xlu0 %v2348, 112
        %v2380 = vpop.permute.xlu0 %2379
        %2381 = vrot.lane.b32.xlu0 %v2349, 112
        %v2382 = vpop.permute.xlu0 %2381
        %2383 = vrot.lane.b32.xlu0 %v2350, 112
        %v2384 = vpop.permute.xlu0 %2383
        %2385 = vrot.lane.b32.xlu0 %v2351, 112
        %v2386 = vpop.permute.xlu0 %2385
        %2387 = vrot.lane.b32.xlu0 %v2352, 112
        %v2388 = vpop.permute.xlu0 %2387
        %v2389 = vsel %vm896, %v2366, %v2368
        %v2390 = vsel %vm896, %v2368, %v2370
        %v2391 = vsel %vm896, %v2372, %v2374
        %v2392 = vsel %vm896, %v2374, %v2376
        %v2393 = vsel %vm896, %v2378, %v2380
        %v2394 = vsel %vm896, %v2380, %v2382
        %v2395 = vsel %vm896, %v2384, %v2386
        %v2396 = vsel %vm896, %v2386, %v2388
        %2405 = vmatprep.subr.mxu0 %v2390
        %2406 = vmatpush1.msra.mxu0 %v2389
        %2407 = vmatprep.subr.mxu0 %v2392
        %2408 = vmatpush1.msra.mxu0 %v2391
        %2409 = vmatprep.subr.mxu0 %v2394
        %2410 = vmatpush1.msra.mxu0 %v2393
        %2411 = vmatprep.subr.mxu0 %v2396
        %2412 = vmatpush1.msra.mxu0 %v2395
        %2413 = vmatprep.subr.mxu0 0.0
        %2414 = vmatpush1.msra.mxu0 0.0
        %2415 = vmatprep.subr.mxu0 0.0
        %2416 = vmatpush1.msra.mxu0 0.0
        %2417 = vmatprep.subr.mxu0 0.0
        %2418 = vmatpush1.msra.mxu0 0.0
        %2419 = vmatprep.subr.mxu0 0.0
        %2420 = vmatpush1.msra.mxu0 0.0
        %2421 = vmatprep.subr.mxu0 0.0
        %2422 = vmatpush1.msra.mxu0 0.0
        %2423 = vmatprep.subr.mxu0 0.0
        %2424 = vmatpush1.msra.mxu0 0.0
        %2425 = vmatprep.subr.mxu0 0.0
        %2426 = vmatpush1.msra.mxu0 0.0
        %2427 = vmatprep.subr.mxu0 0.0
        %2428 = vmatpush1.msra.mxu0 0.0
        %2429 = vmatprep.subr.mxu0 0.0
        %2430 = vmatpush1.msra.mxu0 0.0
        %2431 = vmatprep.subr.mxu0 0.0
        %2432 = vmatpush1.msra.mxu0 0.0
        %2433 = vmatprep.subr.mxu0 0.0
        %2434 = vmatpush1.msra.mxu0 0.0
        %2435 = vmatprep.subr.mxu0 0.0
        %2436 = vmatpush1.msra.mxu0 0.0
        %2437 = vmatprep.subr.mxu0 0.0
        %2438 = vmatpush1.msra.mxu0 0.0
        %2439 = vmatprep.subr.mxu0 0.0
        %2440 = vmatpush1.msra.mxu0 0.0
        %2441 = vmatprep.subr.mxu0 0.0
        %2442 = vmatpush1.msra.mxu0 0.0
        %2443 = vmatprep.subr.mxu0 0.0
        %2444 = vmatpush1.msra.mxu0 0.0
        %2445 = vmatprep.subr.mxu0 0.0
        %2446 = vmatpush1.msra.mxu0 0.0
        %2447 = vmatprep.subr.mxu0 0.0
        %2448 = vmatpush1.msra.mxu0 0.0
        %2449 = vmatprep.subr.mxu0 0.0
        %2450 = vmatpush1.msra.mxu0 0.0
        %2451 = vmatprep.subr.mxu0 0.0
        %2452 = vmatpush1.msra.mxu0 0.0
        %2453 = vmatprep.subr.mxu0 0.0
        %2454 = vmatpush1.msra.mxu0 0.0
        %2455 = vmatprep.subr.mxu0 0.0
        %2456 = vmatpush1.msra.mxu0 0.0
        %2457 = vmatprep.subr.mxu0 0.0
        %2458 = vmatpush1.msra.mxu0 0.0
        %2459 = vmatprep.subr.mxu0 0.0
        %2460 = vmatpush1.msra.mxu0 0.0
        %2461 = vmatprep.subr.mxu0 0.0
        %2462 = vmatpush1.msra.mxu0 0.0
        %2463 = vmatprep.subr.mxu0 0.0
        %2464 = vmatpush1.msra.mxu0 0.0
        %2465 = vmatprep.subr.mxu0 0.0
        %2466 = vmatpush1.msra.mxu0 0.0
        %2467 = vmatprep.subr.mxu0 0.0
        %2468 = vmatpush1.msra.mxu0 0.0
        %2469 = vmatprep.mubr.f32.mxu0 0.0
        %2470 = vmatmul.mubr.f32.gmra.mrb[0].mxu0 %v1099
        %v2471 = vpop.f32.mrb[0].mxu0
        %v2472 = vadd.f32 %v1061, %v2471
        %v2473 = vpop.f32.mrb[0].mxu0
        %v2474 = vadd.f32 %v1061, %v2473
        %2475 = vmatprep.mubr.f32.mxu0 0.0
        %2476 = vmatmul.mubr.f32.gmra.mrb[0].mxu0 %v1102
        %v2477 = vpop.f32.mrb[0].mxu0
        %v2478 = vadd.f32 %v1066, %v2477
        %v2479 = vpop.f32.mrb[0].mxu0
        %v2480 = vadd.f32 %v1066, %v2479
        %2481 = vmatprep.mubr.f32.mxu0 0.0
        %2482 = vmatmul.mubr.f32.gmra.mrb[0].mxu0 %v1105
        %v2483 = vpop.f32.mrb[0].mxu0
        %v2484 = vadd.f32 %v1071, %v2483
        %v2485 = vpop.f32.mrb[0].mxu0
        %v2486 = vadd.f32 %v1071, %v2485
        %2487 = vmatprep.mubr.f32.mxu0 0.0
        %2488 = vmatmul.mubr.f32.gmra.mrb[0].mxu0 %v1108
        %v2489 = vpop.f32.mrb[0].mxu0
        %v2490 = vadd.f32 %v1076, %v2489
        %v2491 = vpop.f32.mrb[0].mxu0
        %v2492 = vadd.f32 %v1076, %v2491
        %2493 = vmatprep.mubr.f32.mxu0 0.0
        %2494 = vmatmul.mubr.f32.gmra.mrb[0].mxu0 %v1111
        %v2495 = vpop.f32.mrb[0].mxu0
        %v2496 = vadd.f32 %v1081, %v2495
        %v2497 = vpop.f32.mrb[0].mxu0
        %v2498 = vadd.f32 %v1081, %v2497
        %2499 = vmatprep.mubr.f32.mxu0 0.0
        %2500 = vmatmul.mubr.f32.gmra.mrb[0].mxu0 %v1114
        %v2501 = vpop.f32.mrb[0].mxu0
        %v2502 = vadd.f32 %v1086, %v2501
        %v2503 = vpop.f32.mrb[0].mxu0
        %v2504 = vadd.f32 %v1086, %v2503
        %2505 = vmatprep.mubr.f32.mxu0 0.0
        %2506 = vmatmul.mubr.f32.gmra.mrb[0].mxu0 %v1117
        %v2507 = vpop.f32.mrb[0].mxu0
        %v2508 = vadd.f32 %v1091, %v2507
        %v2509 = vpop.f32.mrb[0].mxu0
        %v2510 = vadd.f32 %v1091, %v2509
        %2511 = vmatprep.mubr.f32.mxu0 0.0
        %2512 = vmatmul.mubr.f32.gmra.mrb[0].mxu0 %v1120
        %v2513 = vpop.f32.mrb[0].mxu0
        %v2514 = vadd.f32 %v1096, %v2513
        %v2515 = vpop.f32.mrb[0].mxu0
        %v2516 = vadd.f32 %v1096, %v2515
        %2517 = vdwg.mxu0
        %v2518 = vxor.u32 %v2472, 2147483648
        %v2519 = vxor.u32 %v2474, 2147483648
        %v2520 = vxor.u32 %v2478, 2147483648
        %v2521 = vxor.u32 %v2480, 2147483648
        %v2522 = vxor.u32 %v2484, 2147483648
        %v2523 = vxor.u32 %v2486, 2147483648
        %v2524 = vxor.u32 %v2490, 2147483648
        %v2525 = vxor.u32 %v2492, 2147483648
        %v2526 = vxor.u32 %v2496, 2147483648
        %v2527 = vxor.u32 %v2498, 2147483648
        %v2528 = vxor.u32 %v2502, 2147483648
        %v2529 = vxor.u32 %v2504, 2147483648
        %v2530 = vxor.u32 %v2508, 2147483648
        %v2531 = vxor.u32 %v2510, 2147483648
        %v2532 = vxor.u32 %v2514, 2147483648
        %v2533 = vxor.u32 %v2516, 2147483648
        %v2534 = vmul.f32 %v2518, 1.442695
        %v2535 = vpow.pop %v2534
        %v2536 = vmul.f32 %v2519, 1.442695
        %v2537 = vpow.pop %v2536
        %v2538 = vmul.f32 %v2520, 1.442695
        %v2539 = vpow.pop %v2538
        %v2540 = vmul.f32 %v2521, 1.442695
        %v2541 = vpow.pop %v2540
        %v2542 = vmul.f32 %v2522, 1.442695
        %v2543 = vpow.pop %v2542
        %v2544 = vmul.f32 %v2523, 1.442695
        %v2545 = vpow.pop %v2544
        %v2546 = vmul.f32 %v2524, 1.442695
        %v2547 = vpow.pop %v2546
        %v2548 = vmul.f32 %v2525, 1.442695
        %v2549 = vpow.pop %v2548
        %v2550 = vmul.f32 %v2526, 1.442695
        %v2551 = vpow.pop %v2550
        %v2552 = vmul.f32 %v2527, 1.442695
        %v2553 = vpow.pop %v2552
        %v2554 = vmul.f32 %v2528, 1.442695
        %v2555 = vpow.pop %v2554
        %v2556 = vmul.f32 %v2529, 1.442695
        %v2557 = vpow.pop %v2556
        %v2558 = vmul.f32 %v2530, 1.442695
        %v2559 = vpow.pop %v2558
        %v2560 = vmul.f32 %v2531, 1.442695
        %v2561 = vpow.pop %v2560
        %v2562 = vmul.f32 %v2532, 1.442695
        %v2563 = vpow.pop %v2562
        %v2564 = vmul.f32 %v2533, 1.442695
        %v2565 = vpow.pop %v2564
        %v2566 = vadd.f32 %v2535, 1.0
        %v2567 = vadd.f32 %v2537, 1.0
        %v2568 = vadd.f32 %v2539, 1.0
        %v2569 = vadd.f32 %v2541, 1.0
        %v2570 = vadd.f32 %v2543, 1.0
        %v2571 = vadd.f32 %v2545, 1.0
        %v2572 = vadd.f32 %v2547, 1.0
        %v2573 = vadd.f32 %v2549, 1.0
        %v2574 = vadd.f32 %v2551, 1.0
        %v2575 = vadd.f32 %v2553, 1.0
        %v2576 = vadd.f32 %v2555, 1.0
        %v2577 = vadd.f32 %v2557, 1.0
        %v2578 = vadd.f32 %v2559, 1.0
        %v2579 = vadd.f32 %v2561, 1.0
        %v2580 = vadd.f32 %v2563, 1.0
        %v2581 = vadd.f32 %v2565, 1.0
        %v2582 = vrcp.pop %v2566
        %v2583 = vmul.f32 1.0, %v2582
        %v2584 = vrcp.pop %v2567
        %v2585 = vmul.f32 1.0, %v2584
        %v2586 = vrcp.pop %v2568
        %v2587 = vmul.f32 1.0, %v2586
        %v2588 = vrcp.pop %v2569
        %v2589 = vmul.f32 1.0, %v2588
        %v2590 = vrcp.pop %v2570
        %v2591 = vmul.f32 1.0, %v2590
        %v2592 = vrcp.pop %v2571
        %v2593 = vmul.f32 1.0, %v2592
        %v2594 = vrcp.pop %v2572
        %v2595 = vmul.f32 1.0, %v2594
        %v2596 = vrcp.pop %v2573
        %v2597 = vmul.f32 1.0, %v2596
        %v2598 = vrcp.pop %v2574
        %v2599 = vmul.f32 1.0, %v2598
        %v2600 = vrcp.pop %v2575
        %v2601 = vmul.f32 1.0, %v2600
        %v2602 = vrcp.pop %v2576
        %v2603 = vmul.f32 1.0, %v2602
        %v2604 = vrcp.pop %v2577
        %v2605 = vmul.f32 1.0, %v2604
        %v2606 = vrcp.pop %v2578
        %v2607 = vmul.f32 1.0, %v2606
        %v2608 = vrcp.pop %v2579
        %v2609 = vmul.f32 1.0, %v2608
        %v2610 = vrcp.pop %v2580
        %v2611 = vmul.f32 1.0, %v2610
        %v2612 = vrcp.pop %v2581
        %v2613 = vmul.f32 1.0, %v2612
        %s2614 = scalar_lea.vmem %s271, 256 [#allocation2]
        %2615 = vst [vmem:[%s2614] sm:$0xff] %v2583
        %2616 = vst [vmem:[%s2614 + $0x8] sm:$0xff] %v2585
        %2617 = vst [vmem:[%s2614 + $0x10] sm:$0xff] %v2587
        %2618 = vst [vmem:[%s2614 + $0x18] sm:$0xff] %v2589
        %2619 = vst [vmem:[%s2614 + $0x20] sm:$0xff] %v2591
        %2620 = vst [vmem:[%s2614 + $0x28] sm:$0xff] %v2593
        %2621 = vst [vmem:[%s2614 + $0x30] sm:$0xff] %v2595
        %2622 = vst [vmem:[%s2614 + $0x38] sm:$0xff] %v2597
        %2623 = vst [vmem:[%s2614 + $0x40] sm:$0xff] %v2599
        %2624 = vst [vmem:[%s2614 + $0x48] sm:$0xff] %v2601
        %2625 = vst [vmem:[%s2614 + $0x50] sm:$0xff] %v2603
        %2626 = vst [vmem:[%s2614 + $0x58] sm:$0xff] %v2605
        %2627 = vst [vmem:[%s2614 + $0x60] sm:$0xff] %v2607
        %2628 = vst [vmem:[%s2614 + $0x68] sm:$0xff] %v2609
        %2629 = vst [vmem:[%s2614 + $0x70] sm:$0xff] %v2611
        %2630 = vst [vmem:[%s2614 + $0x78] sm:$0xff] %v2613
        %2631 = vset.pattern.permute.xlu0 12
        %2632 = vperm.xlu0 %2631, %v703
        %v2633 = vpop.permute.xlu0 %2632
        %2635 = vset.pattern.permute.xlu0 12
        %2636 = vperm.xlu0 %2635, %v704
        %v2637 = vpop.permute.xlu0 %2636
        %2639 = vset.pattern.permute.xlu0 12
        %2640 = vperm.xlu0 %2639, %v705
        %v2641 = vpop.permute.xlu0 %2640
        %2643 = vset.pattern.permute.xlu0 12
        %2644 = vperm.xlu0 %2643, %v706
        %v2645 = vpop.permute.xlu0 %2644
        %v2647 = vmul.f32 %v2633, %v560
        %v2648 = vmul.f32 %v2633, %v544
        %v2649 = vmul.f32 %v2633, %v564
        %v2650 = vmul.f32 %v2637, %v561
        %v2651 = vmul.f32 %v2637, %v545
        %v2652 = vmul.f32 %v2637, %v565
        %v2653 = vmul.f32 %v2641, %v562
        %v2654 = vmul.f32 %v2641, %v546
        %v2655 = vmul.f32 %v2641, %v566
        %v2656 = vmul.f32 %v2645, %v563
        %v2657 = vmul.f32 %v2645, %v547
        %v2658 = vmul.f32 %v2645, %v567
        %2659 = vset.pattern.permute.xlu0 13
        %2660 = vperm.xlu0 %2659, %v703
        %v2661 = vpop.permute.xlu0 %2660
        %2663 = vset.pattern.permute.xlu0 13
        %2664 = vperm.xlu0 %2663, %v704
        %v2665 = vpop.permute.xlu0 %2664
        %2667 = vset.pattern.permute.xlu0 13
        %2668 = vperm.xlu0 %2667, %v705
        %v2669 = vpop.permute.xlu0 %2668
        %2671 = vset.pattern.permute.xlu0 13
        %2672 = vperm.xlu0 %2671, %v706
        %v2673 = vpop.permute.xlu0 %2672
        %v2675 = vmul.f32 %v2661, %v650
        %v2676 = vmul.f32 %v2661, %v651
        %v2677 = vmul.f32 %v2661, %v652
        %v2678 = vmul.f32 %v2665, %v653
        %v2679 = vmul.f32 %v2665, %v654
        %v2680 = vmul.f32 %v2665, %v655
        %v2681 = vmul.f32 %v2669, %v656
        %v2682 = vmul.f32 %v2669, %v657
        %v2683 = vmul.f32 %v2669, %v658
        %v2684 = vmul.f32 %v2673, %v659
        %v2685 = vmul.f32 %v2673, %v660
        %v2686 = vmul.f32 %v2673, %v661
        %2699 = vrot.lane.b32.xlu0 %v2675, 127
        %v2700 = vpop.permute.xlu0 %2699
        %2701 = vrot.lane.b32.xlu0 %v2676, 127
        %v2702 = vpop.permute.xlu0 %2701
        %2703 = vrot.lane.b32.xlu0 %v2677, 127
        %v2704 = vpop.permute.xlu0 %2703
        %2705 = vrot.lane.b32.xlu0 %v2678, 127
        %v2706 = vpop.permute.xlu0 %2705
        %2707 = vrot.lane.b32.xlu0 %v2679, 127
        %v2708 = vpop.permute.xlu0 %2707
        %2709 = vrot.lane.b32.xlu0 %v2680, 127
        %v2710 = vpop.permute.xlu0 %2709
        %2711 = vrot.lane.b32.xlu0 %v2681, 127
        %v2712 = vpop.permute.xlu0 %2711
        %2713 = vrot.lane.b32.xlu0 %v2682, 127
        %v2714 = vpop.permute.xlu0 %2713
        %2715 = vrot.lane.b32.xlu0 %v2683, 127
        %v2716 = vpop.permute.xlu0 %2715
        %2717 = vrot.lane.b32.xlu0 %v2684, 127
        %v2718 = vpop.permute.xlu0 %2717
        %2719 = vrot.lane.b32.xlu0 %v2685, 127
        %v2720 = vpop.permute.xlu0 %2719
        %2721 = vrot.lane.b32.xlu0 %v2686, 127
        %v2722 = vpop.permute.xlu0 %2721
        %v2723 = vsel %vm807, %v2700, %v2702
        %v2724 = vsel %vm807, %v2702, %v2704
        %v2725 = vsel %vm807, %v2706, %v2708
        %v2726 = vsel %vm807, %v2708, %v2710
        %v2727 = vsel %vm807, %v2712, %v2714
        %v2728 = vsel %vm807, %v2714, %v2716
        %v2729 = vsel %vm807, %v2718, %v2720
        %v2730 = vsel %vm807, %v2720, %v2722
        %v2743 = vadd.f32 %v2647, %v2723
        %v2744 = vadd.f32 %v2648, %v2724
        %v2745 = vadd.f32 %v2649, %v2704
        %v2746 = vadd.f32 %v2650, %v2725
        %v2747 = vadd.f32 %v2651, %v2726
        %v2748 = vadd.f32 %v2652, %v2710
        %v2749 = vadd.f32 %v2653, %v2727
        %v2750 = vadd.f32 %v2654, %v2728
        %v2751 = vadd.f32 %v2655, %v2716
        %v2752 = vadd.f32 %v2656, %v2729
        %v2753 = vadd.f32 %v2657, %v2730
        %v2754 = vadd.f32 %v2658, %v2722
        %2755 = vset.pattern.permute.xlu0 14
        %2756 = vperm.xlu0 %2755, %v703
        %v2757 = vpop.permute.xlu0 %2756
        %2759 = vset.pattern.permute.xlu0 14
        %2760 = vperm.xlu0 %2759, %v704
        %v2761 = vpop.permute.xlu0 %2760
        %2763 = vset.pattern.permute.xlu0 14
        %2764 = vperm.xlu0 %2763, %v705
        %v2765 = vpop.permute.xlu0 %2764
        %2767 = vset.pattern.permute.xlu0 14
        %2768 = vperm.xlu0 %2767, %v706
        %v2769 = vpop.permute.xlu0 %2768
        %v2771 = vmul.f32 %v2757, %v560
        %v2772 = vmul.f32 %v2757, %v544
        %v2773 = vmul.f32 %v2757, %v564
        %v2774 = vmul.f32 %v2761, %v561
        %v2775 = vmul.f32 %v2761, %v545
        %v2776 = vmul.f32 %v2761, %v565
        %v2777 = vmul.f32 %v2765, %v562
        %v2778 = vmul.f32 %v2765, %v546
        %v2779 = vmul.f32 %v2765, %v566
        %v2780 = vmul.f32 %v2769, %v563
        %v2781 = vmul.f32 %v2769, %v547
        %v2782 = vmul.f32 %v2769, %v567
        %2795 = vrot.lane.b32.xlu0 %v2771, 112
        %v2796 = vpop.permute.xlu0 %2795
        %2797 = vrot.lane.b32.xlu0 %v2772, 112
        %v2798 = vpop.permute.xlu0 %2797
        %2799 = vrot.lane.b32.xlu0 %v2773, 112
        %v2800 = vpop.permute.xlu0 %2799
        %2801 = vrot.lane.b32.xlu0 %v2774, 112
        %v2802 = vpop.permute.xlu0 %2801
        %2803 = vrot.lane.b32.xlu0 %v2775, 112
        %v2804 = vpop.permute.xlu0 %2803
        %2805 = vrot.lane.b32.xlu0 %v2776, 112
        %v2806 = vpop.permute.xlu0 %2805
        %2807 = vrot.lane.b32.xlu0 %v2777, 112
        %v2808 = vpop.permute.xlu0 %2807
        %2809 = vrot.lane.b32.xlu0 %v2778, 112
        %v2810 = vpop.permute.xlu0 %2809
        %2811 = vrot.lane.b32.xlu0 %v2779, 112
        %v2812 = vpop.permute.xlu0 %2811
        %2813 = vrot.lane.b32.xlu0 %v2780, 112
        %v2814 = vpop.permute.xlu0 %2813
        %2815 = vrot.lane.b32.xlu0 %v2781, 112
        %v2816 = vpop.permute.xlu0 %2815
        %2817 = vrot.lane.b32.xlu0 %v2782, 112
        %v2818 = vpop.permute.xlu0 %2817
        %v2819 = vsel %vm896, %v2796, %v2798
        %v2820 = vsel %vm896, %v2798, %v2800
        %v2821 = vsel %vm896, %v2802, %v2804
        %v2822 = vsel %vm896, %v2804, %v2806
        %v2823 = vsel %vm896, %v2808, %v2810
        %v2824 = vsel %vm896, %v2810, %v2812
        %v2825 = vsel %vm896, %v2814, %v2816
        %v2826 = vsel %vm896, %v2816, %v2818
        %v2839 = vadd.f32 %v2743, %v2819
        %v2840 = vadd.f32 %v2744, %v2820
        %v2841 = vadd.f32 %v2745, %v2800
        %v2842 = vadd.f32 %v2746, %v2821
        %v2843 = vadd.f32 %v2747, %v2822
        %v2844 = vadd.f32 %v2748, %v2806
        %v2845 = vadd.f32 %v2749, %v2823
        %v2846 = vadd.f32 %v2750, %v2824
        %v2847 = vadd.f32 %v2751, %v2812
        %v2848 = vadd.f32 %v2752, %v2825
        %v2849 = vadd.f32 %v2753, %v2826
        %v2850 = vadd.f32 %v2754, %v2818
        %2851 = vset.pattern.permute.xlu0 15
        %2852 = vperm.xlu0 %2851, %v703
        %v2853 = vpop.permute.xlu0 %2852
        %2855 = vset.pattern.permute.xlu0 15
        %2856 = vperm.xlu0 %2855, %v704
        %v2857 = vpop.permute.xlu0 %2856
        %2859 = vset.pattern.permute.xlu0 15
        %2860 = vperm.xlu0 %2859, %v705
        %v2861 = vpop.permute.xlu0 %2860
        %2863 = vset.pattern.permute.xlu0 15
        %2864 = vperm.xlu0 %2863, %v706
        %v2865 = vpop.permute.xlu0 %2864
        %v2867 = vmul.f32 %v2853, %v691
        %v2868 = vmul.f32 %v2853, %v692
        %v2869 = vmul.f32 %v2853, %v693
        %v2870 = vmul.f32 %v2857, %v694
        %v2871 = vmul.f32 %v2857, %v695
        %v2872 = vmul.f32 %v2857, %v696
        %v2873 = vmul.f32 %v2861, %v697
        %v2874 = vmul.f32 %v2861, %v698
        %v2875 = vmul.f32 %v2861, %v699
        %v2876 = vmul.f32 %v2865, %v700
        %v2877 = vmul.f32 %v2865, %v701
        %v2878 = vmul.f32 %v2865, %v702
        %2891 = vrot.lane.b32.xlu0 %v2867, 111
        %v2892 = vpop.permute.xlu0 %2891
        %2893 = vrot.lane.b32.xlu0 %v2868, 111
        %v2894 = vpop.permute.xlu0 %2893
        %2895 = vrot.lane.b32.xlu0 %v2869, 111
        %v2896 = vpop.permute.xlu0 %2895
        %2897 = vrot.lane.b32.xlu0 %v2870, 111
        %v2898 = vpop.permute.xlu0 %2897
        %2899 = vrot.lane.b32.xlu0 %v2871, 111
        %v2900 = vpop.permute.xlu0 %2899
        %2901 = vrot.lane.b32.xlu0 %v2872, 111
        %v2902 = vpop.permute.xlu0 %2901
        %2903 = vrot.lane.b32.xlu0 %v2873, 111
        %v2904 = vpop.permute.xlu0 %2903
        %2905 = vrot.lane.b32.xlu0 %v2874, 111
        %v2906 = vpop.permute.xlu0 %2905
        %2907 = vrot.lane.b32.xlu0 %v2875, 111
        %v2908 = vpop.permute.xlu0 %2907
        %2909 = vrot.lane.b32.xlu0 %v2876, 111
        %v2910 = vpop.permute.xlu0 %2909
        %2911 = vrot.lane.b32.xlu0 %v2877, 111
        %v2912 = vpop.permute.xlu0 %2911
        %2913 = vrot.lane.b32.xlu0 %v2878, 111
        %v2914 = vpop.permute.xlu0 %2913
        %v2915 = vsel %vm985, %v2892, %v2894
        %v2916 = vsel %vm985, %v2894, %v2896
        %v2917 = vsel %vm985, %v2898, %v2900
        %v2918 = vsel %vm985, %v2900, %v2902
        %v2919 = vsel %vm985, %v2904, %v2906
        %v2920 = vsel %vm985, %v2906, %v2908
        %v2921 = vsel %vm985, %v2910, %v2912
        %v2922 = vsel %vm985, %v2912, %v2914
        %v2935 = vadd.f32 %v2839, %v2915
        %v2936 = vadd.f32 %v2840, %v2916
        %v2937 = vadd.f32 %v2841, %v2896
        %v2938 = vadd.f32 %v2842, %v2917
        %v2939 = vadd.f32 %v2843, %v2918
        %v2940 = vadd.f32 %v2844, %v2902
        %v2941 = vadd.f32 %v2845, %v2919
        %v2942 = vadd.f32 %v2846, %v2920
        %v2943 = vadd.f32 %v2847, %v2908
        %v2944 = vadd.f32 %v2848, %v2921
        %v2945 = vadd.f32 %v2849, %v2922
        %v2946 = vadd.f32 %v2850, %v2914
        %v2947 = vadd.f32 %v2935, %v1012
        %v2948 = vadd.f32 %v2936, %v1012
        %v2949 = vadd.f32 %v2937, %v1012
        %v2950 = vadd.f32 %v2938, %v1016
        %v2951 = vadd.f32 %v2939, %v1016
        %v2952 = vadd.f32 %v2940, %v1016
        %v2953 = vadd.f32 %v2941, %v1020
        %v2954 = vadd.f32 %v2942, %v1020
        %v2955 = vadd.f32 %v2943, %v1020
        %v2956 = vadd.f32 %v2944, %v1024
        %v2957 = vadd.f32 %v2945, %v1024
        %v2958 = vadd.f32 %v2946, %v1024
        %vm2959 = vcmp.ge.f32.partialorder %v2947, 0.0
        %vm2960 = vcmp.ge.f32.partialorder %v2948, 0.0
        %vm2961 = vcmp.ge.f32.partialorder %v2949, 0.0
        %vm2962 = vcmp.ge.f32.partialorder %v2950, 0.0
        %vm2963 = vcmp.ge.f32.partialorder %v2951, 0.0
        %vm2964 = vcmp.ge.f32.partialorder %v2952, 0.0
        %vm2965 = vcmp.ge.f32.partialorder %v2953, 0.0
        %vm2966 = vcmp.ge.f32.partialorder %v2954, 0.0
        %vm2967 = vcmp.ge.f32.partialorder %v2955, 0.0
        %vm2968 = vcmp.ge.f32.partialorder %v2956, 0.0
        %vm2969 = vcmp.ge.f32.partialorder %v2957, 0.0
        %vm2970 = vcmp.ge.f32.partialorder %v2958, 0.0
        %v2971 = vmul.f32 %v2947, 0.01
        %v2972 = vmul.f32 %v2948, 0.01
        %v2973 = vmul.f32 %v2949, 0.01
        %v2974 = vmul.f32 %v2950, 0.01
        %v2975 = vmul.f32 %v2951, 0.01
        %v2976 = vmul.f32 %v2952, 0.01
        %v2977 = vmul.f32 %v2953, 0.01
        %v2978 = vmul.f32 %v2954, 0.01
        %v2979 = vmul.f32 %v2955, 0.01
        %v2980 = vmul.f32 %v2956, 0.01
        %v2981 = vmul.f32 %v2957, 0.01
        %v2982 = vmul.f32 %v2958, 0.01
        %v2983 = vsel %vm2959, %v2947, %v2971
        %v2984 = vsel %vm2960, %v2948, %v2972
        %v2985 = vsel %vm2961, %v2949, %v2973
        %v2986 = vsel %vm2962, %v2950, %v2974
        %v2987 = vsel %vm2963, %v2951, %v2975
        %v2988 = vsel %vm2964, %v2952, %v2976
        %v2989 = vsel %vm2965, %v2953, %v2977
        %v2990 = vsel %vm2966, %v2954, %v2978
        %v2991 = vsel %vm2967, %v2955, %v2979
        %v2992 = vsel %vm2968, %v2956, %v2980
        %v2993 = vsel %vm2969, %v2957, %v2981
        %v2994 = vsel %vm2970, %v2958, %v2982
        %3007 = vrot.lane.b32.xlu0 %v2983, 111
        %v3008 = vpop.permute.xlu0 %3007
        %3009 = vrot.lane.b32.xlu0 %v2984, 111
        %v3010 = vpop.permute.xlu0 %3009
        %3011 = vrot.lane.b32.xlu0 %v2985, 111
        %v3012 = vpop.permute.xlu0 %3011
        %3013 = vrot.lane.b32.xlu0 %v2986, 111
        %v3014 = vpop.permute.xlu0 %3013
        %3015 = vrot.lane.b32.xlu0 %v2987, 111
        %v3016 = vpop.permute.xlu0 %3015
        %3017 = vrot.lane.b32.xlu0 %v2988, 111
        %v3018 = vpop.permute.xlu0 %3017
        %3019 = vrot.lane.b32.xlu0 %v2989, 111
        %v3020 = vpop.permute.xlu0 %3019
        %3021 = vrot.lane.b32.xlu0 %v2990, 111
        %v3022 = vpop.permute.xlu0 %3021
        %3023 = vrot.lane.b32.xlu0 %v2991, 111
        %v3024 = vpop.permute.xlu0 %3023
        %3025 = vrot.lane.b32.xlu0 %v2992, 111
        %v3026 = vpop.permute.xlu0 %3025
        %3027 = vrot.lane.b32.xlu0 %v2993, 111
        %v3028 = vpop.permute.xlu0 %3027
        %3029 = vrot.lane.b32.xlu0 %v2994, 111
        %v3030 = vpop.permute.xlu0 %3029
        %v3031 = vsel %vm985, %v3008, %v3010
        %v3032 = vsel %vm985, %v3010, %v3012
        %v3033 = vsel %vm985, %v3014, %v3016
        %v3034 = vsel %vm985, %v3016, %v3018
        %v3035 = vsel %vm985, %v3020, %v3022
        %v3036 = vsel %vm985, %v3022, %v3024
        %v3037 = vsel %vm985, %v3026, %v3028
        %v3038 = vsel %vm985, %v3028, %v3030
        %3047 = vmatprep.subr.mxu0 %v3032
        %3048 = vmatpush1.msra.mxu0 %v3031
        %3049 = vmatprep.subr.mxu0 %v3034
        %3050 = vmatpush1.msra.mxu0 %v3033
        %3051 = vmatprep.subr.mxu0 %v3036
        %3052 = vmatpush1.msra.mxu0 %v3035
        %3053 = vmatprep.subr.mxu0 %v3038
        %3054 = vmatpush1.msra.mxu0 %v3037
        %3055 = vmatprep.subr.mxu0 0.0
        %3056 = vmatpush1.msra.mxu0 0.0
        %3057 = vmatprep.subr.mxu0 0.0
        %3058 = vmatpush1.msra.mxu0 0.0
        %3059 = vmatprep.subr.mxu0 0.0
        %3060 = vmatpush1.msra.mxu0 0.0
        %3061 = vmatprep.subr.mxu0 0.0
        %3062 = vmatpush1.msra.mxu0 0.0
        %3063 = vmatprep.subr.mxu0 0.0
        %3064 = vmatpush1.msra.mxu0 0.0
        %3065 = vmatprep.subr.mxu0 0.0
        %3066 = vmatpush1.msra.mxu0 0.0
        %3067 = vmatprep.subr.mxu0 0.0
        %3068 = vmatpush1.msra.mxu0 0.0
        %3069 = vmatprep.subr.mxu0 0.0
        %3070 = vmatpush1.msra.mxu0 0.0
        %3071 = vmatprep.subr.mxu0 0.0
        %3072 = vmatpush1.msra.mxu0 0.0
        %3073 = vmatprep.subr.mxu0 0.0
        %3074 = vmatpush1.msra.mxu0 0.0
        %3075 = vmatprep.subr.mxu0 0.0
        %3076 = vmatpush1.msra.mxu0 0.0
        %3077 = vmatprep.subr.mxu0 0.0
        %3078 = vmatpush1.msra.mxu0 0.0
        %3079 = vmatprep.subr.mxu0 0.0
        %3080 = vmatpush1.msra.mxu0 0.0
        %3081 = vmatprep.subr.mxu0 0.0
        %3082 = vmatpush1.msra.mxu0 0.0
        %3083 = vmatprep.subr.mxu0 0.0
        %3084 = vmatpush1.msra.mxu0 0.0
        %3085 = vmatprep.subr.mxu0 0.0
        %3086 = vmatpush1.msra.mxu0 0.0
        %3087 = vmatprep.subr.mxu0 0.0
        %3088 = vmatpush1.msra.mxu0 0.0
        %3089 = vmatprep.subr.mxu0 0.0
        %3090 = vmatpush1.msra.mxu0 0.0
        %3091 = vmatprep.subr.mxu0 0.0
        %3092 = vmatpush1.msra.mxu0 0.0
        %3093 = vmatprep.subr.mxu0 0.0
        %3094 = vmatpush1.msra.mxu0 0.0
        %3095 = vmatprep.subr.mxu0 0.0
        %3096 = vmatpush1.msra.mxu0 0.0
        %3097 = vmatprep.subr.mxu0 0.0
        %3098 = vmatpush1.msra.mxu0 0.0
        %3099 = vmatprep.subr.mxu0 0.0
        %3100 = vmatpush1.msra.mxu0 0.0
        %3101 = vmatprep.subr.mxu0 0.0
        %3102 = vmatpush1.msra.mxu0 0.0
        %3103 = vmatprep.subr.mxu0 0.0
        %3104 = vmatpush1.msra.mxu0 0.0
        %3105 = vmatprep.subr.mxu0 0.0
        %3106 = vmatpush1.msra.mxu0 0.0
        %3107 = vmatprep.subr.mxu0 0.0
        %3108 = vmatpush1.msra.mxu0 0.0
        %3109 = vmatprep.subr.mxu0 0.0
        %3110 = vmatpush1.msra.mxu0 0.0
        %3111 = vmatprep.mubr.f32.mxu0 0.0
        %3112 = vmatmul.mubr.f32.gmra.mrb[0].mxu0 %v1099
        %v3113 = vpop.f32.mrb[0].mxu0
        %v3114 = vadd.f32 %v1061, %v3113
        %v3115 = vpop.f32.mrb[0].mxu0
        %v3116 = vadd.f32 %v1061, %v3115
        %3117 = vmatprep.mubr.f32.mxu0 0.0
        %3118 = vmatmul.mubr.f32.gmra.mrb[0].mxu0 %v1102
        %v3119 = vpop.f32.mrb[0].mxu0
        %v3120 = vadd.f32 %v1066, %v3119
        %v3121 = vpop.f32.mrb[0].mxu0
        %v3122 = vadd.f32 %v1066, %v3121
        %3123 = vmatprep.mubr.f32.mxu0 0.0
        %3124 = vmatmul.mubr.f32.gmra.mrb[0].mxu0 %v1105
        %v3125 = vpop.f32.mrb[0].mxu0
        %v3126 = vadd.f32 %v1071, %v3125
        %v3127 = vpop.f32.mrb[0].mxu0
        %v3128 = vadd.f32 %v1071, %v3127
        %3129 = vmatprep.mubr.f32.mxu0 0.0
        %3130 = vmatmul.mubr.f32.gmra.mrb[0].mxu0 %v1108
        %v3131 = vpop.f32.mrb[0].mxu0
        %v3132 = vadd.f32 %v1076, %v3131
        %v3133 = vpop.f32.mrb[0].mxu0
        %v3134 = vadd.f32 %v1076, %v3133
        %3135 = vmatprep.mubr.f32.mxu0 0.0
        %3136 = vmatmul.mubr.f32.gmra.mrb[0].mxu0 %v1111
        %v3137 = vpop.f32.mrb[0].mxu0
        %v3138 = vadd.f32 %v1081, %v3137
        %v3139 = vpop.f32.mrb[0].mxu0
        %v3140 = vadd.f32 %v1081, %v3139
        %3141 = vmatprep.mubr.f32.mxu0 0.0
        %3142 = vmatmul.mubr.f32.gmra.mrb[0].mxu0 %v1114
        %v3143 = vpop.f32.mrb[0].mxu0
        %v3144 = vadd.f32 %v1086, %v3143
        %v3145 = vpop.f32.mrb[0].mxu0
        %v3146 = vadd.f32 %v1086, %v3145
        %3147 = vmatprep.mubr.f32.mxu0 0.0
        %3148 = vmatmul.mubr.f32.gmra.mrb[0].mxu0 %v1117
        %v3149 = vpop.f32.mrb[0].mxu0
        %v3150 = vadd.f32 %v1091, %v3149
        %v3151 = vpop.f32.mrb[0].mxu0
        %v3152 = vadd.f32 %v1091, %v3151
        %3153 = vmatprep.mubr.f32.mxu0 0.0
        %3154 = vmatmul.mubr.f32.gmra.mrb[0].mxu0 %v1120
        %v3155 = vpop.f32.mrb[0].mxu0
        %v3156 = vadd.f32 %v1096, %v3155
        %v3157 = vpop.f32.mrb[0].mxu0
        %v3158 = vadd.f32 %v1096, %v3157
        %3159 = vdwg.mxu0
        %v3160 = vxor.u32 %v3114, 2147483648
        %v3161 = vxor.u32 %v3116, 2147483648
        %v3162 = vxor.u32 %v3120, 2147483648
        %v3163 = vxor.u32 %v3122, 2147483648
        %v3164 = vxor.u32 %v3126, 2147483648
        %v3165 = vxor.u32 %v3128, 2147483648
        %v3166 = vxor.u32 %v3132, 2147483648
        %v3167 = vxor.u32 %v3134, 2147483648
        %v3168 = vxor.u32 %v3138, 2147483648
        %v3169 = vxor.u32 %v3140, 2147483648
        %v3170 = vxor.u32 %v3144, 2147483648
        %v3171 = vxor.u32 %v3146, 2147483648
        %v3172 = vxor.u32 %v3150, 2147483648
        %v3173 = vxor.u32 %v3152, 2147483648
        %v3174 = vxor.u32 %v3156, 2147483648
        %v3175 = vxor.u32 %v3158, 2147483648
        %v3176 = vmul.f32 %v3160, 1.442695
        %v3177 = vpow.pop %v3176
        %v3178 = vmul.f32 %v3161, 1.442695
        %v3179 = vpow.pop %v3178
        %v3180 = vmul.f32 %v3162, 1.442695
        %v3181 = vpow.pop %v3180
        %v3182 = vmul.f32 %v3163, 1.442695
        %v3183 = vpow.pop %v3182
        %v3184 = vmul.f32 %v3164, 1.442695
        %v3185 = vpow.pop %v3184
        %v3186 = vmul.f32 %v3165, 1.442695
        %v3187 = vpow.pop %v3186
        %v3188 = vmul.f32 %v3166, 1.442695
        %v3189 = vpow.pop %v3188
        %v3190 = vmul.f32 %v3167, 1.442695
        %v3191 = vpow.pop %v3190
        %v3192 = vmul.f32 %v3168, 1.442695
        %v3193 = vpow.pop %v3192
        %v3194 = vmul.f32 %v3169, 1.442695
        %v3195 = vpow.pop %v3194
        %v3196 = vmul.f32 %v3170, 1.442695
        %v3197 = vpow.pop %v3196
        %v3198 = vmul.f32 %v3171, 1.442695
        %v3199 = vpow.pop %v3198
        %v3200 = vmul.f32 %v3172, 1.442695
        %v3201 = vpow.pop %v3200
        %v3202 = vmul.f32 %v3173, 1.442695
        %v3203 = vpow.pop %v3202
        %v3204 = vmul.f32 %v3174, 1.442695
        %v3205 = vpow.pop %v3204
        %v3206 = vmul.f32 %v3175, 1.442695
        %v3207 = vpow.pop %v3206
        %v3208 = vadd.f32 %v3177, 1.0
        %v3209 = vadd.f32 %v3179, 1.0
        %v3210 = vadd.f32 %v3181, 1.0
        %v3211 = vadd.f32 %v3183, 1.0
        %v3212 = vadd.f32 %v3185, 1.0
        %v3213 = vadd.f32 %v3187, 1.0
        %v3214 = vadd.f32 %v3189, 1.0
        %v3215 = vadd.f32 %v3191, 1.0
        %v3216 = vadd.f32 %v3193, 1.0
        %v3217 = vadd.f32 %v3195, 1.0
        %v3218 = vadd.f32 %v3197, 1.0
        %v3219 = vadd.f32 %v3199, 1.0
        %v3220 = vadd.f32 %v3201, 1.0
        %v3221 = vadd.f32 %v3203, 1.0
        %v3222 = vadd.f32 %v3205, 1.0
        %v3223 = vadd.f32 %v3207, 1.0
        %v3224 = vrcp.pop %v3208
        %v3225 = vmul.f32 1.0, %v3224
        %v3226 = vrcp.pop %v3209
        %v3227 = vmul.f32 1.0, %v3226
        %v3228 = vrcp.pop %v3210
        %v3229 = vmul.f32 1.0, %v3228
        %v3230 = vrcp.pop %v3211
        %v3231 = vmul.f32 1.0, %v3230
        %v3232 = vrcp.pop %v3212
        %v3233 = vmul.f32 1.0, %v3232
        %v3234 = vrcp.pop %v3213
        %v3235 = vmul.f32 1.0, %v3234
        %v3236 = vrcp.pop %v3214
        %v3237 = vmul.f32 1.0, %v3236
        %v3238 = vrcp.pop %v3215
        %v3239 = vmul.f32 1.0, %v3238
        %v3240 = vrcp.pop %v3216
        %v3241 = vmul.f32 1.0, %v3240
        %v3242 = vrcp.pop %v3217
        %v3243 = vmul.f32 1.0, %v3242
        %v3244 = vrcp.pop %v3218
        %v3245 = vmul.f32 1.0, %v3244
        %v3246 = vrcp.pop %v3219
        %v3247 = vmul.f32 1.0, %v3246
        %v3248 = vrcp.pop %v3220
        %v3249 = vmul.f32 1.0, %v3248
        %v3250 = vrcp.pop %v3221
        %v3251 = vmul.f32 1.0, %v3250
        %v3252 = vrcp.pop %v3222
        %v3253 = vmul.f32 1.0, %v3252
        %v3254 = vrcp.pop %v3223
        %v3255 = vmul.f32 1.0, %v3254
        %s3256 = scalar_lea.vmem %s271, 384 [#allocation2]
        %3257 = vst [vmem:[%s3256] sm:$0xff] %v3225
        %3258 = vst [vmem:[%s3256 + $0x8] sm:$0xff] %v3227
        %3259 = vst [vmem:[%s3256 + $0x10] sm:$0xff] %v3229
        %3260 = vst [vmem:[%s3256 + $0x18] sm:$0xff] %v3231
        %3261 = vst [vmem:[%s3256 + $0x20] sm:$0xff] %v3233
        %3262 = vst [vmem:[%s3256 + $0x28] sm:$0xff] %v3235
        %3263 = vst [vmem:[%s3256 + $0x30] sm:$0xff] %v3237
        %3264 = vst [vmem:[%s3256 + $0x38] sm:$0xff] %v3239
        %3265 = vst [vmem:[%s3256 + $0x40] sm:$0xff] %v3241
        %3266 = vst [vmem:[%s3256 + $0x48] sm:$0xff] %v3243
        %3267 = vst [vmem:[%s3256 + $0x50] sm:$0xff] %v3245
        %3268 = vst [vmem:[%s3256 + $0x58] sm:$0xff] %v3247
        %3269 = vst [vmem:[%s3256 + $0x60] sm:$0xff] %v3249
        %3270 = vst [vmem:[%s3256 + $0x68] sm:$0xff] %v3251
        %3271 = vst [vmem:[%s3256 + $0x70] sm:$0xff] %v3253
        %3272 = vst [vmem:[%s3256 + $0x78] sm:$0xff] %v3255
        %s3273 = sand.u32 %s181, 1
        %s3274 = scalar_lea.sflag [#allocation3], %s3273
        %s3275 = sand.u32 %s181, 1
        %s3276 = smul.addr %s3275, 512
        %s3277 = scalar_lea.vmem [#allocation2], %s3276
        // Predicated region
        $region49: #{tpu_custom_call.1} parent=47 // pred_check
          %p3278 = pneg %p191
        $region50: #{tpu_custom_call.1} parent=47 // pred_check_branch
          %3280 = sbr.rel (%p3278) target = $region52
        $region51: #{tpu_custom_call.1} parent=47 // pred_region
          %s3282 = ssub.s32 8192, 8192
          %3283 = vsyncadd %s3274, %s3282
          %s3284 = smul.addr %s21, 64
          %s3285 = smul.addr %s3284, 128
          %s3286 = scalar_lea.hbm %s7, %s3285
          %s3287 = sshll.u32 %s3277, 4
          %s3288 = int_to_ptr.vmem [resolvable:$true] %s3287
          %3293 = dma.vmem_to_hbm [thread:$0]  %s3288, 8192, %s3286, %s3274, 256, 256, 16
        $region52: #{tpu_custom_call.1} parent=47 // pred_fallthru
          _
      $region48: #{tpu_custom_call.1} parent=5 // pred_fallthru
        _
      %p3294 = scmp.le.s32.totalorder 2, %s16
      // Predicated region
      $region53: #{tpu_custom_call.1} parent=5 // pred_check
        %p3295 = pneg %p3294
      $region54: #{tpu_custom_call.1} parent=5 // pred_check_branch
        %3297 = sbr.rel (%p3295) target = $region56
      $region55: #{tpu_custom_call.1} parent=5 // pred_region
        %s3298 = ssub.s32 %s16, 2
        // Predicated region
        $region57: #{tpu_custom_call.1} parent=55 // pred_check
          %p3299 = pneg %p197
        $region58: #{tpu_custom_call.1} parent=55 // pred_check_branch
          %3301 = sbr.rel (%p3299) target = $region60
        $region59: #{tpu_custom_call.1} parent=55 // pred_region
          %s3302 = sand.u32 %s182, 1
          %s3303 = scalar_lea.sflag [#allocation3], %s3302
          %s3304 = sand.u32 %s182, 1
          %s3305 = smul.addr %s3304, 512
          %s3306 = scalar_lea.vmem [#allocation2], %s3305
          %3307 = dma.done %s3303, 8192
        $region60: #{tpu_custom_call.1} parent=55 // pred_fallthru
          _
      $region56: #{tpu_custom_call.1} parent=5 // pred_fallthru
        _
    $region6: #{tpu_custom_call.1} parent=1 // loop_footer
      %s20 = sadd.s32 1, %s16
    $region7: #{tpu_custom_call.1} parent=1 // loop_footer_branch
      %15 = sbr.rel target = $region3
    $region8: #{tpu_custom_call.1} parent=1 // loop_exit
      _
    %3308 = vsyncpa [#allocation3], 1
    %s3309 = scalar_lea.sflag [#allocation3], 1
    %3310 = vsyncpa %s3309, 1

</llo_original>
